<compile_context>
chip_gen: v7x
topology: tpu7x:2x2x1
jax: 0.10.0
libtpu: 0.0.40
codegen_flags: <defaults>
</compile_context>

<pallas_src>
import math
from functools import partial

import jax
import jax.numpy as jnp
from jax import lax
from jax.experimental import pallas as pl
from jax.experimental.pallas import tpu as pltpu


# ----------------------------------------------------------------------------
# Hardware introspection helpers (tile / VMEM-budget selection only).
# ----------------------------------------------------------------------------
def _round_up(x, m):
    return -(-x // m) * m


def _tpu_generation():
    try:
        kind = jax.devices()[0].device_kind.lower()
    except Exception:
        return "unknown"
    if "v7" in kind:
        return "v7x"
    if "v6" in kind:
        return "v6e"
    if "v5e" in kind or ("v5" in kind and "lite" in kind):
        return "v5e"
    if "v5" in kind:
        return "v5p"
    return "unknown"


def _physical_vmem_bytes(gen):
    """Physical VMEM per core: runtime query first, per-generation table second."""
    table = {"v5e": 128 << 20, "v5p": 128 << 20, "v6e": 128 << 20, "v7x": 64 << 20}
    queried = None
    try:
        info = pltpu.get_tpu_info()
        q = getattr(info, "vmem_capacity_bytes", None)
        queried = int(q) if q else None
    except Exception:
        queried = None
    if gen in table:
        return min(queried, table[gen]) if queried else table[gen]
    return queried


def _default_q_tile(S, gen):
    # v5e: 4x128 MXU + single store slot -> keep the tile at 128.
    # v6e: 128 MiB VMEM, big MXU -> go wide.  v7x: 64 MiB VMEM -> 256.
    caps = {"v5e": 128, "v6e": 512, "v7x": 256, "v5p": 256}
    return min(caps.get(gen, 256), _round_up(S, 8))


def _vmem_need_bytes(H, S_pad, TQ, double_buffer_weights):
    """Rough upper bound on resident VMEM for one grid step."""
    bf, f = 2, 4
    Sl = max(S_pad, 128)   # lane padding
    Hl = max(H, 128)
    wmul = 2 if double_buffer_weights else 1
    weights = wmul * 12 * H * H * bf                       # Wq + Wkv + Wc + W1 + W2
    biases = wmul * 8 * 10 * Hl * f                        # sublane-padded bias rows
    x_blk = 2 * S_pad * Hl * bf                            # (1,S,H) bf16, double-buffered
    out_blk = 2 * TQ * Hl * f                              # (1,TQ,H) f32, double-buffered
    mask_blk = 2 * 8 * Sl * f + 2 * TQ * 128 * f           # row + column mask blocks
    kv_scr = H * Sl * bf + S_pad * Hl * bf                 # K^T and V scratch
    ctx_scr = TQ * Hl * bf                                 # per-head context slab
    temps = 6 * TQ * Sl * f + 3 * TQ * 4 * H * f + S_pad * 2 * Hl * f
    return int((weights + biases + x_blk + out_blk + mask_blk
                + kv_scr + ctx_scr + temps) * 1.15) + (4 << 20)


# ----------------------------------------------------------------------------
# Pallas kernel: one TransformerLayer, one (batch, query-tile) grid step.
# ----------------------------------------------------------------------------
def transformer_layer_kernel(
    mask_row_ref,  # (1, 1, S)   attention mask, row layout (f32)
    mask_col_ref,  # (1, TQ, 1)  attention mask for this query tile (f32)
    x_ref,         # (1, S, H)   full-sequence activations (bf16)
    wq_ref,        # (H, H)   bf16
    bq_ref,        # (1, H)   f32
    wkv_ref,       # (H, 2H)  bf16  fused [Wk | Wv]
    bkv_ref,       # (1, 2H)  f32   fused [bk | bv]
    wc_ref,        # (H, H)   bf16  output projection (bias-free)
    lnw_ref,       # (1, H)   f32   LayerNorm weight (shared by both LN calls)
    lnb_ref,       # (1, H)   f32   LayerNorm bias
    w1_ref,        # (H, 4H)  bf16
    b1_ref,        # (1, 4H)  f32
    w2_ref,        # (4H, H)  bf16
    b2_ref,        # (1, H)   f32
    o_ref,         # (1, TQ, H) output query tile
    k_buf,         # scratch (H, S)  bf16 -- K^T for the full sequence
    v_buf,         # scratch (S, H)  bf16 -- V  for the full sequence
    ctx_buf,       # scratch (TQ, H) bf16 -- per-head context slab
    *,
    head_num: int,
    q_tile: int,
    exp_dtype,
):
    S = x_ref.shape[1]
    H = x_ref.shape[2]
    TQ = q_tile
    Dh = H // head_num
    scale = 1.0 / math.sqrt(Dh)
    bf16 = jnp.bfloat16
    f32 = jnp.float32

    qi = pl.program_id(1)
    q_start = pl.multiple_of(qi * TQ, TQ)

    # ---- fused K/V projection for the whole sequence: once per batch element ----
    @pl.when(qi == 0)
    def _():
        xb = x_ref[0]                                                 # (S, H) bf16
        kv = jnp.dot(xb, wkv_ref[...],
                     preferred_element_type=f32) + bkv_ref[...]       # (S, 2H) f32
        # One f32 transpose per batch element; amortized over nq * head_num uses.
        k_buf[...] = kv[:, :H].T.astype(bf16)                         # (H, S)
        v_buf[...] = kv[:, H:].astype(bf16)                           # (S, H)

    # ---- Q projection for this query tile (full-width GEMM) ---------------------
    x_q = x_ref[0, pl.ds(q_start, TQ), :]                             # (TQ, H) bf16
    q = (jnp.dot(x_q, wq_ref[...], preferred_element_type=f32)
         + bq_ref[...]).astype(bf16)                                  # (TQ, H)

    # ---- Bert4Rec "new_mask" for this query tile (f32) ---------------------------
    # new_mask = clamp_max(1 - (1-mask)_col (1-mask)_row + eye, 1)
    ri = lax.broadcasted_iota(jnp.int32, (TQ, S), 0) + q_start
    ci = lax.broadcasted_iota(jnp.int32, (TQ, S), 1)
    eye = (ri == ci).astype(f32)                                      # (TQ, S)
    m_row = 1.0 - mask_row_ref[0]                                     # (1, S)
    m_col = 1.0 - mask_col_ref[0]                                     # (TQ, 1)
    new_mask = jnp.minimum(1.0 - m_col * m_row + eye, 1.0)            # (TQ, S)
    mask_bias = new_mask * 1.0e12
    post_mask = 1.0 - new_mask

    # ---- Per-head scaled-dot attention -------------------------------------------
    # Each head writes its bf16 context straight into ctx_buf, so the per-head
    # score/softmax temporaries die at the store (no f32 list-concat at the end).
    for h in range(head_num):
        lo = h * Dh
        qh = q[:, lo:lo + Dh]                                         # (TQ, Dh) bf16
        kh = k_buf[lo:lo + Dh, :]                                     # (Dh, S)  bf16
        vh = v_buf[:, lo:lo + Dh]                                     # (S,  Dh) bf16

        scores = jnp.dot(qh, kh, preferred_element_type=f32) * scale  # (TQ, S) f32
        energies = scores - mask_bias
        e_max = jnp.max(energies, axis=-1, keepdims=True)
        # exp in bf16 on v6e/v7x (bf16 EUP); f32 elsewhere.  Sum/recip stay f32.
        p = jnp.exp((energies - e_max).astype(exp_dtype)).astype(f32)
        inv_den = pl.reciprocal(jnp.sum(p, axis=-1, keepdims=True), approx=True)
        w = (p * inv_den * post_mask).astype(bf16)                    # (TQ, S) bf16

        ctx_buf[:, lo:lo + Dh] = jnp.dot(
            w, vh, preferred_element_type=f32).astype(bf16)

    # Single full-width output projection (K = H, not Dh).
    attn = jnp.dot(ctx_buf[...], wc_ref[...], preferred_element_type=f32)

    lnw = lnw_ref[...]
    lnb = lnb_ref[...]

    def layer_norm(t):
        mu = jnp.mean(t, axis=-1, keepdims=True)
        var = jnp.mean((t - mu) ** 2, axis=-1, keepdims=True)
        return (t - mu) * lax.rsqrt(var + 1e-5) * lnw + lnb

    # residual + LN (attention branch); residual / LN / GELU arithmetic stays f32
    h1 = layer_norm(x_q.astype(f32) + attn)

    # position-wise feed-forward: GELU(h1 W1 + b1) W2 + b2 (exact erf GELU)
    f = jnp.dot(h1.astype(bf16), w1_ref[...],
                preferred_element_type=f32) + b1_ref[...]
    f = 0.5 * f * (1.0 + lax.erf(f * (1.0 / math.sqrt(2.0))))
    f = jnp.dot(f.astype(bf16), w2_ref[...],
                preferred_element_type=f32) + b2_ref[...]

    # residual + LN (FFN branch)
    o_ref[0] = layer_norm(h1 + f).astype(o_ref.dtype)


# ----------------------------------------------------------------------------
# Wrapper: padding, per-generation tiling / VMEM budget, pallas_call launch.
# ----------------------------------------------------------------------------
def transformer_layer_pallas(x, mask, p, head_num, q_tile=None):
    B, S, H = x.shape
    assert H % head_num == 0, "hidden_size must be divisible by head_num"
    # NOTE: lane-dense output stores want H % 128 == 0; smaller H still lowers
    # (blocks span the full hidden dim) but with masked partial stores.
    f32, bf16 = jnp.float32, jnp.bfloat16
    out_dtype = x.dtype

    gen = _tpu_generation()
    phys_vmem = _physical_vmem_bytes(gen)
    if phys_vmem is not None:
        vmem_cap = max(32 << 20, phys_vmem - (16 << 20))   # headroom for Mosaic scratch
        vmem_limit = vmem_cap
    else:
        vmem_cap = 48 << 20      # conservative working assumption for tile choice
        vmem_limit = None        # don't request a limit on unrecognized hardware

    # ---- query-tile selection (shrink auto-chosen tiles to fit the budget) ------
    if q_tile is None:
        q_tile = _default_q_tile(S, gen)
        while q_tile > 64:
            if _vmem_need_bytes(H, _round_up(S, q_tile), q_tile, False) <= vmem_cap:
                break
            q_tile = max(64, _round_up(q_tile // 2, 8))
    else:
        q_tile = max(8, (q_tile // 8) * 8)
    S_pad = _round_up(S, q_tile)
    nq = S_pad // q_tile

    # ---- sequence padding --------------------------------------------------------
    # Padded positions get mask=1: the Bert4Rec new_mask then masks padded keys for
    # EVERY query (mask=0 padding would let masked queries attend to padded keys).
    if S_pad != S:
        x = jnp.pad(x, ((0, 0), (0, S_pad - S), (0, 0)))
        mask = jnp.pad(mask, ((0, 0), (0, S_pad - S)), constant_values=1.0)

    x_bf = x.astype(bf16)                       # halves HBM traffic + x VMEM residency
    mask_f = mask.astype(f32)
    mask_row = mask_f.reshape(B, 1, S_pad)
    mask_col = mask_f.reshape(B, S_pad, 1)

    wq = p["wq"].astype(bf16)
    wkv = jnp.concatenate([p["wk"], p["wv"]], axis=1).astype(bf16)     # (H, 2H)
    wc = p["wc"].astype(bf16)
    w1 = p["w1"].astype(bf16)
    w2 = p["w2"].astype(bf16)
    bq = p["bq"].reshape(1, H).astype(f32)
    bkv = jnp.concatenate([p["bk"], p["bv"]]).reshape(1, 2 * H).astype(f32)
    b1 = p["b1"].reshape(1, 4 * H).astype(f32)
    b2 = p["b2"].reshape(1, H).astype(f32)
    lnw = p["lnw"].reshape(1, H).astype(f32)
    lnb = p["lnb"].reshape(1, H).astype(f32)

    # bf16 EUP (exp) only exists on v6e/v7x; keep f32 on v5e / unknown.
    exp_dtype = bf16 if gen in ("v6e", "v7x") else f32

    kernel = partial(transformer_layer_kernel, head_num=head_num,
                     q_tile=q_tile, exp_dtype=exp_dtype)

    def build(single_buffer_weights):
        def const_spec(shape):
            nd = len(shape)
            idx = lambda b, q: (0,) * nd
            if single_buffer_weights:
                # Constant index map -> a single resident copy is enough.
                return pl.BlockSpec(shape, idx, pipeline_mode=pl.Buffered(1))
            return pl.BlockSpec(shape, idx)

        cp_kwargs = dict(dimension_semantics=("parallel", "arbitrary"))
        if vmem_limit is not None:
            cp_kwargs["vmem_limit_bytes"] = int(vmem_limit)

        return pl.pallas_call(
            kernel,
            out_shape=jax.ShapeDtypeStruct((B, S_pad, H), out_dtype),
            grid=(B, nq),
            in_specs=[
                pl.BlockSpec((1, 1, S_pad), lambda b, q: (b, 0, 0)),   # mask row
                pl.BlockSpec((1, q_tile, 1), lambda b, q: (b, q, 0)),  # mask col
                pl.BlockSpec((1, S_pad, H), lambda b, q: (b, 0, 0)),   # x (bf16)
                const_spec((H, H)), const_spec((1, H)),                # Wq, bq
                const_spec((H, 2 * H)), const_spec((1, 2 * H)),        # Wkv, bkv
                const_spec((H, H)),                                    # Wc
                const_spec((1, H)), const_spec((1, H)),                # LN w, b
                const_spec((H, 4 * H)), const_spec((1, 4 * H)),        # W1, b1
                const_spec((4 * H, H)), const_spec((1, H)),            # W2, b2
            ],
            out_specs=pl.BlockSpec((1, q_tile, H), lambda b, q: (b, q, 0)),
            scratch_shapes=[
                pltpu.VMEM((H, S_pad), bf16),     # K^T for the full sequence
                pltpu.VMEM((S_pad, H), bf16),     # V for the full sequence
                pltpu.VMEM((q_tile, H), bf16),    # per-head context slab
            ],
            compiler_params=pltpu.CompilerParams(**cp_kwargs),
        )

    args = (mask_row, mask_col, x_bf, wq, bq, wkv, bkv, wc,
            lnw, lnb, w1, b1, w2, b2)

    # Fallback to double-buffered weights only if that (2x larger) residency is
    # known to fit the budget; otherwise let the real error surface.
    can_double_buffer = (
        _vmem_need_bytes(H, S_pad, q_tile, True) <= vmem_cap)
    try:
        out = build(True)(*args)
    except Exception:
        if not can_double_buffer:
            raise
        out = build(False)(*args)

    return out[:, :S, :] if S_pad != S else out


def bert_forward(compute_output, attention_mask, params, head_num, q_tile=None):
    for layer_params in params:
        compute_output = transformer_layer_pallas(
            compute_output, attention_mask, layer_params, head_num, q_tile=q_tile
        )
    return compute_output


# ----------------------------------------------------------------------------
# Deterministic parameter init (shapes from the torch module __init__).
# ----------------------------------------------------------------------------
def init_params(key, hidden, sa_layer_num, initializer_range=0.02):
    params = []
    for _ in range(sa_layer_num):
        keys = jax.random.split(key, 12)
        key = keys[0]

        def nrm(k, shape, std=initializer_range):
            return std * jax.random.normal(k, shape, jnp.float32)

        params.append(dict(
            wq=nrm(keys[1], (hidden, hidden)), bq=nrm(keys[2], (hidden,)),
            wk=nrm(keys[3], (hidden, hidden)), bk=nrm(keys[4], (hidden,)),
            wv=nrm(keys[5], (hidden, hidden)), bv=nrm(keys[6], (hidden,)),
            wc=nrm(keys[7], (hidden, hidden)),                         # no bias
            lnw=jnp.ones((hidden,), jnp.float32),
            lnb=jnp.zeros((hidden,), jnp.float32),
            w1=nrm(keys[8], (hidden, 4 * hidden)), b1=nrm(keys[9], (4 * hidden,)),
            w2=nrm(keys[10], (4 * hidden, hidden)), b2=nrm(keys[11], (hidden,)),
        ))
    return params


# ----------------------------------------------------------------------------
# Pure-JAX f32 reference (mirrors the torch math exactly) for validation.
# ----------------------------------------------------------------------------
def bert_ref(x, mask, params, head_num):
    B, S, H = x.shape
    hd = H // head_num

    def mh(x, p):
        q = x @ p["wq"] + p["bq"]
        k = x @ p["wk"] + p["bk"]
        v = x @ p["wv"] + p["bv"]
        qs = jnp.stack(jnp.split(q, head_num, axis=-1), 0)   # (Hh, B, S, hd)
        ks = jnp.stack(jnp.split(k, head_num, axis=-1), 0)
        vs = jnp.stack(jnp.split(v, head_num, axis=-1), 0)
        dots = jnp.einsum("hbsd,hbtd->hbst", qs, ks) / jnp.sqrt(jnp.float32(hd))
        m = 1.0 - mask.astype(jnp.float32)
        eye = jnp.eye(S, dtype=jnp.float32)
        new_mask = jnp.minimum(1.0 - jnp.einsum("bs,bt->bst", m, m) + eye, 1.0)
        energies = dots - new_mask[None] * 1.0e12
        w = jax.nn.softmax(energies, axis=-1) * (1.0 - new_mask[None])
        out = jnp.einsum("hbst,hbtd->hbsd", w, vs)
        out = jnp.concatenate([out[i] for i in range(head_num)], axis=-1)
        return out @ p["wc"]

    def ln(t, p):
        mu = t.mean(-1, keepdims=True)
        var = ((t - mu) ** 2).mean(-1, keepdims=True)
        return (t - mu) / jnp.sqrt(var + 1e-5) * p["lnw"] + p["lnb"]

    for p in params:
        x = ln(x + mh(x, p), p)
        f = x @ p["w1"] + p["b1"]
        f = 0.5 * f * (1.0 + lax.erf(f / math.sqrt(2.0)))   # exact GELU
        f = f @ p["w2"] + p["b2"]
        x = ln(x + f, p)
    return x


# ----------------------------------------------------------------------------
if __name__ == "__main__":
    # S=20 matches the module's session_length and (with q_tile=8) exercises both
    # the sequence-padding path (S_pad=24) and the multi-q-tile K/V scratch reuse.
    # H=128 keeps output stores lane-dense.
    B, S, H, head_num, sa_layer_num = 2, 20, 128, 2, 2

    key = jax.random.PRNGKey(0)
    kx, km, kp = jax.random.split(key, 3)

    compute_output = jax.random.normal(kx, (B, S, H), jnp.float32)
    attention_mask = (jax.random.uniform(km, (B, S)) > 0.3).astype(jnp.float32)
    params = init_params(kp, H, sa_layer_num)

    out = bert_forward(compute_output, attention_mask, params, head_num, q_tile=8)
    out = jax.block_until_ready(out)

    ref = bert_ref(compute_output, attention_mask, params, head_num)
    assert out.shape == (B, S, H)
    max_err = float(jnp.max(jnp.abs(out - ref)))
    # bf16 activations/matmul operands, bf16 exp (on v6e/v7x) and the approx
    # reciprocal in the softmax denominator -> looser tolerance vs the f32 ref.
    assert jnp.allclose(out, ref, atol=5e-2, rtol=5e-2), (
        f"Pallas output mismatch vs reference (max abs err {max_err:.2e})")

    print("KERNEL_OK")
</pallas_src>

<mosaic_0001>
module attributes {stable_mosaic.version = 11 : i64} {
  func.func @transformer_layer_kernel(%arg0: i32, %arg1: i32, %arg2: memref<1x1x24xf32, #tpu.memory_space<vmem>>, %arg3: memref<1x8x1xf32, #tpu.memory_space<vmem>>, %arg4: memref<1x24x128xbf16, #tpu.memory_space<vmem>>, %arg5: memref<128x128xbf16, #tpu.memory_space<vmem>>, %arg6: memref<1x128xf32, #tpu.memory_space<vmem>>, %arg7: memref<128x256xbf16, #tpu.memory_space<vmem>>, %arg8: memref<1x256xf32, #tpu.memory_space<vmem>>, %arg9: memref<128x128xbf16, #tpu.memory_space<vmem>>, %arg10: memref<1x128xf32, #tpu.memory_space<vmem>>, %arg11: memref<1x128xf32, #tpu.memory_space<vmem>>, %arg12: memref<128x512xbf16, #tpu.memory_space<vmem>>, %arg13: memref<1x512xf32, #tpu.memory_space<vmem>>, %arg14: memref<512x128xbf16, #tpu.memory_space<vmem>>, %arg15: memref<1x128xf32, #tpu.memory_space<vmem>>, %arg16: memref<1x8x128xf32, #tpu.memory_space<vmem>>, %arg17: memref<128x24xbf16, #tpu.memory_space<vmem>>, %arg18: memref<24x128xbf16, #tpu.memory_space<vmem>>, %arg19: memref<8x128xbf16, #tpu.memory_space<vmem>>) attributes {dimension_semantics = [#tpu.dimension_semantics<parallel>, #tpu.dimension_semantics<arbitrary>], iteration_bounds = array<i64: 2, 3>, scalar_prefetch = 0 : i64, scratch_operands = 3 : i64, tpu.core_type = #tpu.core_type<tc>, window_params = [{transform_indices = @transform_0, window_bounds = array<i64: 1, 1, 24>}, {transform_indices = @transform_1, window_bounds = array<i64: 1, 8, 1>}, {transform_indices = @transform_2, window_bounds = array<i64: 1, 24, 128>}, {pipeline_mode = #tpu.pipeline_mode<synchronous>, transform_indices = @transform_3, window_bounds = array<i64: 128, 128>}, {pipeline_mode = #tpu.pipeline_mode<synchronous>, transform_indices = @transform_4, window_bounds = array<i64: 1, 128>}, {pipeline_mode = #tpu.pipeline_mode<synchronous>, transform_indices = @transform_5, window_bounds = array<i64: 128, 256>}, {pipeline_mode = #tpu.pipeline_mode<synchronous>, transform_indices = @transform_6, window_bounds = array<i64: 1, 256>}, {pipeline_mode = #tpu.pipeline_mode<synchronous>, transform_indices = @transform_7, window_bounds = array<i64: 128, 128>}, {pipeline_mode = #tpu.pipeline_mode<synchronous>, transform_indices = @transform_8, window_bounds = array<i64: 1, 128>}, {pipeline_mode = #tpu.pipeline_mode<synchronous>, transform_indices = @transform_9, window_bounds = array<i64: 1, 128>}, {pipeline_mode = #tpu.pipeline_mode<synchronous>, transform_indices = @transform_10, window_bounds = array<i64: 128, 512>}, {pipeline_mode = #tpu.pipeline_mode<synchronous>, transform_indices = @transform_11, window_bounds = array<i64: 1, 512>}, {pipeline_mode = #tpu.pipeline_mode<synchronous>, transform_indices = @transform_12, window_bounds = array<i64: 512, 128>}, {pipeline_mode = #tpu.pipeline_mode<synchronous>, transform_indices = @transform_13, window_bounds = array<i64: 1, 128>}, {transform_indices = @transform_14, window_bounds = array<i64: 1, 8, 128>}]} {
    %c8_i32 = arith.constant 8 : i32
    %0 = arith.muli %arg1, %c8_i32 : i32
    %1 = tpu.assume_multiple %0, 8 : i32
    %c0_i32 = arith.constant 0 : i32
    %2 = arith.cmpi eq, %arg1, %c0_i32 : i32
    %3 = arith.extui %2 : i1 to i32
    %c0_i32_0 = arith.constant 0 : i32
    %4 = arith.cmpi ne, %3, %c0_i32_0 : i32
    scf.if %4 {
      %c0_74 = arith.constant 0 : index
      %c0_75 = arith.constant 0 : index
      %c0_76 = arith.constant 0 : index
      %160 = vector.load %arg4[%c0_74, %c0_75, %c0_76] : memref<1x24x128xbf16, #tpu.memory_space<vmem>>, vector<1x24x128xbf16>
      %161 = vector.shape_cast %160 : vector<1x24x128xbf16> to vector<24x128xbf16>
      %c0_77 = arith.constant 0 : index
      %c0_78 = arith.constant 0 : index
      %162 = vector.load %arg7[%c0_77, %c0_78] : memref<128x256xbf16, #tpu.memory_space<vmem>>, vector<128x256xbf16>
      %cst_79 = arith.constant dense<0.000000e+00> : vector<24x256xf32>
      %163 = tpu.matmul %161, %162, %cst_79 {dimension_numbers = #tpu.dot_dimension_numbers<[1], [0], [0], [1], [0, 0, 1, 1], [], []>} : vector<24x128xbf16>, vector<128x256xbf16>, vector<24x256xf32> -> vector<24x256xf32>
      %c0_80 = arith.constant 0 : index
      %c0_81 = arith.constant 0 : index
      %164 = vector.load %arg8[%c0_80, %c0_81] : memref<1x256xf32, #tpu.memory_space<vmem>>, vector<1x256xf32>
      %165 = vector.broadcast %164 : vector<1x256xf32> to vector<24x256xf32>
      %166 = arith.addf %163, %165 : vector<24x256xf32>
      %167 = vector.extract_strided_slice %166 {offsets = [0, 0], sizes = [24, 128], strides = [1, 1]} : vector<24x256xf32> to vector<24x128xf32>
      %168 = tpu.transpose %167, [1, 0] : vector<24x128xf32> -> vector<128x24xf32>
      %169 = arith.truncf %168 : vector<128x24xf32> to vector<128x24xbf16>
      %c0_82 = arith.constant 0 : index
      %c0_83 = arith.constant 0 : index
      %170 = vector.load %arg17[%c0_82, %c0_83] : memref<128x24xbf16, #tpu.memory_space<vmem>>, vector<128x24xbf16>
      tpu.vector_store %arg17[%c0_82, %c0_83], %169 {strides = array<i32>} : memref<128x24xbf16, #tpu.memory_space<vmem>>, vector<128x24xbf16>,
      %171 = vector.extract_strided_slice %166 {offsets = [0, 128], sizes = [24, 128], strides = [1, 1]} : vector<24x256xf32> to vector<24x128xf32>
      %172 = arith.truncf %171 : vector<24x128xf32> to vector<24x128xbf16>
      %c0_84 = arith.constant 0 : index
      %c0_85 = arith.constant 0 : index
      %173 = vector.load %arg18[%c0_84, %c0_85] : memref<24x128xbf16, #tpu.memory_space<vmem>>, vector<24x128xbf16>
      tpu.vector_store %arg18[%c0_84, %c0_85], %172 {strides = array<i32>} : memref<24x128xbf16, #tpu.memory_space<vmem>>, vector<24x128xbf16>,
    } else {
    }
    %c0 = arith.constant 0 : index
    %5 = arith.index_cast %1 : i32 to index
    %c0_1 = arith.constant 0 : index
    %6 = vector.load %arg4[%c0, %5, %c0_1] : memref<1x24x128xbf16, #tpu.memory_space<vmem>>, vector<1x8x128xbf16>
    %7 = vector.shape_cast %6 : vector<1x8x128xbf16> to vector<8x128xbf16>
    %c0_2 = arith.constant 0 : index
    %c0_3 = arith.constant 0 : index
    %8 = vector.load %arg5[%c0_2, %c0_3] : memref<128x128xbf16, #tpu.memory_space<vmem>>, vector<128x128xbf16>
    %cst = arith.constant dense<0.000000e+00> : vector<8x128xf32>
    %9 = tpu.matmul %7, %8, %cst {dimension_numbers = #tpu.dot_dimension_numbers<[1], [0], [0], [1], [0, 0, 1, 1], [], []>} : vector<8x128xbf16>, vector<128x128xbf16>, vector<8x128xf32> -> vector<8x128xf32>
    %c0_4 = arith.constant 0 : index
    %c0_5 = arith.constant 0 : index
    %10 = vector.load %arg6[%c0_4, %c0_5] : memref<1x128xf32, #tpu.memory_space<vmem>>, vector<1x128xf32>
    %11 = vector.broadcast %10 : vector<1x128xf32> to vector<8x128xf32>
    %12 = arith.addf %9, %11 : vector<8x128xf32>
    %13 = arith.truncf %12 : vector<8x128xf32> to vector<8x128xbf16>
    %14 = tpu.iota {dimensions = array<i32: 0>} : vector<8x24xi32>
    %15 = vector.broadcast %1 : i32 to vector<8x24xi32>
    %16 = arith.addi %14, %15 : vector<8x24xi32>
    %17 = tpu.iota {dimensions = array<i32: 1>} : vector<8x24xi32>
    %18 = arith.cmpi eq, %16, %17 : vector<8x24xi32>
    %19 = arith.extui %18 : vector<8x24xi1> to vector<8x24xi32>
    %20 = arith.sitofp %19 : vector<8x24xi32> to vector<8x24xf32>
    %c0_6 = arith.constant 0 : index
    %c0_7 = arith.constant 0 : index
    %c0_8 = arith.constant 0 : index
    %21 = vector.load %arg2[%c0_6, %c0_7, %c0_8] : memref<1x1x24xf32, #tpu.memory_space<vmem>>, vector<1x1x24xf32>
    %22 = vector.shape_cast %21 : vector<1x1x24xf32> to vector<1x24xf32>
    %cst_9 = arith.constant 1.000000e+00 : f32
    %23 = vector.broadcast %cst_9 : f32 to vector<1x24xf32>
    %24 = arith.subf %23, %22 : vector<1x24xf32>
    %c0_10 = arith.constant 0 : index
    %c0_11 = arith.constant 0 : index
    %c0_12 = arith.constant 0 : index
    %25 = vector.load %arg3[%c0_10, %c0_11, %c0_12] : memref<1x8x1xf32, #tpu.memory_space<vmem>>, vector<1x8x1xf32>
    %26 = vector.shape_cast %25 : vector<1x8x1xf32> to vector<8x1xf32>
    %cst_13 = arith.constant 1.000000e+00 : f32
    %27 = vector.broadcast %cst_13 : f32 to vector<8x1xf32>
    %28 = arith.subf %27, %26 : vector<8x1xf32>
    %29 = vector.broadcast %28 : vector<8x1xf32> to vector<8x24xf32>
    %30 = vector.broadcast %24 : vector<1x24xf32> to vector<8x24xf32>
    %31 = arith.mulf %29, %30 : vector<8x24xf32>
    %cst_14 = arith.constant 1.000000e+00 : f32
    %32 = vector.broadcast %cst_14 : f32 to vector<8x24xf32>
    %33 = arith.subf %32, %31 : vector<8x24xf32>
    %34 = arith.addf %33, %20 : vector<8x24xf32>
    %cst_15 = arith.constant 1.000000e+00 : f32
    %35 = vector.broadcast %cst_15 : f32 to vector<8x24xf32>
    %36 = arith.minimumf %34, %35 : vector<8x24xf32>
    %cst_16 = arith.constant 9.99999995E+11 : f32
    %37 = vector.broadcast %cst_16 : f32 to vector<8x24xf32>
    %38 = arith.mulf %36, %37 : vector<8x24xf32>
    %cst_17 = arith.constant 1.000000e+00 : f32
    %39 = vector.broadcast %cst_17 : f32 to vector<8x24xf32>
    %40 = arith.subf %39, %36 : vector<8x24xf32>
    %41 = vector.extract_strided_slice %13 {offsets = [0, 0], sizes = [8, 64], strides = [1, 1]} : vector<8x128xbf16> to vector<8x64xbf16>
    %c0_18 = arith.constant 0 : index
    %c0_19 = arith.constant 0 : index
    %42 = vector.load %arg17[%c0_18, %c0_19] : memref<128x24xbf16, #tpu.memory_space<vmem>>, vector<64x24xbf16>
    %c0_20 = arith.constant 0 : index
    %c0_21 = arith.constant 0 : index
    %43 = vector.load %arg18[%c0_20, %c0_21] : memref<24x128xbf16, #tpu.memory_space<vmem>>, vector<24x64xbf16>
    %cst_22 = arith.constant dense<0.000000e+00> : vector<8x24xf32>
    %44 = tpu.matmul %41, %42, %cst_22 {dimension_numbers = #tpu.dot_dimension_numbers<[1], [0], [0], [1], [0, 0, 1, 1], [], []>} : vector<8x64xbf16>, vector<64x24xbf16>, vector<8x24xf32> -> vector<8x24xf32>
    %cst_23 = arith.constant 1.250000e-01 : f32
    %45 = vector.broadcast %cst_23 : f32 to vector<8x24xf32>
    %46 = arith.mulf %44, %45 : vector<8x24xf32>
    %47 = arith.subf %46, %38 : vector<8x24xf32>
    %cst_24 = arith.constant dense<0xFF800000> : vector<8xf32>
    %48 = vector.multi_reduction <maximumf>, %47, %cst_24 [1] : vector<8x24xf32> to vector<8xf32>
    %49 = vector.shape_cast %48 : vector<8xf32> to vector<8x1xf32>
    %50 = vector.broadcast %49 : vector<8x1xf32> to vector<8x24xf32>
    %51 = arith.subf %47, %50 : vector<8x24xf32>
    %52 = math.exp %51 : vector<8x24xf32>
    %cst_25 = arith.constant dense<0.000000e+00> : vector<8xf32>
    %53 = vector.multi_reduction <add>, %52, %cst_25 [1] : vector<8x24xf32> to vector<8xf32>
    %54 = vector.shape_cast %53 : vector<8xf32> to vector<8x1xf32>
    %55 = tpu.reciprocal %54 {approx = true} : vector<8x1xf32> -> vector<8x1xf32>
    %56 = vector.broadcast %55 : vector<8x1xf32> to vector<8x24xf32>
    %57 = arith.mulf %52, %56 : vector<8x24xf32>
    %58 = arith.mulf %57, %40 : vector<8x24xf32>
    %59 = arith.truncf %58 : vector<8x24xf32> to vector<8x24xbf16>
    %cst_26 = arith.constant dense<0.000000e+00> : vector<8x64xf32>
    %60 = tpu.matmul %59, %43, %cst_26 {dimension_numbers = #tpu.dot_dimension_numbers<[1], [0], [0], [1], [0, 0, 1, 1], [], []>} : vector<8x24xbf16>, vector<24x64xbf16>, vector<8x64xf32> -> vector<8x64xf32>
    %61 = arith.truncf %60 : vector<8x64xf32> to vector<8x64xbf16>
    %c0_27 = arith.constant 0 : index
    %c0_28 = arith.constant 0 : index
    %62 = vector.load %arg19[%c0_27, %c0_28] : memref<8x128xbf16, #tpu.memory_space<vmem>>, vector<8x64xbf16>
    tpu.vector_store %arg19[%c0_27, %c0_28], %61 {strides = array<i32>} : memref<8x128xbf16, #tpu.memory_space<vmem>>, vector<8x64xbf16>,
    %63 = vector.extract_strided_slice %13 {offsets = [0, 64], sizes = [8, 64], strides = [1, 1]} : vector<8x128xbf16> to vector<8x64xbf16>
    %c64 = arith.constant 64 : index
    %c0_29 = arith.constant 0 : index
    %64 = vector.load %arg17[%c64, %c0_29] : memref<128x24xbf16, #tpu.memory_space<vmem>>, vector<64x24xbf16>
    %c0_30 = arith.constant 0 : index
    %c64_31 = arith.constant 64 : index
    %65 = vector.load %arg18[%c0_30, %c64_31] : memref<24x128xbf16, #tpu.memory_space<vmem>>, vector<24x64xbf16>
    %cst_32 = arith.constant dense<0.000000e+00> : vector<8x24xf32>
    %66 = tpu.matmul %63, %64, %cst_32 {dimension_numbers = #tpu.dot_dimension_numbers<[1], [0], [0], [1], [0, 0, 1, 1], [], []>} : vector<8x64xbf16>, vector<64x24xbf16>, vector<8x24xf32> -> vector<8x24xf32>
    %cst_33 = arith.constant 1.250000e-01 : f32
    %67 = vector.broadcast %cst_33 : f32 to vector<8x24xf32>
    %68 = arith.mulf %66, %67 : vector<8x24xf32>
    %69 = arith.subf %68, %38 : vector<8x24xf32>
    %cst_34 = arith.constant dense<0xFF800000> : vector<8xf32>
    %70 = vector.multi_reduction <maximumf>, %69, %cst_34 [1] : vector<8x24xf32> to vector<8xf32>
    %71 = vector.shape_cast %70 : vector<8xf32> to vector<8x1xf32>
    %72 = vector.broadcast %71 : vector<8x1xf32> to vector<8x24xf32>
    %73 = arith.subf %69, %72 : vector<8x24xf32>
    %74 = math.exp %73 : vector<8x24xf32>
    %cst_35 = arith.constant dense<0.000000e+00> : vector<8xf32>
    %75 = vector.multi_reduction <add>, %74, %cst_35 [1] : vector<8x24xf32> to vector<8xf32>
    %76 = vector.shape_cast %75 : vector<8xf32> to vector<8x1xf32>
    %77 = tpu.reciprocal %76 {approx = true} : vector<8x1xf32> -> vector<8x1xf32>
    %78 = vector.broadcast %77 : vector<8x1xf32> to vector<8x24xf32>
    %79 = arith.mulf %74, %78 : vector<8x24xf32>
    %80 = arith.mulf %79, %40 : vector<8x24xf32>
    %81 = arith.truncf %80 : vector<8x24xf32> to vector<8x24xbf16>
    %cst_36 = arith.constant dense<0.000000e+00> : vector<8x64xf32>
    %82 = tpu.matmul %81, %65, %cst_36 {dimension_numbers = #tpu.dot_dimension_numbers<[1], [0], [0], [1], [0, 0, 1, 1], [], []>} : vector<8x24xbf16>, vector<24x64xbf16>, vector<8x64xf32> -> vector<8x64xf32>
    %83 = arith.truncf %82 : vector<8x64xf32> to vector<8x64xbf16>
    %c0_37 = arith.constant 0 : index
    %c64_38 = arith.constant 64 : index
    %84 = vector.load %arg19[%c0_37, %c64_38] : memref<8x128xbf16, #tpu.memory_space<vmem>>, vector<8x64xbf16>
    tpu.vector_store %arg19[%c0_37, %c64_38], %83 {strides = array<i32>} : memref<8x128xbf16, #tpu.memory_space<vmem>>, vector<8x64xbf16>,
    %c0_39 = arith.constant 0 : index
    %c0_40 = arith.constant 0 : index
    %85 = vector.load %arg19[%c0_39, %c0_40] : memref<8x128xbf16, #tpu.memory_space<vmem>>, vector<8x128xbf16>
    %c0_41 = arith.constant 0 : index
    %c0_42 = arith.constant 0 : index
    %86 = vector.load %arg9[%c0_41, %c0_42] : memref<128x128xbf16, #tpu.memory_space<vmem>>, vector<128x128xbf16>
    %cst_43 = arith.constant dense<0.000000e+00> : vector<8x128xf32>
    %87 = tpu.matmul %85, %86, %cst_43 {dimension_numbers = #tpu.dot_dimension_numbers<[1], [0], [0], [1], [0, 0, 1, 1], [], []>} : vector<8x128xbf16>, vector<128x128xbf16>, vector<8x128xf32> -> vector<8x128xf32>
    %c0_44 = arith.constant 0 : index
    %c0_45 = arith.constant 0 : index
    %88 = vector.load %arg10[%c0_44, %c0_45] : memref<1x128xf32, #tpu.memory_space<vmem>>, vector<1x128xf32>
    %c0_46 = arith.constant 0 : index
    %c0_47 = arith.constant 0 : index
    %89 = vector.load %arg11[%c0_46, %c0_47] : memref<1x128xf32, #tpu.memory_space<vmem>>, vector<1x128xf32>
    %90 = arith.extf %7 : vector<8x128xbf16> to vector<8x128xf32>
    %91 = arith.addf %90, %87 : vector<8x128xf32>
    %cst_48 = arith.constant dense<0.000000e+00> : vector<8xf32>
    %92 = vector.multi_reduction <add>, %91, %cst_48 [1] : vector<8x128xf32> to vector<8xf32>
    %93 = vector.shape_cast %92 : vector<8xf32> to vector<8x1xf32>
    %cst_49 = arith.constant 1.280000e+02 : f32
    %94 = vector.broadcast %cst_49 : f32 to vector<8x1xf32>
    %95 = arith.divf %93, %94 : vector<8x1xf32>
    %96 = vector.broadcast %95 : vector<8x1xf32> to vector<8x128xf32>
    %97 = arith.subf %91, %96 : vector<8x128xf32>
    %98 = arith.mulf %97, %97 : vector<8x128xf32>
    %cst_50 = arith.constant dense<0.000000e+00> : vector<8xf32>
    %99 = vector.multi_reduction <add>, %98, %cst_50 [1] : vector<8x128xf32> to vector<8xf32>
    %100 = vector.shape_cast %99 : vector<8xf32> to vector<8x1xf32>
    %cst_51 = arith.constant 1.280000e+02 : f32
    %101 = vector.broadcast %cst_51 : f32 to vector<8x1xf32>
    %102 = arith.divf %100, %101 : vector<8x1xf32>
    %103 = vector.broadcast %95 : vector<8x1xf32> to vector<8x128xf32>
    %104 = arith.subf %91, %103 : vector<8x128xf32>
    %cst_52 = arith.constant 9.99999974E-6 : f32
    %105 = vector.broadcast %cst_52 : f32 to vector<8x1xf32>
    %106 = arith.addf %102, %105 : vector<8x1xf32>
    %107 = math.rsqrt %106 : vector<8x1xf32>
    %108 = vector.broadcast %107 : vector<8x1xf32> to vector<8x128xf32>
    %109 = arith.mulf %104, %108 : vector<8x128xf32>
    %110 = vector.broadcast %88 : vector<1x128xf32> to vector<8x128xf32>
    %111 = arith.mulf %109, %110 : vector<8x128xf32>
    %112 = vector.broadcast %89 : vector<1x128xf32> to vector<8x128xf32>
    %113 = arith.addf %111, %112 : vector<8x128xf32>
    %114 = arith.truncf %113 : vector<8x128xf32> to vector<8x128xbf16>
    %c0_53 = arith.constant 0 : index
    %c0_54 = arith.constant 0 : index
    %115 = vector.load %arg12[%c0_53, %c0_54] : memref<128x512xbf16, #tpu.memory_space<vmem>>, vector<128x512xbf16>
    %cst_55 = arith.constant dense<0.000000e+00> : vector<8x512xf32>
    %116 = tpu.matmul %114, %115, %cst_55 {dimension_numbers = #tpu.dot_dimension_numbers<[1], [0], [0], [1], [0, 0, 1, 1], [], []>} : vector<8x128xbf16>, vector<128x512xbf16>, vector<8x512xf32> -> vector<8x512xf32>
    %c0_56 = arith.constant 0 : index
    %c0_57 = arith.constant 0 : index
    %117 = vector.load %arg13[%c0_56, %c0_57] : memref<1x512xf32, #tpu.memory_space<vmem>>, vector<1x512xf32>
    %118 = vector.broadcast %117 : vector<1x512xf32> to vector<8x512xf32>
    %119 = arith.addf %116, %118 : vector<8x512xf32>
    %cst_58 = arith.constant 5.000000e-01 : f32
    %120 = vector.broadcast %cst_58 : f32 to vector<8x512xf32>
    %121 = arith.mulf %120, %119 : vector<8x512xf32>
    %cst_59 = arith.constant 0.707106769 : f32
    %122 = vector.broadcast %cst_59 : f32 to vector<8x512xf32>
    %123 = arith.mulf %119, %122 : vector<8x512xf32>
    %124 = math.erf %123 : vector<8x512xf32>
    %cst_60 = arith.constant 1.000000e+00 : f32
    %125 = vector.broadcast %cst_60 : f32 to vector<8x512xf32>
    %126 = arith.addf %125, %124 : vector<8x512xf32>
    %127 = arith.mulf %121, %126 : vector<8x512xf32>
    %128 = arith.truncf %127 : vector<8x512xf32> to vector<8x512xbf16>
    %c0_61 = arith.constant 0 : index
    %c0_62 = arith.constant 0 : index
    %129 = vector.load %arg14[%c0_61, %c0_62] : memref<512x128xbf16, #tpu.memory_space<vmem>>, vector<512x128xbf16>
    %cst_63 = arith.constant dense<0.000000e+00> : vector<8x128xf32>
    %130 = tpu.matmul %128, %129, %cst_63 {dimension_numbers = #tpu.dot_dimension_numbers<[1], [0], [0], [1], [0, 0, 1, 1], [], []>} : vector<8x512xbf16>, vector<512x128xbf16>, vector<8x128xf32> -> vector<8x128xf32>
    %c0_64 = arith.constant 0 : index
    %c0_65 = arith.constant 0 : index
    %131 = vector.load %arg15[%c0_64, %c0_65] : memref<1x128xf32, #tpu.memory_space<vmem>>, vector<1x128xf32>
    %132 = vector.broadcast %131 : vector<1x128xf32> to vector<8x128xf32>
    %133 = arith.addf %130, %132 : vector<8x128xf32>
    %134 = arith.addf %113, %133 : vector<8x128xf32>
    %cst_66 = arith.constant dense<0.000000e+00> : vector<8xf32>
    %135 = vector.multi_reduction <add>, %134, %cst_66 [1] : vector<8x128xf32> to vector<8xf32>
    %136 = vector.shape_cast %135 : vector<8xf32> to vector<8x1xf32>
    %cst_67 = arith.constant 1.280000e+02 : f32
    %137 = vector.broadcast %cst_67 : f32 to vector<8x1xf32>
    %138 = arith.divf %136, %137 : vector<8x1xf32>
    %139 = vector.broadcast %138 : vector<8x1xf32> to vector<8x128xf32>
    %140 = arith.subf %134, %139 : vector<8x128xf32>
    %141 = arith.mulf %140, %140 : vector<8x128xf32>
    %cst_68 = arith.constant dense<0.000000e+00> : vector<8xf32>
    %142 = vector.multi_reduction <add>, %141, %cst_68 [1] : vector<8x128xf32> to vector<8xf32>
    %143 = vector.shape_cast %142 : vector<8xf32> to vector<8x1xf32>
    %cst_69 = arith.constant 1.280000e+02 : f32
    %144 = vector.broadcast %cst_69 : f32 to vector<8x1xf32>
    %145 = arith.divf %143, %144 : vector<8x1xf32>
    %146 = vector.broadcast %138 : vector<8x1xf32> to vector<8x128xf32>
    %147 = arith.subf %134, %146 : vector<8x128xf32>
    %cst_70 = arith.constant 9.99999974E-6 : f32
    %148 = vector.broadcast %cst_70 : f32 to vector<8x1xf32>
    %149 = arith.addf %145, %148 : vector<8x1xf32>
    %150 = math.rsqrt %149 : vector<8x1xf32>
    %151 = vector.broadcast %150 : vector<8x1xf32> to vector<8x128xf32>
    %152 = arith.mulf %147, %151 : vector<8x128xf32>
    %153 = vector.broadcast %88 : vector<1x128xf32> to vector<8x128xf32>
    %154 = arith.mulf %152, %153 : vector<8x128xf32>
    %155 = vector.broadcast %89 : vector<1x128xf32> to vector<8x128xf32>
    %156 = arith.addf %154, %155 : vector<8x128xf32>
    %c0_71 = arith.constant 0 : index
    %c0_72 = arith.constant 0 : index
    %c0_73 = arith.constant 0 : index
    %157 = vector.load %arg16[%c0_71, %c0_72, %c0_73] : memref<1x8x128xf32, #tpu.memory_space<vmem>>, vector<1x8x128xf32>
    %158 = vector.shape_cast %157 : vector<1x8x128xf32> to vector<8x128xf32>
    %159 = vector.shape_cast %156 : vector<8x128xf32> to vector<1x8x128xf32>
    tpu.vector_store %arg16[%c0_71, %c0_72, %c0_73], %159 {strides = array<i32>} : memref<1x8x128xf32, #tpu.memory_space<vmem>>, vector<1x8x128xf32>,
    return
  }
  func.func @transform_0(%arg0: i32, %arg1: i32) -> (i32, i32, i32) {
    %c0_i32 = arith.constant 0 : i32
    %c0_i32_0 = arith.constant 0 : i32
    %c0_i32_1 = arith.constant 0 : i32
    return %arg0, %c0_i32, %c0_i32_0 : i32, i32, i32
  }
  func.func @transform_1(%arg0: i32, %arg1: i32) -> (i32, i32, i32) {
    %c0_i32 = arith.constant 0 : i32
    %c0_i32_0 = arith.constant 0 : i32
    return %arg0, %arg1, %c0_i32 : i32, i32, i32
  }
  func.func @transform_2(%arg0: i32, %arg1: i32) -> (i32, i32, i32) {
    %c0_i32 = arith.constant 0 : i32
    %c0_i32_0 = arith.constant 0 : i32
    %c0_i32_1 = arith.constant 0 : i32
    return %arg0, %c0_i32, %c0_i32_0 : i32, i32, i32
  }
  func.func @transform_3(%arg0: i32, %arg1: i32) -> (i32, i32) {
    %c0_i32 = arith.constant 0 : i32
    %c0_i32_0 = arith.constant 0 : i32
    %c0_i32_1 = arith.constant 0 : i32
    return %c0_i32, %c0_i32_0 : i32, i32
  }
  func.func @transform_4(%arg0: i32, %arg1: i32) -> (i32, i32) {
    %c0_i32 = arith.constant 0 : i32
    %c0_i32_0 = arith.constant 0 : i32
    %c0_i32_1 = arith.constant 0 : i32
    return %c0_i32, %c0_i32_0 : i32, i32
  }
  func.func @transform_5(%arg0: i32, %arg1: i32) -> (i32, i32) {
    %c0_i32 = arith.constant 0 : i32
    %c0_i32_0 = arith.constant 0 : i32
    %c0_i32_1 = arith.constant 0 : i32
    return %c0_i32, %c0_i32_0 : i32, i32
  }
  func.func @transform_6(%arg0: i32, %arg1: i32) -> (i32, i32) {
    %c0_i32 = arith.constant 0 : i32
    %c0_i32_0 = arith.constant 0 : i32
    %c0_i32_1 = arith.constant 0 : i32
    return %c0_i32, %c0_i32_0 : i32, i32
  }
  func.func @transform_7(%arg0: i32, %arg1: i32) -> (i32, i32) {
    %c0_i32 = arith.constant 0 : i32
    %c0_i32_0 = arith.constant 0 : i32
    %c0_i32_1 = arith.constant 0 : i32
    return %c0_i32, %c0_i32_0 : i32, i32
  }
  func.func @transform_8(%arg0: i32, %arg1: i32) -> (i32, i32) {
    %c0_i32 = arith.constant 0 : i32
    %c0_i32_0 = arith.constant 0 : i32
    %c0_i32_1 = arith.constant 0 : i32
    return %c0_i32, %c0_i32_0 : i32, i32
  }
  func.func @transform_9(%arg0: i32, %arg1: i32) -> (i32, i32) {
    %c0_i32 = arith.constant 0 : i32
    %c0_i32_0 = arith.constant 0 : i32
    %c0_i32_1 = arith.constant 0 : i32
    return %c0_i32, %c0_i32_0 : i32, i32
  }
  func.func @transform_10(%arg0: i32, %arg1: i32) -> (i32, i32) {
    %c0_i32 = arith.constant 0 : i32
    %c0_i32_0 = arith.constant 0 : i32
    %c0_i32_1 = arith.constant 0 : i32
    return %c0_i32, %c0_i32_0 : i32, i32
  }
  func.func @transform_11(%arg0: i32, %arg1: i32) -> (i32, i32) {
    %c0_i32 = arith.constant 0 : i32
    %c0_i32_0 = arith.constant 0 : i32
    %c0_i32_1 = arith.constant 0 : i32
    return %c0_i32, %c0_i32_0 : i32, i32
  }
  func.func @transform_12(%arg0: i32, %arg1: i32) -> (i32, i32) {
    %c0_i32 = arith.constant 0 : i32
    %c0_i32_0 = arith.constant 0 : i32
    %c0_i32_1 = arith.constant 0 : i32
    return %c0_i32, %c0_i32_0 : i32, i32
  }
  func.func @transform_13(%arg0: i32, %arg1: i32) -> (i32, i32) {
    %c0_i32 = arith.constant 0 : i32
    %c0_i32_0 = arith.constant 0 : i32
    %c0_i32_1 = arith.constant 0 : i32
    return %c0_i32, %c0_i32_0 : i32, i32
  }
  func.func @transform_14(%arg0: i32, %arg1: i32) -> (i32, i32, i32) {
    %c0_i32 = arith.constant 0 : i32
    %c0_i32_0 = arith.constant 0 : i32
    return %arg0, %arg1, %c0_i32 : i32, i32, i32
  }
}

module attributes {stable_mosaic.version = 11 : i64} {
  func.func @transformer_layer_kernel(%arg0: i32, %arg1: i32, %arg2: memref<1x1x24xf32, #tpu.memory_space<vmem>>, %arg3: memref<1x8x1xf32, #tpu.memory_space<vmem>>, %arg4: memref<1x24x128xbf16, #tpu.memory_space<vmem>>, %arg5: memref<128x128xbf16, #tpu.memory_space<vmem>>, %arg6: memref<1x128xf32, #tpu.memory_space<vmem>>, %arg7: memref<128x256xbf16, #tpu.memory_space<vmem>>, %arg8: memref<1x256xf32, #tpu.memory_space<vmem>>, %arg9: memref<128x128xbf16, #tpu.memory_space<vmem>>, %arg10: memref<1x128xf32, #tpu.memory_space<vmem>>, %arg11: memref<1x128xf32, #tpu.memory_space<vmem>>, %arg12: memref<128x512xbf16, #tpu.memory_space<vmem>>, %arg13: memref<1x512xf32, #tpu.memory_space<vmem>>, %arg14: memref<512x128xbf16, #tpu.memory_space<vmem>>, %arg15: memref<1x128xf32, #tpu.memory_space<vmem>>, %arg16: memref<1x8x128xf32, #tpu.memory_space<vmem>>, %arg17: memref<128x24xbf16, #tpu.memory_space<vmem>>, %arg18: memref<24x128xbf16, #tpu.memory_space<vmem>>, %arg19: memref<8x128xbf16, #tpu.memory_space<vmem>>) attributes {dimension_semantics = [#tpu.dimension_semantics<parallel>, #tpu.dimension_semantics<arbitrary>], iteration_bounds = array<i64: 2, 3>, scalar_prefetch = 0 : i64, scratch_operands = 3 : i64, tpu.core_type = #tpu.core_type<tc>, window_params = [{transform_indices = @transform_0, window_bounds = array<i64: 1, 1, 24>}, {transform_indices = @transform_1, window_bounds = array<i64: 1, 8, 1>}, {transform_indices = @transform_2, window_bounds = array<i64: 1, 24, 128>}, {pipeline_mode = #tpu.pipeline_mode<synchronous>, transform_indices = @transform_3, window_bounds = array<i64: 128, 128>}, {pipeline_mode = #tpu.pipeline_mode<synchronous>, transform_indices = @transform_4, window_bounds = array<i64: 1, 128>}, {pipeline_mode = #tpu.pipeline_mode<synchronous>, transform_indices = @transform_5, window_bounds = array<i64: 128, 256>}, {pipeline_mode = #tpu.pipeline_mode<synchronous>, transform_indices = @transform_6, window_bounds = array<i64: 1, 256>}, {pipeline_mode = #tpu.pipeline_mode<synchronous>, transform_indices = @transform_7, window_bounds = array<i64: 128, 128>}, {pipeline_mode = #tpu.pipeline_mode<synchronous>, transform_indices = @transform_8, window_bounds = array<i64: 1, 128>}, {pipeline_mode = #tpu.pipeline_mode<synchronous>, transform_indices = @transform_9, window_bounds = array<i64: 1, 128>}, {pipeline_mode = #tpu.pipeline_mode<synchronous>, transform_indices = @transform_10, window_bounds = array<i64: 128, 512>}, {pipeline_mode = #tpu.pipeline_mode<synchronous>, transform_indices = @transform_11, window_bounds = array<i64: 1, 512>}, {pipeline_mode = #tpu.pipeline_mode<synchronous>, transform_indices = @transform_12, window_bounds = array<i64: 512, 128>}, {pipeline_mode = #tpu.pipeline_mode<synchronous>, transform_indices = @transform_13, window_bounds = array<i64: 1, 128>}, {transform_indices = @transform_14, window_bounds = array<i64: 1, 8, 128>}]} {
    %c8_i32 = arith.constant 8 : i32
    %0 = arith.muli %arg1, %c8_i32 : i32
    %1 = tpu.assume_multiple %0, 8 : i32
    %c0_i32 = arith.constant 0 : i32
    %2 = arith.cmpi eq, %arg1, %c0_i32 : i32
    %3 = arith.extui %2 : i1 to i32
    %c0_i32_0 = arith.constant 0 : i32
    %4 = arith.cmpi ne, %3, %c0_i32_0 : i32
    scf.if %4 {
      %c0_74 = arith.constant 0 : index
      %c0_75 = arith.constant 0 : index
      %c0_76 = arith.constant 0 : index
      %160 = vector.load %arg4[%c0_74, %c0_75, %c0_76] : memref<1x24x128xbf16, #tpu.memory_space<vmem>>, vector<1x24x128xbf16>
      %161 = vector.shape_cast %160 : vector<1x24x128xbf16> to vector<24x128xbf16>
      %c0_77 = arith.constant 0 : index
      %c0_78 = arith.constant 0 : index
      %162 = vector.load %arg7[%c0_77, %c0_78] : memref<128x256xbf16, #tpu.memory_space<vmem>>, vector<128x256xbf16>
      %cst_79 = arith.constant dense<0.000000e+00> : vector<24x256xf32>
      %163 = tpu.matmul %161, %162, %cst_79 {dimension_numbers = #tpu.dot_dimension_numbers<[1], [0], [0], [1], [0, 0, 1, 1], [], []>} : vector<24x128xbf16>, vector<128x256xbf16>, vector<24x256xf32> -> vector<24x256xf32>
      %c0_80 = arith.constant 0 : index
      %c0_81 = arith.constant 0 : index
      %164 = vector.load %arg8[%c0_80, %c0_81] : memref<1x256xf32, #tpu.memory_space<vmem>>, vector<1x256xf32>
      %165 = vector.broadcast %164 : vector<1x256xf32> to vector<24x256xf32>
      %166 = arith.addf %163, %165 : vector<24x256xf32>
      %167 = vector.extract_strided_slice %166 {offsets = [0, 0], sizes = [24, 128], strides = [1, 1]} : vector<24x256xf32> to vector<24x128xf32>
      %168 = tpu.transpose %167, [1, 0] : vector<24x128xf32> -> vector<128x24xf32>
      %169 = arith.truncf %168 : vector<128x24xf32> to vector<128x24xbf16>
      %c0_82 = arith.constant 0 : index
      %c0_83 = arith.constant 0 : index
      %170 = vector.load %arg17[%c0_82, %c0_83] : memref<128x24xbf16, #tpu.memory_space<vmem>>, vector<128x24xbf16>
      tpu.vector_store %arg17[%c0_82, %c0_83], %169 {strides = array<i32>} : memref<128x24xbf16, #tpu.memory_space<vmem>>, vector<128x24xbf16>,
      %171 = vector.extract_strided_slice %166 {offsets = [0, 128], sizes = [24, 128], strides = [1, 1]} : vector<24x256xf32> to vector<24x128xf32>
      %172 = arith.truncf %171 : vector<24x128xf32> to vector<24x128xbf16>
      %c0_84 = arith.constant 0 : index
      %c0_85 = arith.constant 0 : index
      %173 = vector.load %arg18[%c0_84, %c0_85] : memref<24x128xbf16, #tpu.memory_space<vmem>>, vector<24x128xbf16>
      tpu.vector_store %arg18[%c0_84, %c0_85], %172 {strides = array<i32>} : memref<24x128xbf16, #tpu.memory_space<vmem>>, vector<24x128xbf16>,
    } else {
    }
    %c0 = arith.constant 0 : index
    %5 = arith.index_cast %1 : i32 to index
    %c0_1 = arith.constant 0 : index
    %6 = vector.load %arg4[%c0, %5, %c0_1] : memref<1x24x128xbf16, #tpu.memory_space<vmem>>, vector<1x8x128xbf16>
    %7 = vector.shape_cast %6 : vector<1x8x128xbf16> to vector<8x128xbf16>
    %c0_2 = arith.constant 0 : index
    %c0_3 = arith.constant 0 : index
    %8 = vector.load %arg5[%c0_2, %c0_3] : memref<128x128xbf16, #tpu.memory_space<vmem>>, vector<128x128xbf16>
    %cst = arith.constant dense<0.000000e+00> : vector<8x128xf32>
    %9 = tpu.matmul %7, %8, %cst {dimension_numbers = #tpu.dot_dimension_numbers<[1], [0], [0], [1], [0, 0, 1, 1], [], []>} : vector<8x128xbf16>, vector<128x128xbf16>, vector<8x128xf32> -> vector<8x128xf32>
    %c0_4 = arith.constant 0 : index
    %c0_5 = arith.constant 0 : index
    %10 = vector.load %arg6[%c0_4, %c0_5] : memref<1x128xf32, #tpu.memory_space<vmem>>, vector<1x128xf32>
    %11 = vector.broadcast %10 : vector<1x128xf32> to vector<8x128xf32>
    %12 = arith.addf %9, %11 : vector<8x128xf32>
    %13 = arith.truncf %12 : vector<8x128xf32> to vector<8x128xbf16>
    %14 = tpu.iota {dimensions = array<i32: 0>} : vector<8x24xi32>
    %15 = vector.broadcast %1 : i32 to vector<8x24xi32>
    %16 = arith.addi %14, %15 : vector<8x24xi32>
    %17 = tpu.iota {dimensions = array<i32: 1>} : vector<8x24xi32>
    %18 = arith.cmpi eq, %16, %17 : vector<8x24xi32>
    %19 = arith.extui %18 : vector<8x24xi1> to vector<8x24xi32>
    %20 = arith.sitofp %19 : vector<8x24xi32> to vector<8x24xf32>
    %c0_6 = arith.constant 0 : index
    %c0_7 = arith.constant 0 : index
    %c0_8 = arith.constant 0 : index
    %21 = vector.load %arg2[%c0_6, %c0_7, %c0_8] : memref<1x1x24xf32, #tpu.memory_space<vmem>>, vector<1x1x24xf32>
    %22 = vector.shape_cast %21 : vector<1x1x24xf32> to vector<1x24xf32>
    %cst_9 = arith.constant 1.000000e+00 : f32
    %23 = vector.broadcast %cst_9 : f32 to vector<1x24xf32>
    %24 = arith.subf %23, %22 : vector<1x24xf32>
    %c0_10 = arith.constant 0 : index
    %c0_11 = arith.constant 0 : index
    %c0_12 = arith.constant 0 : index
    %25 = vector.load %arg3[%c0_10, %c0_11, %c0_12] : memref<1x8x1xf32, #tpu.memory_space<vmem>>, vector<1x8x1xf32>
    %26 = vector.shape_cast %25 : vector<1x8x1xf32> to vector<8x1xf32>
    %cst_13 = arith.constant 1.000000e+00 : f32
    %27 = vector.broadcast %cst_13 : f32 to vector<8x1xf32>
    %28 = arith.subf %27, %26 : vector<8x1xf32>
    %29 = vector.broadcast %28 : vector<8x1xf32> to vector<8x24xf32>
    %30 = vector.broadcast %24 : vector<1x24xf32> to vector<8x24xf32>
    %31 = arith.mulf %29, %30 : vector<8x24xf32>
    %cst_14 = arith.constant 1.000000e+00 : f32
    %32 = vector.broadcast %cst_14 : f32 to vector<8x24xf32>
    %33 = arith.subf %32, %31 : vector<8x24xf32>
    %34 = arith.addf %33, %20 : vector<8x24xf32>
    %cst_15 = arith.constant 1.000000e+00 : f32
    %35 = vector.broadcast %cst_15 : f32 to vector<8x24xf32>
    %36 = arith.minimumf %34, %35 : vector<8x24xf32>
    %cst_16 = arith.constant 9.99999995E+11 : f32
    %37 = vector.broadcast %cst_16 : f32 to vector<8x24xf32>
    %38 = arith.mulf %36, %37 : vector<8x24xf32>
    %cst_17 = arith.constant 1.000000e+00 : f32
    %39 = vector.broadcast %cst_17 : f32 to vector<8x24xf32>
    %40 = arith.subf %39, %36 : vector<8x24xf32>
    %41 = vector.extract_strided_slice %13 {offsets = [0, 0], sizes = [8, 64], strides = [1, 1]} : vector<8x128xbf16> to vector<8x64xbf16>
    %c0_18 = arith.constant 0 : index
    %c0_19 = arith.constant 0 : index
    %42 = vector.load %arg17[%c0_18, %c0_19] : memref<128x24xbf16, #tpu.memory_space<vmem>>, vector<64x24xbf16>
    %c0_20 = arith.constant 0 : index
    %c0_21 = arith.constant 0 : index
    %43 = vector.load %arg18[%c0_20, %c0_21] : memref<24x128xbf16, #tpu.memory_space<vmem>>, vector<24x64xbf16>
    %cst_22 = arith.constant dense<0.000000e+00> : vector<8x24xf32>
    %44 = tpu.matmul %41, %42, %cst_22 {dimension_numbers = #tpu.dot_dimension_numbers<[1], [0], [0], [1], [0, 0, 1, 1], [], []>} : vector<8x64xbf16>, vector<64x24xbf16>, vector<8x24xf32> -> vector<8x24xf32>
    %cst_23 = arith.constant 1.250000e-01 : f32
    %45 = vector.broadcast %cst_23 : f32 to vector<8x24xf32>
    %46 = arith.mulf %44, %45 : vector<8x24xf32>
    %47 = arith.subf %46, %38 : vector<8x24xf32>
    %cst_24 = arith.constant dense<0xFF800000> : vector<8xf32>
    %48 = vector.multi_reduction <maximumf>, %47, %cst_24 [1] : vector<8x24xf32> to vector<8xf32>
    %49 = vector.shape_cast %48 : vector<8xf32> to vector<8x1xf32>
    %50 = vector.broadcast %49 : vector<8x1xf32> to vector<8x24xf32>
    %51 = arith.subf %47, %50 : vector<8x24xf32>
    %52 = math.exp %51 : vector<8x24xf32>
    %cst_25 = arith.constant dense<0.000000e+00> : vector<8xf32>
    %53 = vector.multi_reduction <add>, %52, %cst_25 [1] : vector<8x24xf32> to vector<8xf32>
    %54 = vector.shape_cast %53 : vector<8xf32> to vector<8x1xf32>
    %55 = tpu.reciprocal %54 {approx = true} : vector<8x1xf32> -> vector<8x1xf32>
    %56 = vector.broadcast %55 : vector<8x1xf32> to vector<8x24xf32>
    %57 = arith.mulf %52, %56 : vector<8x24xf32>
    %58 = arith.mulf %57, %40 : vector<8x24xf32>
    %59 = arith.truncf %58 : vector<8x24xf32> to vector<8x24xbf16>
    %cst_26 = arith.constant dense<0.000000e+00> : vector<8x64xf32>
    %60 = tpu.matmul %59, %43, %cst_26 {dimension_numbers = #tpu.dot_dimension_numbers<[1], [0], [0], [1], [0, 0, 1, 1], [], []>} : vector<8x24xbf16>, vector<24x64xbf16>, vector<8x64xf32> -> vector<8x64xf32>
    %61 = arith.truncf %60 : vector<8x64xf32> to vector<8x64xbf16>
    %c0_27 = arith.constant 0 : index
    %c0_28 = arith.constant 0 : index
    %62 = vector.load %arg19[%c0_27, %c0_28] : memref<8x128xbf16, #tpu.memory_space<vmem>>, vector<8x64xbf16>
    tpu.vector_store %arg19[%c0_27, %c0_28], %61 {strides = array<i32>} : memref<8x128xbf16, #tpu.memory_space<vmem>>, vector<8x64xbf16>,
    %63 = vector.extract_strided_slice %13 {offsets = [0, 64], sizes = [8, 64], strides = [1, 1]} : vector<8x128xbf16> to vector<8x64xbf16>
    %c64 = arith.constant 64 : index
    %c0_29 = arith.constant 0 : index
    %64 = vector.load %arg17[%c64, %c0_29] : memref<128x24xbf16, #tpu.memory_space<vmem>>, vector<64x24xbf16>
    %c0_30 = arith.constant 0 : index
    %c64_31 = arith.constant 64 : index
    %65 = vector.load %arg18[%c0_30, %c64_31] : memref<24x128xbf16, #tpu.memory_space<vmem>>, vector<24x64xbf16>
    %cst_32 = arith.constant dense<0.000000e+00> : vector<8x24xf32>
    %66 = tpu.matmul %63, %64, %cst_32 {dimension_numbers = #tpu.dot_dimension_numbers<[1], [0], [0], [1], [0, 0, 1, 1], [], []>} : vector<8x64xbf16>, vector<64x24xbf16>, vector<8x24xf32> -> vector<8x24xf32>
    %cst_33 = arith.constant 1.250000e-01 : f32
    %67 = vector.broadcast %cst_33 : f32 to vector<8x24xf32>
    %68 = arith.mulf %66, %67 : vector<8x24xf32>
    %69 = arith.subf %68, %38 : vector<8x24xf32>
    %cst_34 = arith.constant dense<0xFF800000> : vector<8xf32>
    %70 = vector.multi_reduction <maximumf>, %69, %cst_34 [1] : vector<8x24xf32> to vector<8xf32>
    %71 = vector.shape_cast %70 : vector<8xf32> to vector<8x1xf32>
    %72 = vector.broadcast %71 : vector<8x1xf32> to vector<8x24xf32>
    %73 = arith.subf %69, %72 : vector<8x24xf32>
    %74 = math.exp %73 : vector<8x24xf32>
    %cst_35 = arith.constant dense<0.000000e+00> : vector<8xf32>
    %75 = vector.multi_reduction <add>, %74, %cst_35 [1] : vector<8x24xf32> to vector<8xf32>
    %76 = vector.shape_cast %75 : vector<8xf32> to vector<8x1xf32>
    %77 = tpu.reciprocal %76 {approx = true} : vector<8x1xf32> -> vector<8x1xf32>
    %78 = vector.broadcast %77 : vector<8x1xf32> to vector<8x24xf32>
    %79 = arith.mulf %74, %78 : vector<8x24xf32>
    %80 = arith.mulf %79, %40 : vector<8x24xf32>
    %81 = arith.truncf %80 : vector<8x24xf32> to vector<8x24xbf16>
    %cst_36 = arith.constant dense<0.000000e+00> : vector<8x64xf32>
    %82 = tpu.matmul %81, %65, %cst_36 {dimension_numbers = #tpu.dot_dimension_numbers<[1], [0], [0], [1], [0, 0, 1, 1], [], []>} : vector<8x24xbf16>, vector<24x64xbf16>, vector<8x64xf32> -> vector<8x64xf32>
    %83 = arith.truncf %82 : vector<8x64xf32> to vector<8x64xbf16>
    %c0_37 = arith.constant 0 : index
    %c64_38 = arith.constant 64 : index
    %84 = vector.load %arg19[%c0_37, %c64_38] : memref<8x128xbf16, #tpu.memory_space<vmem>>, vector<8x64xbf16>
    tpu.vector_store %arg19[%c0_37, %c64_38], %83 {strides = array<i32>} : memref<8x128xbf16, #tpu.memory_space<vmem>>, vector<8x64xbf16>,
    %c0_39 = arith.constant 0 : index
    %c0_40 = arith.constant 0 : index
    %85 = vector.load %arg19[%c0_39, %c0_40] : memref<8x128xbf16, #tpu.memory_space<vmem>>, vector<8x128xbf16>
    %c0_41 = arith.constant 0 : index
    %c0_42 = arith.constant 0 : index
    %86 = vector.load %arg9[%c0_41, %c0_42] : memref<128x128xbf16, #tpu.memory_space<vmem>>, vector<128x128xbf16>
    %cst_43 = arith.constant dense<0.000000e+00> : vector<8x128xf32>
    %87 = tpu.matmul %85, %86, %cst_43 {dimension_numbers = #tpu.dot_dimension_numbers<[1], [0], [0], [1], [0, 0, 1, 1], [], []>} : vector<8x128xbf16>, vector<128x128xbf16>, vector<8x128xf32> -> vector<8x128xf32>
    %c0_44 = arith.constant 0 : index
    %c0_45 = arith.constant 0 : index
    %88 = vector.load %arg10[%c0_44, %c0_45] : memref<1x128xf32, #tpu.memory_space<vmem>>, vector<1x128xf32>
    %c0_46 = arith.constant 0 : index
    %c0_47 = arith.constant 0 : index
    %89 = vector.load %arg11[%c0_46, %c0_47] : memref<1x128xf32, #tpu.memory_space<vmem>>, vector<1x128xf32>
    %90 = arith.extf %7 : vector<8x128xbf16> to vector<8x128xf32>
    %91 = arith.addf %90, %87 : vector<8x128xf32>
    %cst_48 = arith.constant dense<0.000000e+00> : vector<8xf32>
    %92 = vector.multi_reduction <add>, %91, %cst_48 [1] : vector<8x128xf32> to vector<8xf32>
    %93 = vector.shape_cast %92 : vector<8xf32> to vector<8x1xf32>
    %cst_49 = arith.constant 1.280000e+02 : f32
    %94 = vector.broadcast %cst_49 : f32 to vector<8x1xf32>
    %95 = arith.divf %93, %94 : vector<8x1xf32>
    %96 = vector.broadcast %95 : vector<8x1xf32> to vector<8x128xf32>
    %97 = arith.subf %91, %96 : vector<8x128xf32>
    %98 = arith.mulf %97, %97 : vector<8x128xf32>
    %cst_50 = arith.constant dense<0.000000e+00> : vector<8xf32>
    %99 = vector.multi_reduction <add>, %98, %cst_50 [1] : vector<8x128xf32> to vector<8xf32>
    %100 = vector.shape_cast %99 : vector<8xf32> to vector<8x1xf32>
    %cst_51 = arith.constant 1.280000e+02 : f32
    %101 = vector.broadcast %cst_51 : f32 to vector<8x1xf32>
    %102 = arith.divf %100, %101 : vector<8x1xf32>
    %103 = vector.broadcast %95 : vector<8x1xf32> to vector<8x128xf32>
    %104 = arith.subf %91, %103 : vector<8x128xf32>
    %cst_52 = arith.constant 9.99999974E-6 : f32
    %105 = vector.broadcast %cst_52 : f32 to vector<8x1xf32>
    %106 = arith.addf %102, %105 : vector<8x1xf32>
    %107 = math.rsqrt %106 : vector<8x1xf32>
    %108 = vector.broadcast %107 : vector<8x1xf32> to vector<8x128xf32>
    %109 = arith.mulf %104, %108 : vector<8x128xf32>
    %110 = vector.broadcast %88 : vector<1x128xf32> to vector<8x128xf32>
    %111 = arith.mulf %109, %110 : vector<8x128xf32>
    %112 = vector.broadcast %89 : vector<1x128xf32> to vector<8x128xf32>
    %113 = arith.addf %111, %112 : vector<8x128xf32>
    %114 = arith.truncf %113 : vector<8x128xf32> to vector<8x128xbf16>
    %c0_53 = arith.constant 0 : index
    %c0_54 = arith.constant 0 : index
    %115 = vector.load %arg12[%c0_53, %c0_54] : memref<128x512xbf16, #tpu.memory_space<vmem>>, vector<128x512xbf16>
    %cst_55 = arith.constant dense<0.000000e+00> : vector<8x512xf32>
    %116 = tpu.matmul %114, %115, %cst_55 {dimension_numbers = #tpu.dot_dimension_numbers<[1], [0], [0], [1], [0, 0, 1, 1], [], []>} : vector<8x128xbf16>, vector<128x512xbf16>, vector<8x512xf32> -> vector<8x512xf32>
    %c0_56 = arith.constant 0 : index
    %c0_57 = arith.constant 0 : index
    %117 = vector.load %arg13[%c0_56, %c0_57] : memref<1x512xf32, #tpu.memory_space<vmem>>, vector<1x512xf32>
    %118 = vector.broadcast %117 : vector<1x512xf32> to vector<8x512xf32>
    %119 = arith.addf %116, %118 : vector<8x512xf32>
    %cst_58 = arith.constant 5.000000e-01 : f32
    %120 = vector.broadcast %cst_58 : f32 to vector<8x512xf32>
    %121 = arith.mulf %120, %119 : vector<8x512xf32>
    %cst_59 = arith.constant 0.707106769 : f32
    %122 = vector.broadcast %cst_59 : f32 to vector<8x512xf32>
    %123 = arith.mulf %119, %122 : vector<8x512xf32>
    %124 = math.erf %123 : vector<8x512xf32>
    %cst_60 = arith.constant 1.000000e+00 : f32
    %125 = vector.broadcast %cst_60 : f32 to vector<8x512xf32>
    %126 = arith.addf %125, %124 : vector<8x512xf32>
    %127 = arith.mulf %121, %126 : vector<8x512xf32>
    %128 = arith.truncf %127 : vector<8x512xf32> to vector<8x512xbf16>
    %c0_61 = arith.constant 0 : index
    %c0_62 = arith.constant 0 : index
    %129 = vector.load %arg14[%c0_61, %c0_62] : memref<512x128xbf16, #tpu.memory_space<vmem>>, vector<512x128xbf16>
    %cst_63 = arith.constant dense<0.000000e+00> : vector<8x128xf32>
    %130 = tpu.matmul %128, %129, %cst_63 {dimension_numbers = #tpu.dot_dimension_numbers<[1], [0], [0], [1], [0, 0, 1, 1], [], []>} : vector<8x512xbf16>, vector<512x128xbf16>, vector<8x128xf32> -> vector<8x128xf32>
    %c0_64 = arith.constant 0 : index
    %c0_65 = arith.constant 0 : index
    %131 = vector.load %arg15[%c0_64, %c0_65] : memref<1x128xf32, #tpu.memory_space<vmem>>, vector<1x128xf32>
    %132 = vector.broadcast %131 : vector<1x128xf32> to vector<8x128xf32>
    %133 = arith.addf %130, %132 : vector<8x128xf32>
    %134 = arith.addf %113, %133 : vector<8x128xf32>
    %cst_66 = arith.constant dense<0.000000e+00> : vector<8xf32>
    %135 = vector.multi_reduction <add>, %134, %cst_66 [1] : vector<8x128xf32> to vector<8xf32>
    %136 = vector.shape_cast %135 : vector<8xf32> to vector<8x1xf32>
    %cst_67 = arith.constant 1.280000e+02 : f32
    %137 = vector.broadcast %cst_67 : f32 to vector<8x1xf32>
    %138 = arith.divf %136, %137 : vector<8x1xf32>
    %139 = vector.broadcast %138 : vector<8x1xf32> to vector<8x128xf32>
    %140 = arith.subf %134, %139 : vector<8x128xf32>
    %141 = arith.mulf %140, %140 : vector<8x128xf32>
    %cst_68 = arith.constant dense<0.000000e+00> : vector<8xf32>
    %142 = vector.multi_reduction <add>, %141, %cst_68 [1] : vector<8x128xf32> to vector<8xf32>
    %143 = vector.shape_cast %142 : vector<8xf32> to vector<8x1xf32>
    %cst_69 = arith.constant 1.280000e+02 : f32
    %144 = vector.broadcast %cst_69 : f32 to vector<8x1xf32>
    %145 = arith.divf %143, %144 : vector<8x1xf32>
    %146 = vector.broadcast %138 : vector<8x1xf32> to vector<8x128xf32>
    %147 = arith.subf %134, %146 : vector<8x128xf32>
    %cst_70 = arith.constant 9.99999974E-6 : f32
    %148 = vector.broadcast %cst_70 : f32 to vector<8x1xf32>
    %149 = arith.addf %145, %148 : vector<8x1xf32>
    %150 = math.rsqrt %149 : vector<8x1xf32>
    %151 = vector.broadcast %150 : vector<8x1xf32> to vector<8x128xf32>
    %152 = arith.mulf %147, %151 : vector<8x128xf32>
    %153 = vector.broadcast %88 : vector<1x128xf32> to vector<8x128xf32>
    %154 = arith.mulf %152, %153 : vector<8x128xf32>
    %155 = vector.broadcast %89 : vector<1x128xf32> to vector<8x128xf32>
    %156 = arith.addf %154, %155 : vector<8x128xf32>
    %c0_71 = arith.constant 0 : index
    %c0_72 = arith.constant 0 : index
    %c0_73 = arith.constant 0 : index
    %157 = vector.load %arg16[%c0_71, %c0_72, %c0_73] : memref<1x8x128xf32, #tpu.memory_space<vmem>>, vector<1x8x128xf32>
    %158 = vector.shape_cast %157 : vector<1x8x128xf32> to vector<8x128xf32>
    %159 = vector.shape_cast %156 : vector<8x128xf32> to vector<1x8x128xf32>
    tpu.vector_store %arg16[%c0_71, %c0_72, %c0_73], %159 {strides = array<i32>} : memref<1x8x128xf32, #tpu.memory_space<vmem>>, vector<1x8x128xf32>,
    return
  }
  func.func @transform_0(%arg0: i32, %arg1: i32) -> (i32, i32, i32) {
    %c0_i32 = arith.constant 0 : i32
    %c0_i32_0 = arith.constant 0 : i32
    %c0_i32_1 = arith.constant 0 : i32
    return %arg0, %c0_i32, %c0_i32_0 : i32, i32, i32
  }
  func.func @transform_1(%arg0: i32, %arg1: i32) -> (i32, i32, i32) {
    %c0_i32 = arith.constant 0 : i32
    %c0_i32_0 = arith.constant 0 : i32
    return %arg0, %arg1, %c0_i32 : i32, i32, i32
  }
  func.func @transform_2(%arg0: i32, %arg1: i32) -> (i32, i32, i32) {
    %c0_i32 = arith.constant 0 : i32
    %c0_i32_0 = arith.constant 0 : i32
    %c0_i32_1 = arith.constant 0 : i32
    return %arg0, %c0_i32, %c0_i32_0 : i32, i32, i32
  }
  func.func @transform_3(%arg0: i32, %arg1: i32) -> (i32, i32) {
    %c0_i32 = arith.constant 0 : i32
    %c0_i32_0 = arith.constant 0 : i32
    %c0_i32_1 = arith.constant 0 : i32
    return %c0_i32, %c0_i32_0 : i32, i32
  }
  func.func @transform_4(%arg0: i32, %arg1: i32) -> (i32, i32) {
    %c0_i32 = arith.constant 0 : i32
    %c0_i32_0 = arith.constant 0 : i32
    %c0_i32_1 = arith.constant 0 : i32
    return %c0_i32, %c0_i32_0 : i32, i32
  }
  func.func @transform_5(%arg0: i32, %arg1: i32) -> (i32, i32) {
    %c0_i32 = arith.constant 0 : i32
    %c0_i32_0 = arith.constant 0 : i32
    %c0_i32_1 = arith.constant 0 : i32
    return %c0_i32, %c0_i32_0 : i32, i32
  }
  func.func @transform_6(%arg0: i32, %arg1: i32) -> (i32, i32) {
    %c0_i32 = arith.constant 0 : i32
    %c0_i32_0 = arith.constant 0 : i32
    %c0_i32_1 = arith.constant 0 : i32
    return %c0_i32, %c0_i32_0 : i32, i32
  }
  func.func @transform_7(%arg0: i32, %arg1: i32) -> (i32, i32) {
    %c0_i32 = arith.constant 0 : i32
    %c0_i32_0 = arith.constant 0 : i32
    %c0_i32_1 = arith.constant 0 : i32
    return %c0_i32, %c0_i32_0 : i32, i32
  }
  func.func @transform_8(%arg0: i32, %arg1: i32) -> (i32, i32) {
    %c0_i32 = arith.constant 0 : i32
    %c0_i32_0 = arith.constant 0 : i32
    %c0_i32_1 = arith.constant 0 : i32
    return %c0_i32, %c0_i32_0 : i32, i32
  }
  func.func @transform_9(%arg0: i32, %arg1: i32) -> (i32, i32) {
    %c0_i32 = arith.constant 0 : i32
    %c0_i32_0 = arith.constant 0 : i32
    %c0_i32_1 = arith.constant 0 : i32
    return %c0_i32, %c0_i32_0 : i32, i32
  }
  func.func @transform_10(%arg0: i32, %arg1: i32) -> (i32, i32) {
    %c0_i32 = arith.constant 0 : i32
    %c0_i32_0 = arith.constant 0 : i32
    %c0_i32_1 = arith.constant 0 : i32
    return %c0_i32, %c0_i32_0 : i32, i32
  }
  func.func @transform_11(%arg0: i32, %arg1: i32) -> (i32, i32) {
    %c0_i32 = arith.constant 0 : i32
    %c0_i32_0 = arith.constant 0 : i32
    %c0_i32_1 = arith.constant 0 : i32
    return %c0_i32, %c0_i32_0 : i32, i32
  }
  func.func @transform_12(%arg0: i32, %arg1: i32) -> (i32, i32) {
    %c0_i32 = arith.constant 0 : i32
    %c0_i32_0 = arith.constant 0 : i32
    %c0_i32_1 = arith.constant 0 : i32
    return %c0_i32, %c0_i32_0 : i32, i32
  }
  func.func @transform_13(%arg0: i32, %arg1: i32) -> (i32, i32) {
    %c0_i32 = arith.constant 0 : i32
    %c0_i32_0 = arith.constant 0 : i32
    %c0_i32_1 = arith.constant 0 : i32
    return %c0_i32, %c0_i32_0 : i32, i32
  }
  func.func @transform_14(%arg0: i32, %arg1: i32) -> (i32, i32, i32) {
    %c0_i32 = arith.constant 0 : i32
    %c0_i32_0 = arith.constant 0 : i32
    return %arg0, %arg1, %c0_i32 : i32, i32, i32
  }
}

</mosaic_0001>

<llo_original>
// kernel: tpu_custom_call.1
$region0: #{tpu_custom_call.1}
  #allocation0 [shape = 'u32[]', space=smem, size = 0x4, offset = 0x4, fixed_abs, tag = 'smem constant byte address 0x4 - core index']
  #allocation1 [shape = 'u32[144,128]{1,0:T(1,128)}', space=vmem, size = 0x12000, scoped, tag = 'internal scratch']
  #allocation2 [shape = 'bf16[128,24]{1,0:T(16,128)(2,1)}', space=vmem, size = 0x8000, scoped, tag = 'scratch operand']
  #allocation3 [shape = 'bf16[24,128]{1,0:T(8,128)(2,1)}', space=vmem, size = 0x1800, scoped, tag = 'scratch operand']
  #allocation4 [shape = 'bf16[8,128]{1,0:T(8,128)(2,1)}', space=vmem, size = 0x800, scoped, tag = 'scratch operand']
  %s0 = inlined_call_operand.vmem [shape: f32[2,1,24], index: 0, kind: input, shape index: {}]
  %s1 = inlined_call_operand.vmem [shape: f32[2,24,1], index: 1, kind: input, shape index: {}]
  %s2 = inlined_call_operand.hbm [shape: bf16[2,24,128], index: 2, kind: input, shape index: {}]
  %s3 = inlined_call_operand.hbm [shape: bf16[128,128], index: 3, kind: input, shape index: {}]
  %s4 = inlined_call_operand.vmem [shape: f32[1,128], index: 4, kind: input, shape index: {}]
  %s5 = inlined_call_operand.hbm [shape: bf16[128,256], index: 5, kind: input, shape index: {}]
  %s6 = inlined_call_operand.vmem [shape: f32[1,256], index: 6, kind: input, shape index: {}]
  %s7 = inlined_call_operand.vmem [shape: bf16[128,128], index: 7, kind: input, shape index: {}]
  %s8 = inlined_call_operand.vmem [shape: f32[1,128], index: 8, kind: input, shape index: {}]
  %s9 = inlined_call_operand.vmem [shape: f32[1,128], index: 9, kind: input, shape index: {}]
  %s10 = inlined_call_operand.hbm [shape: bf16[128,512], index: 10, kind: input, shape index: {}]
  %s11 = inlined_call_operand.vmem [shape: f32[1,512], index: 11, kind: input, shape index: {}]
  %s12 = inlined_call_operand.hbm [shape: bf16[512,128], index: 12, kind: input, shape index: {}]
  %s13 = inlined_call_operand.vmem [shape: f32[1,128], index: 13, kind: input, shape index: {}]
  %s14 = inlined_call_operand.hbm [shape: f32[2,24,128], index: 14, kind: output, shape index: {}]
  %s15 = sld [smem:[#allocation0]]
  $region113: #{tpu_custom_call.1} parent=0
    _
  %s17 = ssub.s32 1, %s15
  %s18 = scalar_select 0, %s17, %s15
  $region1: #{tpu_custom_call.1} parent=0
    #allocation5 [shape = 'u8[12288]{0}', space=vmem, size = 0x3000, scoped, tag = 'input window, operand 2']
    #allocation6 [shape = 's32[2]{0}', space=sflag, size = 0x8, scoped, tag = 'scoped memory for tpu_custom_call.1']
    #allocation7 [shape = 's32[2]{0}', space=sflag, size = 0x8, scoped, tag = 'scoped memory for tpu_custom_call.1']
    #allocation8 [shape = 'u8[32768]{0}', space=vmem, size = 0x8000, scoped, tag = 'input window, operand 3, single buffered']
    #allocation9 [shape = 's32[1]{0}', space=sflag, size = 0x4, scoped, tag = 'scoped memory for tpu_custom_call.1']
    #allocation10 [shape = 'u8[65536]{0}', space=vmem, size = 0x10000, scoped, tag = 'input window, operand 5, single buffered']
    #allocation11 [shape = 'u8[131072]{0}', space=vmem, size = 0x20000, scoped, tag = 'input window, operand 10, single buffered']
    #allocation12 [shape = 's32[1]{0}', space=sflag, size = 0x4, scoped, tag = 'scoped memory for tpu_custom_call.1']
    #allocation13 [shape = 'u8[131072]{0}', space=vmem, size = 0x20000, scoped, tag = 'input window, operand 12, single buffered']
    #allocation14 [shape = 'u8[8192]{0}', space=vmem, size = 0x2000, scoped, tag = 'output window, operand 0']
    %19 = vsyncpa [#allocation6], 0
    %s20 = scalar_lea.sflag [#allocation6], 1
    %21 = vsyncpa %s20, 0
    %22 = vsyncpa [#allocation9], 0
    %23 = vsyncpa [#allocation12], 0
    %24 = vsyncpa [#allocation7], 0
    %s25 = scalar_lea.sflag [#allocation7], 1
    %26 = vsyncpa %s25, 0
    loop: start=0, step=1, limit=8
    $region2: #{tpu_custom_call.1} parent=1 // loop_pre_header
      _
    $region3: #{tpu_custom_call.1} parent=1 // loop_header
      %s28 = sphi 0, %s32
      %p29 = scmp.ge.s32.totalorder %s28, 8
      %s35 = sphi 0, %s47
      %s36 = sphi 0, %s43
      %s37 = sphi 0, %s35
      %s38 = sphi 0, %s36
      %s39 = sphi 0, %s37
      %s40 = sphi 0, %s38
      %s50 = sphi 0, %s52
      %s53 = sphi 0, %s50
      %s54 = sphi 0, %s53
      %s70 = sphi 0, %s54
      %s78 = sphi 0, %s80
      %s81 = sphi 0, %s78
      %s82 = sphi 0, %s81
      %s98 = sphi 0, %s82
      %s104 = sphi 0, %s106
      %s107 = sphi 0, %s104
      %s108 = sphi 0, %s107
      %s124 = sphi 0, %s108
      %s128 = sphi 0, %s128
      %s130 = sphi 0, %s128
      %s131 = sphi 0, %s130
      %s145 = sphi 0, %s131
      %s149 = sphi 0, %s149
      %s151 = sphi 0, %s149
      %s152 = sphi 0, %s151
      %s166 = sphi 0, %s152
      %s170 = sphi 0, %s170
      %s172 = sphi 0, %s170
      %s173 = sphi 0, %s172
      %s187 = sphi 0, %s173
      %s191 = sphi 0, %s191
      %s193 = sphi 0, %s191
      %s194 = sphi 0, %s193
      %s208 = sphi 0, %s194
      %s212 = sphi 0, %s212
      %s214 = sphi 0, %s212
      %s215 = sphi 0, %s214
      %s229 = sphi 0, %s215
      %s233 = sphi 0, %s233
      %s235 = sphi 0, %s233
      %s236 = sphi 0, %s235
      %s250 = sphi 0, %s236
      %s254 = sphi 0, %s254
      %s256 = sphi 0, %s254
      %s257 = sphi 0, %s256
      %s271 = sphi 0, %s257
      %s275 = sphi 0, %s275
      %s277 = sphi 0, %s275
      %s278 = sphi 0, %s277
      %s292 = sphi 0, %s278
      %s296 = sphi 0, %s296
      %s298 = sphi 0, %s296
      %s299 = sphi 0, %s298
      %s313 = sphi 0, %s299
      %s317 = sphi 0, %s317
      %s319 = sphi 0, %s317
      %s320 = sphi 0, %s319
      %s334 = sphi 0, %s320
      %s338 = sphi 0, %s338
      %s340 = sphi 0, %s338
      %s341 = sphi 0, %s340
      %s355 = sphi 0, %s341
      %s363 = sphi 0, %s365
      %s366 = sphi 0, %s363
      %s367 = sphi 0, %s366
      %s383 = sphi 0, %s367
    $region4: #{tpu_custom_call.1} parent=1 // loop_header_branch
      %31 = sbr.rel (%p29) target = $region8
    $region5: #{tpu_custom_call.1} parent=1 // loop_body
      %s33 = ssub.s32 %s28, 1
      %s34 = ssub.s32 %s28, 2
      %s41 = sadd.s32 1, %s36
      %p42 = scmp.ge.s32.totalorder %s41, 3
      %s43 = scalar_select %p42, 0, %s41
      %s44 = sadd.s32 1, %s35
      %s45 = scalar_select %p42, %s44, %s35
      %p46 = scmp.ge.s32.totalorder %s45, 2
      %s47 = scalar_select %p46, 0, %s45
      %s48 = ssub.s32 %s35, %s47
      %p49 = scmp.eq.s32.totalorder %s48, 0
      %s51 = sadd.s32 %s50, 1
      %s52 = scalar_select %p49, %s50, %s51
      %p55 = pneg %p49
      %p56 = scmp.eq.s32.totalorder %s28, 5
      %p57 = por %p55, %p56
      %p58 = scmp.ne.s32.totalorder %s50, %s53
      %p59 = scmp.eq.s32.totalorder %s28, 0
      %p60 = por %p58, %p59
      %p61 = scmp.ne.s32.totalorder %s50, %s53
      %p62 = scmp.eq.s32.totalorder %s33, 5
      %p63 = por %p61, %p62
      %p64 = scmp.ne.s32.totalorder %s53, %s54
      %p65 = scmp.eq.s32.totalorder %s33, 0
      %p66 = por %p64, %p65
      %p67 = scmp.ne.s32.totalorder %s53, %s54
      %p68 = scmp.eq.s32.totalorder %s34, 5
      %p69 = por %p67, %p68
      %p71 = scmp.ne.s32.totalorder %s54, %s70
      %p72 = scmp.eq.s32.totalorder %s34, 0
      %p73 = por %p71, %p72
      %s74 = ssub.s32 %s35, %s47
      %s75 = ssub.s32 %s36, %s43
      %s76 = sor.u32 %s74, %s75
      %p77 = scmp.eq.s32.totalorder %s76, 0
      %s79 = sadd.s32 %s78, 1
      %s80 = scalar_select %p77, %s78, %s79
      %p83 = pneg %p77
      %p84 = scmp.eq.s32.totalorder %s28, 5
      %p85 = por %p83, %p84
      %p86 = scmp.ne.s32.totalorder %s78, %s81
      %p87 = scmp.eq.s32.totalorder %s28, 0
      %p88 = por %p86, %p87
      %p89 = scmp.ne.s32.totalorder %s78, %s81
      %p90 = scmp.eq.s32.totalorder %s33, 5
      %p91 = por %p89, %p90
      %p92 = scmp.ne.s32.totalorder %s81, %s82
      %p93 = scmp.eq.s32.totalorder %s33, 0
      %p94 = por %p92, %p93
      %p95 = scmp.ne.s32.totalorder %s81, %s82
      %p96 = scmp.eq.s32.totalorder %s34, 5
      %p97 = por %p95, %p96
      %p99 = scmp.ne.s32.totalorder %s82, %s98
      %p100 = scmp.eq.s32.totalorder %s34, 0
      %p101 = por %p99, %p100
      %s102 = ssub.s32 %s35, %s47
      %p103 = scmp.eq.s32.totalorder %s102, 0
      %s105 = sadd.s32 %s104, 1
      %s106 = scalar_select %p103, %s104, %s105
      %p109 = pneg %p103
      %p110 = scmp.eq.s32.totalorder %s28, 5
      %p111 = por %p109, %p110
      %p112 = scmp.ne.s32.totalorder %s104, %s107
      %p113 = scmp.eq.s32.totalorder %s28, 0
      %p114 = por %p112, %p113
      %p115 = scmp.ne.s32.totalorder %s104, %s107
      %p116 = scmp.eq.s32.totalorder %s33, 5
      %p117 = por %p115, %p116
      %p118 = scmp.ne.s32.totalorder %s107, %s108
      %p119 = scmp.eq.s32.totalorder %s33, 0
      %p120 = por %p118, %p119
      %p121 = scmp.ne.s32.totalorder %s107, %s108
      %p122 = scmp.eq.s32.totalorder %s34, 5
      %p123 = por %p121, %p122
      %p125 = scmp.ne.s32.totalorder %s108, %s124
      %p126 = scmp.eq.s32.totalorder %s34, 0
      %p127 = por %p125, %p126
      %s129 = sadd.s32 %s128, 1
      %p132 = scmp.eq.s32.totalorder %s28, 5
      %p133 = scmp.ne.s32.totalorder %s128, %s130
      %p134 = scmp.eq.s32.totalorder %s28, 0
      %p135 = por %p133, %p134
      %p136 = scmp.ne.s32.totalorder %s128, %s130
      %p137 = scmp.eq.s32.totalorder %s33, 5
      %p138 = por %p136, %p137
      %p139 = scmp.ne.s32.totalorder %s130, %s131
      %p140 = scmp.eq.s32.totalorder %s33, 0
      %p141 = por %p139, %p140
      %p142 = scmp.ne.s32.totalorder %s130, %s131
      %p143 = scmp.eq.s32.totalorder %s34, 5
      %p144 = por %p142, %p143
      %p146 = scmp.ne.s32.totalorder %s131, %s145
      %p147 = scmp.eq.s32.totalorder %s34, 0
      %p148 = por %p146, %p147
      %s150 = sadd.s32 %s149, 1
      %p153 = scmp.eq.s32.totalorder %s28, 5
      %p154 = scmp.ne.s32.totalorder %s149, %s151
      %p155 = scmp.eq.s32.totalorder %s28, 0
      %p156 = por %p154, %p155
      %p157 = scmp.ne.s32.totalorder %s149, %s151
      %p158 = scmp.eq.s32.totalorder %s33, 5
      %p159 = por %p157, %p158
      %p160 = scmp.ne.s32.totalorder %s151, %s152
      %p161 = scmp.eq.s32.totalorder %s33, 0
      %p162 = por %p160, %p161
      %p163 = scmp.ne.s32.totalorder %s151, %s152
      %p164 = scmp.eq.s32.totalorder %s34, 5
      %p165 = por %p163, %p164
      %p167 = scmp.ne.s32.totalorder %s152, %s166
      %p168 = scmp.eq.s32.totalorder %s34, 0
      %p169 = por %p167, %p168
      %s171 = sadd.s32 %s170, 1
      %p174 = scmp.eq.s32.totalorder %s28, 5
      %p175 = scmp.ne.s32.totalorder %s170, %s172
      %p176 = scmp.eq.s32.totalorder %s28, 0
      %p177 = por %p175, %p176
      %p178 = scmp.ne.s32.totalorder %s170, %s172
      %p179 = scmp.eq.s32.totalorder %s33, 5
      %p180 = por %p178, %p179
      %p181 = scmp.ne.s32.totalorder %s172, %s173
      %p182 = scmp.eq.s32.totalorder %s33, 0
      %p183 = por %p181, %p182
      %p184 = scmp.ne.s32.totalorder %s172, %s173
      %p185 = scmp.eq.s32.totalorder %s34, 5
      %p186 = por %p184, %p185
      %p188 = scmp.ne.s32.totalorder %s173, %s187
      %p189 = scmp.eq.s32.totalorder %s34, 0
      %p190 = por %p188, %p189
      %s192 = sadd.s32 %s191, 1
      %p195 = scmp.eq.s32.totalorder %s28, 5
      %p196 = scmp.ne.s32.totalorder %s191, %s193
      %p197 = scmp.eq.s32.totalorder %s28, 0
      %p198 = por %p196, %p197
      %p199 = scmp.ne.s32.totalorder %s191, %s193
      %p200 = scmp.eq.s32.totalorder %s33, 5
      %p201 = por %p199, %p200
      %p202 = scmp.ne.s32.totalorder %s193, %s194
      %p203 = scmp.eq.s32.totalorder %s33, 0
      %p204 = por %p202, %p203
      %p205 = scmp.ne.s32.totalorder %s193, %s194
      %p206 = scmp.eq.s32.totalorder %s34, 5
      %p207 = por %p205, %p206
      %p209 = scmp.ne.s32.totalorder %s194, %s208
      %p210 = scmp.eq.s32.totalorder %s34, 0
      %p211 = por %p209, %p210
      %s213 = sadd.s32 %s212, 1
      %p216 = scmp.eq.s32.totalorder %s28, 5
      %p217 = scmp.ne.s32.totalorder %s212, %s214
      %p218 = scmp.eq.s32.totalorder %s28, 0
      %p219 = por %p217, %p218
      %p220 = scmp.ne.s32.totalorder %s212, %s214
      %p221 = scmp.eq.s32.totalorder %s33, 5
      %p222 = por %p220, %p221
      %p223 = scmp.ne.s32.totalorder %s214, %s215
      %p224 = scmp.eq.s32.totalorder %s33, 0
      %p225 = por %p223, %p224
      %p226 = scmp.ne.s32.totalorder %s214, %s215
      %p227 = scmp.eq.s32.totalorder %s34, 5
      %p228 = por %p226, %p227
      %p230 = scmp.ne.s32.totalorder %s215, %s229
      %p231 = scmp.eq.s32.totalorder %s34, 0
      %p232 = por %p230, %p231
      %s234 = sadd.s32 %s233, 1
      %p237 = scmp.eq.s32.totalorder %s28, 5
      %p238 = scmp.ne.s32.totalorder %s233, %s235
      %p239 = scmp.eq.s32.totalorder %s28, 0
      %p240 = por %p238, %p239
      %p241 = scmp.ne.s32.totalorder %s233, %s235
      %p242 = scmp.eq.s32.totalorder %s33, 5
      %p243 = por %p241, %p242
      %p244 = scmp.ne.s32.totalorder %s235, %s236
      %p245 = scmp.eq.s32.totalorder %s33, 0
      %p246 = por %p244, %p245
      %p247 = scmp.ne.s32.totalorder %s235, %s236
      %p248 = scmp.eq.s32.totalorder %s34, 5
      %p249 = por %p247, %p248
      %p251 = scmp.ne.s32.totalorder %s236, %s250
      %p252 = scmp.eq.s32.totalorder %s34, 0
      %p253 = por %p251, %p252
      %s255 = sadd.s32 %s254, 1
      %p258 = scmp.eq.s32.totalorder %s28, 5
      %p259 = scmp.ne.s32.totalorder %s254, %s256
      %p260 = scmp.eq.s32.totalorder %s28, 0
      %p261 = por %p259, %p260
      %p262 = scmp.ne.s32.totalorder %s254, %s256
      %p263 = scmp.eq.s32.totalorder %s33, 5
      %p264 = por %p262, %p263
      %p265 = scmp.ne.s32.totalorder %s256, %s257
      %p266 = scmp.eq.s32.totalorder %s33, 0
      %p267 = por %p265, %p266
      %p268 = scmp.ne.s32.totalorder %s256, %s257
      %p269 = scmp.eq.s32.totalorder %s34, 5
      %p270 = por %p268, %p269
      %p272 = scmp.ne.s32.totalorder %s257, %s271
      %p273 = scmp.eq.s32.totalorder %s34, 0
      %p274 = por %p272, %p273
      %s276 = sadd.s32 %s275, 1
      %p279 = scmp.eq.s32.totalorder %s28, 5
      %p280 = scmp.ne.s32.totalorder %s275, %s277
      %p281 = scmp.eq.s32.totalorder %s28, 0
      %p282 = por %p280, %p281
      %p283 = scmp.ne.s32.totalorder %s275, %s277
      %p284 = scmp.eq.s32.totalorder %s33, 5
      %p285 = por %p283, %p284
      %p286 = scmp.ne.s32.totalorder %s277, %s278
      %p287 = scmp.eq.s32.totalorder %s33, 0
      %p288 = por %p286, %p287
      %p289 = scmp.ne.s32.totalorder %s277, %s278
      %p290 = scmp.eq.s32.totalorder %s34, 5
      %p291 = por %p289, %p290
      %p293 = scmp.ne.s32.totalorder %s278, %s292
      %p294 = scmp.eq.s32.totalorder %s34, 0
      %p295 = por %p293, %p294
      %s297 = sadd.s32 %s296, 1
      %p300 = scmp.eq.s32.totalorder %s28, 5
      %p301 = scmp.ne.s32.totalorder %s296, %s298
      %p302 = scmp.eq.s32.totalorder %s28, 0
      %p303 = por %p301, %p302
      %p304 = scmp.ne.s32.totalorder %s296, %s298
      %p305 = scmp.eq.s32.totalorder %s33, 5
      %p306 = por %p304, %p305
      %p307 = scmp.ne.s32.totalorder %s298, %s299
      %p308 = scmp.eq.s32.totalorder %s33, 0
      %p309 = por %p307, %p308
      %p310 = scmp.ne.s32.totalorder %s298, %s299
      %p311 = scmp.eq.s32.totalorder %s34, 5
      %p312 = por %p310, %p311
      %p314 = scmp.ne.s32.totalorder %s299, %s313
      %p315 = scmp.eq.s32.totalorder %s34, 0
      %p316 = por %p314, %p315
      %s318 = sadd.s32 %s317, 1
      %p321 = scmp.eq.s32.totalorder %s28, 5
      %p322 = scmp.ne.s32.totalorder %s317, %s319
      %p323 = scmp.eq.s32.totalorder %s28, 0
      %p324 = por %p322, %p323
      %p325 = scmp.ne.s32.totalorder %s317, %s319
      %p326 = scmp.eq.s32.totalorder %s33, 5
      %p327 = por %p325, %p326
      %p328 = scmp.ne.s32.totalorder %s319, %s320
      %p329 = scmp.eq.s32.totalorder %s33, 0
      %p330 = por %p328, %p329
      %p331 = scmp.ne.s32.totalorder %s319, %s320
      %p332 = scmp.eq.s32.totalorder %s34, 5
      %p333 = por %p331, %p332
      %p335 = scmp.ne.s32.totalorder %s320, %s334
      %p336 = scmp.eq.s32.totalorder %s34, 0
      %p337 = por %p335, %p336
      %s339 = sadd.s32 %s338, 1
      %p342 = scmp.eq.s32.totalorder %s28, 5
      %p343 = scmp.ne.s32.totalorder %s338, %s340
      %p344 = scmp.eq.s32.totalorder %s28, 0
      %p345 = por %p343, %p344
      %p346 = scmp.ne.s32.totalorder %s338, %s340
      %p347 = scmp.eq.s32.totalorder %s33, 5
      %p348 = por %p346, %p347
      %p349 = scmp.ne.s32.totalorder %s340, %s341
      %p350 = scmp.eq.s32.totalorder %s33, 0
      %p351 = por %p349, %p350
      %p352 = scmp.ne.s32.totalorder %s340, %s341
      %p353 = scmp.eq.s32.totalorder %s34, 5
      %p354 = por %p352, %p353
      %p356 = scmp.ne.s32.totalorder %s341, %s355
      %p357 = scmp.eq.s32.totalorder %s34, 0
      %p358 = por %p356, %p357
      %s359 = ssub.s32 %s35, %s47
      %s360 = ssub.s32 %s36, %s43
      %s361 = sor.u32 %s359, %s360
      %p362 = scmp.eq.s32.totalorder %s361, 0
      %s364 = sadd.s32 %s363, 1
      %s365 = scalar_select %p362, %s363, %s364
      %p368 = pneg %p362
      %p369 = scmp.eq.s32.totalorder %s28, 5
      %p370 = por %p368, %p369
      %p371 = scmp.ne.s32.totalorder %s363, %s366
      %p372 = scmp.eq.s32.totalorder %s28, 0
      %p373 = por %p371, %p372
      %p374 = scmp.ne.s32.totalorder %s363, %s366
      %p375 = scmp.eq.s32.totalorder %s33, 5
      %p376 = por %p374, %p375
      %p377 = scmp.ne.s32.totalorder %s366, %s367
      %p378 = scmp.eq.s32.totalorder %s33, 0
      %p379 = por %p377, %p378
      %p380 = scmp.ne.s32.totalorder %s366, %s367
      %p381 = scmp.eq.s32.totalorder %s34, 5
      %p382 = por %p380, %p381
      %p384 = scmp.ne.s32.totalorder %s367, %s383
      %p385 = scmp.eq.s32.totalorder %s34, 0
      %p386 = por %p384, %p385
      %p387 = scmp.le.s32.totalorder 1, %s28
      %p388 = scmp.lt.s32.totalorder %s28, 7
      %p389 = pnand %p387, %p388
      %p390 = pneg %p389
      // Predicated region
      $region9: #{tpu_custom_call.1} parent=5 // pred_check
        _
      $region10: #{tpu_custom_call.1} parent=5 // pred_check_branch
        %392 = sbr.rel (%p389) target = $region12
      $region11: #{tpu_custom_call.1} parent=5 // pred_region
        %s393 = ssub.s32 %s28, 1
        // Predicated region
        $region13: #{tpu_custom_call.1} parent=11 // pred_check
          %p394 = pneg %p141
        $region14: #{tpu_custom_call.1} parent=11 // pred_check_branch
          %396 = sbr.rel (%p394) target = $region16
        $region15: #{tpu_custom_call.1} parent=11 // pred_region
          %s398 = ssub.s32 1024, 1024
          %399 = vsyncadd [#allocation9], %s398
          %s400 = sshll.u32 [#allocation8], 4
          %s401 = int_to_ptr.vmem [resolvable:$true] %s400
          %406 = dma.hbm_to_vmem [thread:$0]  %s3, 1024, %s401, [#allocation9], 64, 64, 4
        $region16: #{tpu_custom_call.1} parent=11 // pred_fallthru
          _
        // Predicated region
        $region17: #{tpu_custom_call.1} parent=11 // pred_check
          %p407 = pneg %p162
        $region18: #{tpu_custom_call.1} parent=11 // pred_check_branch
          %409 = sbr.rel (%p407) target = $region20
        $region19: #{tpu_custom_call.1} parent=11 // pred_region
          _
        $region20: #{tpu_custom_call.1} parent=11 // pred_fallthru
          _
        // Predicated region
        $region21: #{tpu_custom_call.1} parent=11 // pred_check
          %p410 = pneg %p183
        $region22: #{tpu_custom_call.1} parent=11 // pred_check_branch
          %412 = sbr.rel (%p410) target = $region24
        $region23: #{tpu_custom_call.1} parent=11 // pred_region
          %s414 = ssub.s32 2048, 2048
          %415 = vsyncadd [#allocation9], %s414
          %s416 = sshll.u32 [#allocation10], 4
          %s417 = int_to_ptr.vmem [resolvable:$true] %s416
          %422 = dma.hbm_to_vmem [thread:$0]  %s5, 2048, %s417, [#allocation9], 128, 128, 8
        $region24: #{tpu_custom_call.1} parent=11 // pred_fallthru
          _
        // Predicated region
        $region25: #{tpu_custom_call.1} parent=11 // pred_check
          %p423 = pneg %p204
        $region26: #{tpu_custom_call.1} parent=11 // pred_check_branch
          %425 = sbr.rel (%p423) target = $region28
        $region27: #{tpu_custom_call.1} parent=11 // pred_region
          _
        $region28: #{tpu_custom_call.1} parent=11 // pred_fallthru
          _
        // Predicated region
        $region29: #{tpu_custom_call.1} parent=11 // pred_check
          %p426 = pneg %p225
        $region30: #{tpu_custom_call.1} parent=11 // pred_check_branch
          %428 = sbr.rel (%p426) target = $region32
        $region31: #{tpu_custom_call.1} parent=11 // pred_region
          _
        $region32: #{tpu_custom_call.1} parent=11 // pred_fallthru
          _
        // Predicated region
        $region33: #{tpu_custom_call.1} parent=11 // pred_check
          %p429 = pneg %p246
        $region34: #{tpu_custom_call.1} parent=11 // pred_check_branch
          %431 = sbr.rel (%p429) target = $region36
        $region35: #{tpu_custom_call.1} parent=11 // pred_region
          _
        $region36: #{tpu_custom_call.1} parent=11 // pred_fallthru
          _
        // Predicated region
        $region37: #{tpu_custom_call.1} parent=11 // pred_check
          %p432 = pneg %p267
        $region38: #{tpu_custom_call.1} parent=11 // pred_check_branch
          %434 = sbr.rel (%p432) target = $region40
        $region39: #{tpu_custom_call.1} parent=11 // pred_region
          _
        $region40: #{tpu_custom_call.1} parent=11 // pred_fallthru
          _
        // Predicated region
        $region41: #{tpu_custom_call.1} parent=11 // pred_check
          %p435 = pneg %p288
        $region42: #{tpu_custom_call.1} parent=11 // pred_check_branch
          %437 = sbr.rel (%p435) target = $region44
        $region43: #{tpu_custom_call.1} parent=11 // pred_region
          %s439 = ssub.s32 4096, 4096
          %440 = vsyncadd [#allocation12], %s439
          %s441 = sshll.u32 [#allocation11], 4
          %s442 = int_to_ptr.vmem [resolvable:$true] %s441
          %447 = dma.hbm_to_vmem [thread:$0]  %s10, 4096, %s442, [#allocation12], 256, 256, 16
        $region44: #{tpu_custom_call.1} parent=11 // pred_fallthru
          _
        // Predicated region
        $region45: #{tpu_custom_call.1} parent=11 // pred_check
          %p448 = pneg %p309
        $region46: #{tpu_custom_call.1} parent=11 // pred_check_branch
          %450 = sbr.rel (%p448) target = $region48
        $region47: #{tpu_custom_call.1} parent=11 // pred_region
          _
        $region48: #{tpu_custom_call.1} parent=11 // pred_fallthru
          _
        // Predicated region
        $region49: #{tpu_custom_call.1} parent=11 // pred_check
          %p451 = pneg %p330
        $region50: #{tpu_custom_call.1} parent=11 // pred_check_branch
          %453 = sbr.rel (%p451) target = $region52
        $region51: #{tpu_custom_call.1} parent=11 // pred_region
          %s455 = ssub.s32 4096, 4096
          %456 = vsyncadd [#allocation12], %s455
          %s457 = sshll.u32 [#allocation13], 4
          %s458 = int_to_ptr.vmem [resolvable:$true] %s457
          %463 = dma.hbm_to_vmem [thread:$0]  %s12, 4096, %s458, [#allocation12], 64, 64, 4
        $region52: #{tpu_custom_call.1} parent=11 // pred_fallthru
          _
        // Predicated region
        $region53: #{tpu_custom_call.1} parent=11 // pred_check
          %p464 = pneg %p351
        $region54: #{tpu_custom_call.1} parent=11 // pred_check_branch
          %466 = sbr.rel (%p464) target = $region56
        $region55: #{tpu_custom_call.1} parent=11 // pred_region
          _
        $region56: #{tpu_custom_call.1} parent=11 // pred_fallthru
          _
      $region12: #{tpu_custom_call.1} parent=5 // pred_fallthru
        _
      %p467 = scmp.lt.s32.totalorder %s28, 6
      // Predicated region
      $region57: #{tpu_custom_call.1} parent=5 // pred_check
        %p468 = pneg %p467
      $region58: #{tpu_custom_call.1} parent=5 // pred_check_branch
        %470 = sbr.rel (%p468) target = $region60
      $region59: #{tpu_custom_call.1} parent=5 // pred_region
        // Predicated region
        $region61: #{tpu_custom_call.1} parent=59 // pred_check
          %p471 = pneg %p60
        $region62: #{tpu_custom_call.1} parent=59 // pred_check_branch
          %473 = sbr.rel (%p471) target = $region64
        $region63: #{tpu_custom_call.1} parent=59 // pred_region
          %p474 = scmp.lt.s32.totalorder %s35, 1
          %s475 = scalar_select %p474, %s35, 1
          %s476 = scalar_lea.vmem %s0, %s475
        $region64: #{tpu_custom_call.1} parent=59 // pred_fallthru
          _
        // Predicated region
        $region65: #{tpu_custom_call.1} parent=59 // pred_check
          %p477 = pneg %p88
        $region66: #{tpu_custom_call.1} parent=59 // pred_check_branch
          %479 = sbr.rel (%p477) target = $region68
        $region67: #{tpu_custom_call.1} parent=59 // pred_region
          %p480 = scmp.lt.s32.totalorder %s35, 1
          %s481 = scalar_select %p480, %s35, 1
          %p482 = scmp.lt.s32.totalorder %s36, 2
          %s483 = scalar_select %p482, %s36, 2
          %s484 = smul.addr %s481, 3
          %s485 = sadd.s32 %s483, %s484
          %s486 = smul.addr %s485, 8
          %s487 = scalar_lea.vmem %s1, %s486
        $region68: #{tpu_custom_call.1} parent=59 // pred_fallthru
          _
        // Predicated region
        $region69: #{tpu_custom_call.1} parent=59 // pred_check
          %p488 = pneg %p114
        $region70: #{tpu_custom_call.1} parent=59 // pred_check_branch
          %490 = sbr.rel (%p488) target = $region72
        $region71: #{tpu_custom_call.1} parent=59 // pred_region
          %s491 = sand.u32 %s104, 1
          %s492 = scalar_lea.sflag [#allocation6], %s491
          %s493 = sand.u32 %s104, 1
          %s494 = smul.addr %s493, 12
          %s495 = scalar_lea.vmem [#allocation5], %s494
          %s497 = ssub.s32 192, 192
          %498 = vsyncadd %s492, %s497
          %s499 = smul.addr %s35, 3
          %s500 = smul.addr %s499, 64
          %s501 = scalar_lea.hbm %s2, %s500
          %s502 = sshll.u32 %s495, 4
          %s503 = int_to_ptr.vmem [resolvable:$true] %s502
          %508 = dma.hbm_to_vmem [thread:$0]  %s501, 192, %s503, %s492, 64, 64, 4
        $region72: #{tpu_custom_call.1} parent=59 // pred_fallthru
          _
      $region60: #{tpu_custom_call.1} parent=5 // pred_fallthru
        _
      %p509 = scmp.le.s32.totalorder 1, %s28
      %p510 = scmp.lt.s32.totalorder %s28, 7
      %p511 = pnand %p509, %p510
      %p512 = pneg %p511
      // Predicated region
      $region73: #{tpu_custom_call.1} parent=5 // pred_check
        _
      $region74: #{tpu_custom_call.1} parent=5 // pred_check_branch
        %514 = sbr.rel (%p511) target = $region76
      $region75: #{tpu_custom_call.1} parent=5 // pred_region
        %s515 = ssub.s32 %s28, 1
        %s516 = sand.u32 %s107, 1
        %s517 = scalar_lea.sflag [#allocation6], %s516
        %s518 = sand.u32 %s107, 1
        %s519 = smul.addr %s518, 12
        %s520 = scalar_lea.vmem [#allocation5], %s519
        // Predicated region
        $region77: #{tpu_custom_call.1} parent=75 // pred_check
          %p521 = pneg %p120
        $region78: #{tpu_custom_call.1} parent=75 // pred_check_branch
          %523 = sbr.rel (%p521) target = $region80
        $region79: #{tpu_custom_call.1} parent=75 // pred_region
          %524 = dma.done %s517, 192
        $region80: #{tpu_custom_call.1} parent=75 // pred_fallthru
          _
        // Predicated region
        $region81: #{tpu_custom_call.1} parent=75 // pred_check
          %p525 = pneg %p141
        $region82: #{tpu_custom_call.1} parent=75 // pred_check_branch
          %527 = sbr.rel (%p525) target = $region84
        $region83: #{tpu_custom_call.1} parent=75 // pred_region
          %528 = dma.done [#allocation9], 1024
        $region84: #{tpu_custom_call.1} parent=75 // pred_fallthru
          _
        // Predicated region
        $region85: #{tpu_custom_call.1} parent=75 // pred_check
          %p529 = pneg %p183
        $region86: #{tpu_custom_call.1} parent=75 // pred_check_branch
          %531 = sbr.rel (%p529) target = $region88
        $region87: #{tpu_custom_call.1} parent=75 // pred_region
          %532 = dma.done [#allocation9], 2048
        $region88: #{tpu_custom_call.1} parent=75 // pred_fallthru
          _
        // Predicated region
        $region89: #{tpu_custom_call.1} parent=75 // pred_check
          %p533 = pneg %p288
        $region90: #{tpu_custom_call.1} parent=75 // pred_check_branch
          %535 = sbr.rel (%p533) target = $region92
        $region91: #{tpu_custom_call.1} parent=75 // pred_region
          %536 = dma.done [#allocation12], 4096
        $region92: #{tpu_custom_call.1} parent=75 // pred_fallthru
          _
        // Predicated region
        $region93: #{tpu_custom_call.1} parent=75 // pred_check
          %p537 = pneg %p330
        $region94: #{tpu_custom_call.1} parent=75 // pred_check_branch
          %539 = sbr.rel (%p537) target = $region96
        $region95: #{tpu_custom_call.1} parent=75 // pred_region
          %540 = dma.done [#allocation12], 4096
        $region96: #{tpu_custom_call.1} parent=75 // pred_fallthru
          _
        %p541 = scmp.lt.s32.totalorder %s37, 1
        %s542 = scalar_select %p541, %s37, 1
        %s543 = scalar_lea.vmem %s0, %s542
        %p544 = pneg %p66
        %p545 = pneg %p63
        %p546 = scmp.lt.s32.totalorder %s37, 1
        %s547 = scalar_select %p546, %s37, 1
        %p548 = scmp.lt.s32.totalorder %s38, 2
        %s549 = scalar_select %p548, %s38, 2
        %s550 = smul.addr %s547, 3
        %s551 = sadd.s32 %s549, %s550
        %s552 = smul.addr %s551, 8
        %s553 = scalar_lea.vmem %s1, %s552
        %p554 = pneg %p94
        %p555 = pneg %p91
        %s556 = sand.u32 %s107, 1
        %s557 = scalar_lea.sflag [#allocation6], %s556
        %s558 = sand.u32 %s107, 1
        %s559 = smul.addr %s558, 12
        %s560 = scalar_lea.vmem [#allocation5], %s559
        %p561 = pneg %p120
        %p562 = pneg %p117
        %p563 = pneg %p141
        %p564 = pneg %p138
        %p565 = pneg %p162
        %p566 = pneg %p159
        %p567 = pneg %p183
        %p568 = pneg %p180
        %p569 = pneg %p204
        %p570 = pneg %p201
        %p571 = pneg %p225
        %p572 = pneg %p222
        %p573 = pneg %p246
        %p574 = pneg %p243
        %p575 = pneg %p267
        %p576 = pneg %p264
        %p577 = pneg %p288
        %p578 = pneg %p285
        %p579 = pneg %p309
        %p580 = pneg %p306
        %p581 = pneg %p330
        %p582 = pneg %p327
        %p583 = pneg %p351
        %p584 = pneg %p348
        %p585 = pneg %p379
        %p586 = pneg %p376
        %s587 = sand.u32 %s366, 1
        %s588 = scalar_lea.sflag [#allocation7], %s587
        %s589 = sand.u32 %s366, 1
        %s590 = smul.addr %s589, 8
        %s591 = scalar_lea.vmem [#allocation14], %s590
        %p592 = scmp.lt.s32.totalorder %s37, 1
        %s593 = scalar_select %p592, %s37, 1
        %s594 = scalar_lea.vmem %s0, %s593
        %p595 = scmp.lt.s32.totalorder %s37, 1
        %s596 = scalar_select %p595, %s37, 1
        %p597 = scmp.lt.s32.totalorder %s38, 2
        %s598 = scalar_select %p597, %s38, 2
        %s599 = smul.addr %s596, 3
        %s600 = sadd.s32 %s598, %s599
        %s601 = smul.addr %s600, 8
        %s602 = scalar_lea.vmem %s1, %s601
        %s604 = smul.u32 %s38, 8
        %p605 = scmp.eq.s32.totalorder %s38, 0
        // Predicated region
        $region97: #{tpu_custom_call.1} parent=75 // pred_check
          %p606 = pneg %p605
        $region98: #{tpu_custom_call.1} parent=75 // pred_check_branch
          %608 = sbr.rel (%p606) target = $region100
        $region99: #{tpu_custom_call.1} parent=75 // pred_region
          %v609 = vld [vmem:[%s520] sm:$0xf]
          %v610 = vld [vmem:[%s520 + $0x4] sm:$0xf]
          %v611 = vld [vmem:[%s520 + $0x8] sm:$0xf]
          %v612 = vld [vmem:[#allocation10] sm:$0xff]
          %v613 = vld [vmem:[#allocation10 + $0x8] sm:$0xff]
          %v614 = vld [vmem:[#allocation10 + $0x10] sm:$0xff]
          %v615 = vld [vmem:[#allocation10 + $0x18] sm:$0xff]
          %v616 = vld [vmem:[#allocation10 + $0x20] sm:$0xff]
          %v617 = vld [vmem:[#allocation10 + $0x28] sm:$0xff]
          %v618 = vld [vmem:[#allocation10 + $0x30] sm:$0xff]
          %v619 = vld [vmem:[#allocation10 + $0x38] sm:$0xff]
          %v620 = vld [vmem:[#allocation10 + $0x40] sm:$0xff]
          %v621 = vld [vmem:[#allocation10 + $0x48] sm:$0xff]
          %v622 = vld [vmem:[#allocation10 + $0x50] sm:$0xff]
          %v623 = vld [vmem:[#allocation10 + $0x58] sm:$0xff]
          %v624 = vld [vmem:[#allocation10 + $0x60] sm:$0xff]
          %v625 = vld [vmem:[#allocation10 + $0x68] sm:$0xff]
          %v626 = vld [vmem:[#allocation10 + $0x70] sm:$0xff]
          %v627 = vld [vmem:[#allocation10 + $0x78] sm:$0xff]
          %v628 = vld [vmem:[%s6] sm:$0x3]
          %v630 = vlaneseq
          %v631 = vshrl.u32 %v630, 7
          %v632 = vsub.s32 0, %v631
          %v633 = vrot.slane %v628, %v632
          %v634 = vlaneseq
          %v635 = vshrl.u32 %v634, 7
          %v636 = vsub.s32 1, %v635
          %v637 = vrot.slane %v628, %v636
          %v643 = vunpack.c.l.b16 %v609
          %v644 = vunpack.c.l.b16 %v610
          %v645 = vunpack.c.l.b16 %v611
          %v646 = vpack.c.b16 %v644, %v643
          %v647 = vpack.c.b16 %v645, %v645
          %v666 = vunpack.c.l.b16 %v612
          %v667 = vunpack.c.h.b16 %v612
          %v668 = vunpack.c.l.b16 %v613
          %v669 = vunpack.c.h.b16 %v613
          %v670 = vunpack.c.l.b16 %v614
          %v671 = vunpack.c.h.b16 %v614
          %v672 = vunpack.c.l.b16 %v615
          %v673 = vunpack.c.h.b16 %v615
          %v674 = vunpack.c.l.b16 %v616
          %v675 = vunpack.c.h.b16 %v616
          %v676 = vunpack.c.l.b16 %v617
          %v677 = vunpack.c.h.b16 %v617
          %v678 = vunpack.c.l.b16 %v618
          %v679 = vunpack.c.h.b16 %v618
          %v680 = vunpack.c.l.b16 %v619
          %v681 = vunpack.c.h.b16 %v619
          %v682 = vunpack.c.l.b16 %v620
          %v683 = vunpack.c.h.b16 %v620
          %v684 = vunpack.c.l.b16 %v621
          %v685 = vunpack.c.h.b16 %v621
          %v686 = vunpack.c.l.b16 %v622
          %v687 = vunpack.c.h.b16 %v622
          %v688 = vunpack.c.l.b16 %v623
          %v689 = vunpack.c.h.b16 %v623
          %v690 = vunpack.c.l.b16 %v624
          %v691 = vunpack.c.h.b16 %v624
          %v692 = vunpack.c.l.b16 %v625
          %v693 = vunpack.c.h.b16 %v625
          %v694 = vunpack.c.l.b16 %v626
          %v695 = vunpack.c.h.b16 %v626
          %v696 = vunpack.c.l.b16 %v627
          %v697 = vunpack.c.h.b16 %v627
          %v698 = vpack.c.b16 %v668, %v666
          %v699 = vpack.c.b16 %v669, %v667
          %v700 = vpack.c.b16 %v672, %v670
          %v701 = vpack.c.b16 %v673, %v671
          %v702 = vpack.c.b16 %v676, %v674
          %v703 = vpack.c.b16 %v677, %v675
          %v704 = vpack.c.b16 %v680, %v678
          %v705 = vpack.c.b16 %v681, %v679
          %v706 = vpack.c.b16 %v684, %v682
          %v707 = vpack.c.b16 %v685, %v683
          %v708 = vpack.c.b16 %v688, %v686
          %v709 = vpack.c.b16 %v689, %v687
          %v710 = vpack.c.b16 %v692, %v690
          %v711 = vpack.c.b16 %v693, %v691
          %v712 = vpack.c.b16 %v696, %v694
          %v713 = vpack.c.b16 %v697, %v695
          %730 = vmatprep.subr.bf16.mxu0 %v699
          %731 = vmatpush1.bf16.msra.mxu0 %v698
          %732 = vmatprep.subr.bf16.mxu0 %v701
          %733 = vmatpush1.bf16.msra.mxu0 %v700
          %734 = vmatprep.subr.bf16.mxu0 %v703
          %735 = vmatpush1.bf16.msra.mxu0 %v702
          %736 = vmatprep.subr.bf16.mxu0 %v705
          %737 = vmatpush1.bf16.msra.mxu0 %v704
          %738 = vmatprep.subr.bf16.mxu0 %v707
          %739 = vmatpush1.bf16.msra.mxu0 %v706
          %740 = vmatprep.subr.bf16.mxu0 %v709
          %741 = vmatpush1.bf16.msra.mxu0 %v708
          %742 = vmatprep.subr.bf16.mxu0 %v711
          %743 = vmatpush1.bf16.msra.mxu0 %v710
          %744 = vmatprep.subr.bf16.mxu0 %v713
          %745 = vmatpush1.bf16.msra.mxu0 %v712
          %746 = vmatprep.subr.bf16.mxu0 0
          %747 = vmatpush1.bf16.msra.mxu0 0
          %748 = vmatprep.subr.bf16.mxu0 0
          %749 = vmatpush1.bf16.msra.mxu0 0
          %750 = vmatprep.subr.bf16.mxu0 0
          %751 = vmatpush1.bf16.msra.mxu0 0
          %752 = vmatprep.subr.bf16.mxu0 0
          %753 = vmatpush1.bf16.msra.mxu0 0
          %754 = vmatprep.subr.bf16.mxu0 0
          %755 = vmatpush1.bf16.msra.mxu0 0
          %756 = vmatprep.subr.bf16.mxu0 0
          %757 = vmatpush1.bf16.msra.mxu0 0
          %758 = vmatprep.subr.bf16.mxu0 0
          %759 = vmatpush1.bf16.msra.mxu0 0
          %760 = vmatprep.subr.bf16.mxu0 0
          %761 = vmatpush1.bf16.msra.mxu0 0
          %762 = vmatprep.mubr.bf16.mxu0 0
          %763 = vmatmul.mubr.bf16.gmra.mrb[0].mxu0 %v646
          %v764 = vpop.f32.mrb[0].mxu0
          %v765 = vadd.f32 %v633, %v764
          %v766 = vpop.f32.mrb[0].mxu0
          %v767 = vadd.f32 %v637, %v766
          %v768 = vpop.f32.mrb[0].mxu0
          %v769 = vadd.f32 %v633, %v768
          %v770 = vpop.f32.mrb[0].mxu0
          %v771 = vadd.f32 %v637, %v770
          %772 = vmatprep.mubr.bf16.mxu0 0
          %773 = vmatmul.mubr.bf16.gmra.mrb[0].mxu0 %v647
          %v774 = vpop.f32.mrb[0].mxu0
          %v775 = vadd.f32 %v633, %v774
          %v776 = vpop.f32.mrb[0].mxu0
          %v777 = vadd.f32 %v637, %v776
          %v778 = vpop.f32.mrb[0].mxu0
          %v779 = vpop.f32.mrb[0].mxu0
          %780 = vdwg.mxu0
          %781 = vxpose.xlu0.b32.start [1/16] %v765, 128
          %782 = vxpose.xlu0.b32.cont [2/16] %v769, 128
          %783 = vxpose.xlu0.b32.cont [3/16] %v775, 128
          %784 = vxpose.xlu0.b32.cont [4/16] 0.0, 128
          %785 = vxpose.xlu0.b32.cont [5/16] 0.0, 128
          %786 = vxpose.xlu0.b32.cont [6/16] 0.0, 128
          %787 = vxpose.xlu0.b32.cont [7/16] 0.0, 128
          %788 = vxpose.xlu0.b32.cont [8/16] 0.0, 128
          %789 = vxpose.xlu0.b32.cont [9/16] 0.0, 128
          %790 = vxpose.xlu0.b32.cont [10/16] 0.0, 128
          %791 = vxpose.xlu0.b32.cont [11/16] 0.0, 128
          %792 = vxpose.xlu0.b32.cont [12/16] 0.0, 128
          %793 = vxpose.xlu0.b32.cont [13/16] 0.0, 128
          %794 = vxpose.xlu0.b32.cont [14/16] 0.0, 128
          %795 = vxpose.xlu0.b32.cont [15/16] 0.0, 128
          %796 = vxpose.xlu0.b32.end [16/16] 0.0, 128
          %v797 = vpop.trf.xlu0
          %v798 = vpop.trf.xlu0
          %v799 = vpop.trf.xlu0
          %v800 = vpop.trf.xlu0
          %v801 = vpop.trf.xlu0
          %v802 = vpop.trf.xlu0
          %v803 = vpop.trf.xlu0
          %v804 = vpop.trf.xlu0
          %v805 = vpop.trf.xlu0
          %v806 = vpop.trf.xlu0
          %v807 = vpop.trf.xlu0
          %v808 = vpop.trf.xlu0
          %v809 = vpop.trf.xlu0
          %v810 = vpop.trf.xlu0
          %v811 = vpop.trf.xlu0
          %v812 = vpop.trf.xlu0
          %v813 = vpack.c.bf16 %v798, %v797
          %v814 = vpack.c.bf16 %v800, %v799
          %v815 = vpack.c.bf16 %v802, %v801
          %v816 = vpack.c.bf16 %v804, %v803
          %v817 = vpack.c.bf16 %v806, %v805
          %v818 = vpack.c.bf16 %v808, %v807
          %v819 = vpack.c.bf16 %v810, %v809
          %v820 = vpack.c.bf16 %v812, %v811
          %vm821 = vcmask 195584
          %822 = vst.msk [vmem:[#allocation2] sm:$0xff] %vm821, %v813
          %823 = vst.msk [vmem:[#allocation2 + $0x8] sm:$0xff] %vm821, %v814
          %824 = vst.msk [vmem:[#allocation2 + $0x10] sm:$0xff] %vm821, %v815
          %825 = vst.msk [vmem:[#allocation2 + $0x18] sm:$0xff] %vm821, %v816
          %826 = vst.msk [vmem:[#allocation2 + $0x20] sm:$0xff] %vm821, %v817
          %827 = vst.msk [vmem:[#allocation2 + $0x28] sm:$0xff] %vm821, %v818
          %828 = vst.msk [vmem:[#allocation2 + $0x30] sm:$0xff] %vm821, %v819
          %829 = vst.msk [vmem:[#allocation2 + $0x38] sm:$0xff] %vm821, %v820
          %v830 = vpack.c.bf16 %v771, %v767
          %v831 = vpack.c.bf16 %v777, %v777
          %v834 = vunpack.c.l.b16 %v830
          %v835 = vunpack.c.h.b16 %v830
          %v836 = vunpack.c.l.b16 %v831
          %v837 = vpack.c.b16 %v834, %v834
          %v838 = vpack.c.b16 %v835, %v835
          %v839 = vpack.c.b16 %v836, %v836
          %843 = vst [vmem:[#allocation3] sm:$0xf] %v837
          %844 = vst [vmem:[#allocation3 + $0x4] sm:$0xf] %v838
          %845 = vst [vmem:[#allocation3 + $0x8] sm:$0xf] %v839
        $region100: #{tpu_custom_call.1} parent=75 // pred_fallthru
          _
        %s846 = sshra.s32 %s604, 3
        %s847 = sand.u32 %s604, 7
        %s848 = smul.addr %s846, 4
        %s849 = scalar_lea.vmem %s520, %s848 [#allocation5]
        %v850 = vld [vmem:[%s849] sm:$0xf]
        %v851 = vld [vmem:[#allocation8] sm:$0xf]
        %v852 = vld [vmem:[#allocation8 + $0x4] sm:$0xf]
        %v853 = vld [vmem:[#allocation8 + $0x8] sm:$0xf]
        %v854 = vld [vmem:[#allocation8 + $0xc] sm:$0xf]
        %v855 = vld [vmem:[#allocation8 + $0x10] sm:$0xf]
        %v856 = vld [vmem:[#allocation8 + $0x14] sm:$0xf]
        %v857 = vld [vmem:[#allocation8 + $0x18] sm:$0xf]
        %v858 = vld [vmem:[#allocation8 + $0x1c] sm:$0xf]
        %v859 = vld [vmem:[#allocation8 + $0x20] sm:$0xf]
        %v860 = vld [vmem:[#allocation8 + $0x24] sm:$0xf]
        %v861 = vld [vmem:[#allocation8 + $0x28] sm:$0xf]
        %v862 = vld [vmem:[#allocation8 + $0x2c] sm:$0xf]
        %v863 = vld [vmem:[#allocation8 + $0x30] sm:$0xf]
        %v864 = vld [vmem:[#allocation8 + $0x34] sm:$0xf]
        %v865 = vld [vmem:[#allocation8 + $0x38] sm:$0xf]
        %v866 = vld [vmem:[#allocation8 + $0x3c] sm:$0xf]
        %v867 = vld [vmem:[%s4] sm:$0x1]
        %v869 = vlaneseq
        %v870 = vshrl.u32 %v869, 7
        %v871 = vsub.s32 0, %v870
        %v872 = vrot.slane %v867, %v871
        %v890 = vunpack.c.l.b16 %v851
        %v891 = vunpack.c.l.b16 %v852
        %v892 = vunpack.c.l.b16 %v853
        %v893 = vunpack.c.l.b16 %v854
        %v894 = vunpack.c.l.b16 %v855
        %v895 = vunpack.c.l.b16 %v856
        %v896 = vunpack.c.l.b16 %v857
        %v897 = vunpack.c.l.b16 %v858
        %v898 = vunpack.c.l.b16 %v859
        %v899 = vunpack.c.l.b16 %v860
        %v900 = vunpack.c.l.b16 %v861
        %v901 = vunpack.c.l.b16 %v862
        %v902 = vunpack.c.l.b16 %v863
        %v903 = vunpack.c.l.b16 %v864
        %v904 = vunpack.c.l.b16 %v865
        %v905 = vunpack.c.l.b16 %v866
        %v906 = vpack.c.b16 %v891, %v890
        %v907 = vpack.c.b16 %v893, %v892
        %v908 = vpack.c.b16 %v895, %v894
        %v909 = vpack.c.b16 %v897, %v896
        %v910 = vpack.c.b16 %v899, %v898
        %v911 = vpack.c.b16 %v901, %v900
        %v912 = vpack.c.b16 %v903, %v902
        %v913 = vpack.c.b16 %v905, %v904
        %922 = vmatprep.subr.bf16.mxu0 0
        %923 = vmatpush1.bf16.msra.mxu0 %v906
        %924 = vmatprep.subr.bf16.mxu0 0
        %925 = vmatpush1.bf16.msra.mxu0 %v907
        %926 = vmatprep.subr.bf16.mxu0 0
        %927 = vmatpush1.bf16.msra.mxu0 %v908
        %928 = vmatprep.subr.bf16.mxu0 0
        %929 = vmatpush1.bf16.msra.mxu0 %v909
        %930 = vmatprep.subr.bf16.mxu0 0
        %931 = vmatpush1.bf16.msra.mxu0 %v910
        %932 = vmatprep.subr.bf16.mxu0 0
        %933 = vmatpush1.bf16.msra.mxu0 %v911
        %934 = vmatprep.subr.bf16.mxu0 0
        %935 = vmatpush1.bf16.msra.mxu0 %v912
        %936 = vmatprep.subr.bf16.mxu0 0
        %937 = vmatpush1.bf16.msra.mxu0 %v913
        %938 = vmatprep.subr.bf16.mxu0 0
        %939 = vmatpush1.bf16.msra.mxu0 0
        %940 = vmatprep.subr.bf16.mxu0 0
        %941 = vmatpush1.bf16.msra.mxu0 0
        %942 = vmatprep.subr.bf16.mxu0 0
        %943 = vmatpush1.bf16.msra.mxu0 0
        %944 = vmatprep.subr.bf16.mxu0 0
        %945 = vmatpush1.bf16.msra.mxu0 0
        %946 = vmatprep.subr.bf16.mxu0 0
        %947 = vmatpush1.bf16.msra.mxu0 0
        %948 = vmatprep.subr.bf16.mxu0 0
        %949 = vmatpush1.bf16.msra.mxu0 0
        %950 = vmatprep.subr.bf16.mxu0 0
        %951 = vmatpush1.bf16.msra.mxu0 0
        %952 = vmatprep.subr.bf16.mxu0 0
        %953 = vmatpush1.bf16.msra.mxu0 0
        %954 = vmatprep.mubr.bf16.mxu0 0
        %955 = vmatmul.mubr.bf16.gmra.mrb[0].mxu0 %v850
        %v956 = vpop.f32.mrb[0].mxu0
        %v957 = vadd.f32 %v872, %v956
        %v958 = vpop.f32.mrb[0].mxu0
        %v959 = vpop.f32.mrb[0].mxu0
        %v960 = vpop.f32.mrb[0].mxu0
        %961 = vdwg.mxu0
        %v962 = vpack.c.bf16 %v957, %v957
        %v963 = vlaneseq
        %v964 = vshrl.u32 %v963, 7
        %v965 = vstv %s604
        %v966 = vadd.s32 %v964, %v965
        %v967 = vlaneseq
        %v968 = vand.u32 %v967, 127
        %vm969 = vcmp.eq.s32.totalorder %v966, %v968
        %v970 = vsel %vm969, 1, 0
        %v971 = vcvt.s32.f32 %v970
        %v972 = vld [vmem:[%s594] sm:$0x1]
        %v973 = vsub.f32 1.0, %v972
        %v974 = vld [vmem:[%s602] sm:$0xff]
        %v975 = vsub.f32 1.0, %v974
        %977 = vset.pattern.permute.xlu0 0
        %978 = vperm.xlu0 %977, %v975
        %v979 = vpop.permute.xlu0 %978
        %v982 = vlaneseq
        %v983 = vshrl.u32 %v982, 7
        %v984 = vsub.s32 0, %v983
        %v985 = vrot.slane %v973, %v984
        %v987 = vmul.f32 %v979, %v985
        %v988 = vsub.f32 1.0, %v987
        %v989 = vadd.f32 %v988, %v971
        %v990 = vmin.f32 %v989, 1.0
        %v991 = vmul.f32 %v990, 1e+12
        %v992 = vsub.f32 1.0, %v990
        %v993 = vld [vmem:[#allocation2] sm:$0xff]
        %v994 = vld [vmem:[#allocation2 + $0x8] sm:$0xff]
        %v995 = vld [vmem:[#allocation2 + $0x10] sm:$0xff]
        %v996 = vld [vmem:[#allocation2 + $0x18] sm:$0xff]
        %v997 = vld [vmem:[#allocation3] sm:$0xf]
        %v998 = vld [vmem:[#allocation3 + $0x4] sm:$0xf]
        %v999 = vld [vmem:[#allocation3 + $0x8] sm:$0xf]
        %vm1000 = vcmask 523264
        %v1002 = vsel %vm1000, %v962, 0
        %1004 = vmatprep.subr.bf16.mxu0 0
        %1005 = vmatpush1.bf16.msra.mxu0 %v993
        %1006 = vmatprep.subr.bf16.mxu0 0
        %1007 = vmatpush1.bf16.msra.mxu0 %v994
        %1008 = vmatprep.subr.bf16.mxu0 0
        %1009 = vmatpush1.bf16.msra.mxu0 %v995
        %1010 = vmatprep.subr.bf16.mxu0 0
        %1011 = vmatpush1.bf16.msra.mxu0 %v996
        %1012 = vmatprep.subr.bf16.mxu0 0
        %1013 = vmatpush1.bf16.msra.mxu0 0
        %1014 = vmatprep.subr.bf16.mxu0 0
        %1015 = vmatpush1.bf16.msra.mxu0 0
        %1016 = vmatprep.subr.bf16.mxu0 0
        %1017 = vmatpush1.bf16.msra.mxu0 0
        %1018 = vmatprep.subr.bf16.mxu0 0
        %1019 = vmatpush1.bf16.msra.mxu0 0
        %1020 = vmatprep.subr.bf16.mxu0 0
        %1021 = vmatpush1.bf16.msra.mxu0 0
        %1022 = vmatprep.subr.bf16.mxu0 0
        %1023 = vmatpush1.bf16.msra.mxu0 0
        %1024 = vmatprep.subr.bf16.mxu0 0
        %1025 = vmatpush1.bf16.msra.mxu0 0
        %1026 = vmatprep.subr.bf16.mxu0 0
        %1027 = vmatpush1.bf16.msra.mxu0 0
        %1028 = vmatprep.subr.bf16.mxu0 0
        %1029 = vmatpush1.bf16.msra.mxu0 0
        %1030 = vmatprep.subr.bf16.mxu0 0
        %1031 = vmatpush1.bf16.msra.mxu0 0
        %1032 = vmatprep.subr.bf16.mxu0 0
        %1033 = vmatpush1.bf16.msra.mxu0 0
        %1034 = vmatprep.subr.bf16.mxu0 0
        %1035 = vmatpush1.bf16.msra.mxu0 0
        %1036 = vmatprep.mubr.bf16.mxu0 0
        %1037 = vmatmul.mubr.bf16.gmra.mrb[0].mxu0 %v1002
        %v1038 = vpop.f32.mrb[0].mxu0
        %v1039 = vadd.f32 0.0, %v1038
        %v1040 = vpop.f32.mrb[0].mxu0
        %v1041 = vpop.f32.mrb[0].mxu0
        %v1042 = vpop.f32.mrb[0].mxu0
        %1043 = vdwg.mxu0
        %v1044 = vmul.f32 %v1039, 0.125
        %v1045 = vsub.f32 %v1044, %v991
        %vm1046 = vcmask 195584
        %v1047 = vsel %vm1046, %v1045, -inf
        %1048 = vmax.xlane.f32.xlu0 %v1047
        %v1049 = vpop.xlane.xlu0 %1048
        %v1050 = vsub.f32 %v1045, %v1049
        %v1051 = vmul.f32 %v1050, 1.442695
        %v1052 = vpow.pop %v1051
        %v1053 = vsel %vm1046, %v1052, 0.0
        %1054 = vadd.xlane.f32.xlu0 %v1053
        %v1055 = vpop.xlane.xlu0 %1054
        %v1056 = vrcp.pop %v1055
        %v1057 = vmul.f32 %v1052, %v1056
        %v1058 = vmul.f32 %v1057, %v992
        %v1059 = vpack.c.bf16 %v1058, %v1058
        %v1063 = vunpack.c.l.b16 %v997
        %v1064 = vunpack.c.l.b16 %v998
        %v1065 = vunpack.c.l.b16 %v999
        %v1066 = vpack.c.b16 %v1064, %v1063
        %v1067 = vpack.c.b16 %v1065, %v1065
        %v1070 = vsel %vm1046, %v1059, 0
        %vm1072 = vcmask 1043456
        %v1074 = vsel %vm1072, %v1067, 0
        %1076 = vmatprep.subr.bf16.mxu0 0
        %1077 = vmatpush1.bf16.msra.mxu0 %v1066
        %1078 = vmatprep.subr.bf16.mxu0 0
        %1079 = vmatpush1.bf16.msra.mxu0 %v1074
        %1080 = vmatprep.subr.bf16.mxu0 0
        %1081 = vmatpush1.bf16.msra.mxu0 0
        %1082 = vmatprep.subr.bf16.mxu0 0
        %1083 = vmatpush1.bf16.msra.mxu0 0
        %1084 = vmatprep.subr.bf16.mxu0 0
        %1085 = vmatpush1.bf16.msra.mxu0 0
        %1086 = vmatprep.subr.bf16.mxu0 0
        %1087 = vmatpush1.bf16.msra.mxu0 0
        %1088 = vmatprep.subr.bf16.mxu0 0
        %1089 = vmatpush1.bf16.msra.mxu0 0
        %1090 = vmatprep.subr.bf16.mxu0 0
        %1091 = vmatpush1.bf16.msra.mxu0 0
        %1092 = vmatprep.subr.bf16.mxu0 0
        %1093 = vmatpush1.bf16.msra.mxu0 0
        %1094 = vmatprep.subr.bf16.mxu0 0
        %1095 = vmatpush1.bf16.msra.mxu0 0
        %1096 = vmatprep.subr.bf16.mxu0 0
        %1097 = vmatpush1.bf16.msra.mxu0 0
        %1098 = vmatprep.subr.bf16.mxu0 0
        %1099 = vmatpush1.bf16.msra.mxu0 0
        %1100 = vmatprep.subr.bf16.mxu0 0
        %1101 = vmatpush1.bf16.msra.mxu0 0
        %1102 = vmatprep.subr.bf16.mxu0 0
        %1103 = vmatpush1.bf16.msra.mxu0 0
        %1104 = vmatprep.subr.bf16.mxu0 0
        %1105 = vmatpush1.bf16.msra.mxu0 0
        %1106 = vmatprep.subr.bf16.mxu0 0
        %1107 = vmatpush1.bf16.msra.mxu0 0
        %1108 = vmatprep.mubr.bf16.mxu0 0
        %1109 = vmatmul.mubr.bf16.gmra.mrb[0].mxu0 %v1070
        %v1110 = vpop.f32.mrb[0].mxu0
        %v1111 = vadd.f32 0.0, %v1110
        %v1112 = vpop.f32.mrb[0].mxu0
        %v1113 = vpop.f32.mrb[0].mxu0
        %v1114 = vpop.f32.mrb[0].mxu0
        %1115 = vdwg.mxu0
        %v1116 = vpack.c.bf16 %v1111, %v1111
        %vm1117 = vcmask 519168
        %1118 = vst.msk [vmem:[#allocation4] sm:$0xf] %vm1117, %v1116
        %v1119 = vld [vmem:[#allocation2 + $0x20] sm:$0xff]
        %v1120 = vld [vmem:[#allocation2 + $0x28] sm:$0xff]
        %v1121 = vld [vmem:[#allocation2 + $0x30] sm:$0xff]
        %v1122 = vld [vmem:[#allocation2 + $0x38] sm:$0xff]
        %v1123 = vld [vmem:[#allocation3] sm:$0xf]
        %v1124 = vld [vmem:[#allocation3 + $0x4] sm:$0xf]
        %v1125 = vld [vmem:[#allocation3 + $0x8] sm:$0xf]
        %1127 = vrot.lane.b32.xlu0 %v962, 64
        %v1128 = vpop.permute.xlu0 %1127
        %v1130 = vsel %vm1000, %v1128, 0
        %1132 = vmatprep.subr.bf16.mxu0 0
        %1133 = vmatpush1.bf16.msra.mxu0 %v1119
        %1134 = vmatprep.subr.bf16.mxu0 0
        %1135 = vmatpush1.bf16.msra.mxu0 %v1120
        %1136 = vmatprep.subr.bf16.mxu0 0
        %1137 = vmatpush1.bf16.msra.mxu0 %v1121
        %1138 = vmatprep.subr.bf16.mxu0 0
        %1139 = vmatpush1.bf16.msra.mxu0 %v1122
        %1140 = vmatprep.subr.bf16.mxu0 0
        %1141 = vmatpush1.bf16.msra.mxu0 0
        %1142 = vmatprep.subr.bf16.mxu0 0
        %1143 = vmatpush1.bf16.msra.mxu0 0
        %1144 = vmatprep.subr.bf16.mxu0 0
        %1145 = vmatpush1.bf16.msra.mxu0 0
        %1146 = vmatprep.subr.bf16.mxu0 0
        %1147 = vmatpush1.bf16.msra.mxu0 0
        %1148 = vmatprep.subr.bf16.mxu0 0
        %1149 = vmatpush1.bf16.msra.mxu0 0
        %1150 = vmatprep.subr.bf16.mxu0 0
        %1151 = vmatpush1.bf16.msra.mxu0 0
        %1152 = vmatprep.subr.bf16.mxu0 0
        %1153 = vmatpush1.bf16.msra.mxu0 0
        %1154 = vmatprep.subr.bf16.mxu0 0
        %1155 = vmatpush1.bf16.msra.mxu0 0
        %1156 = vmatprep.subr.bf16.mxu0 0
        %1157 = vmatpush1.bf16.msra.mxu0 0
        %1158 = vmatprep.subr.bf16.mxu0 0
        %1159 = vmatpush1.bf16.msra.mxu0 0
        %1160 = vmatprep.subr.bf16.mxu0 0
        %1161 = vmatpush1.bf16.msra.mxu0 0
        %1162 = vmatprep.subr.bf16.mxu0 0
        %1163 = vmatpush1.bf16.msra.mxu0 0
        %1164 = vmatprep.mubr.bf16.mxu0 0
        %1165 = vmatmul.mubr.bf16.gmra.mrb[0].mxu0 %v1130
        %v1166 = vpop.f32.mrb[0].mxu0
        %v1167 = vadd.f32 0.0, %v1166
        %v1168 = vpop.f32.mrb[0].mxu0
        %v1169 = vpop.f32.mrb[0].mxu0
        %v1170 = vpop.f32.mrb[0].mxu0
        %1171 = vdwg.mxu0
        %v1172 = vmul.f32 %v1167, 0.125
        %v1173 = vsub.f32 %v1172, %v991
        %v1174 = vsel %vm1046, %v1173, -inf
        %1175 = vmax.xlane.f32.xlu0 %v1174
        %v1176 = vpop.xlane.xlu0 %1175
        %v1177 = vsub.f32 %v1173, %v1176
        %v1178 = vmul.f32 %v1177, 1.442695
        %v1179 = vpow.pop %v1178
        %v1180 = vsel %vm1046, %v1179, 0.0
        %1181 = vadd.xlane.f32.xlu0 %v1180
        %v1182 = vpop.xlane.xlu0 %1181
        %v1183 = vrcp.pop %v1182
        %v1184 = vmul.f32 %v1179, %v1183
        %v1185 = vmul.f32 %v1184, %v992
        %v1186 = vpack.c.bf16 %v1185, %v1185
        %v1190 = vunpack.c.l.b16 %v1123
        %v1191 = vunpack.c.l.b16 %v1124
        %v1192 = vunpack.c.l.b16 %v1125
        %v1193 = vpack.c.b16 %v1191, %v1190
        %v1194 = vpack.c.b16 %v1192, %v1192
        %1195 = vrot.lane.b32.xlu0 %v1193, 64
        %v1196 = vpop.permute.xlu0 %1195
        %1197 = vrot.lane.b32.xlu0 %v1194, 64
        %v1198 = vpop.permute.xlu0 %1197
        %v1201 = vsel %vm1046, %v1186, 0
        %v1204 = vsel %vm1072, %v1198, 0
        %1206 = vmatprep.subr.bf16.mxu0 0
        %1207 = vmatpush1.bf16.msra.mxu0 %v1196
        %1208 = vmatprep.subr.bf16.mxu0 0
        %1209 = vmatpush1.bf16.msra.mxu0 %v1204
        %1210 = vmatprep.subr.bf16.mxu0 0
        %1211 = vmatpush1.bf16.msra.mxu0 0
        %1212 = vmatprep.subr.bf16.mxu0 0
        %1213 = vmatpush1.bf16.msra.mxu0 0
        %1214 = vmatprep.subr.bf16.mxu0 0
        %1215 = vmatpush1.bf16.msra.mxu0 0
        %1216 = vmatprep.subr.bf16.mxu0 0
        %1217 = vmatpush1.bf16.msra.mxu0 0
        %1218 = vmatprep.subr.bf16.mxu0 0
        %1219 = vmatpush1.bf16.msra.mxu0 0
        %1220 = vmatprep.subr.bf16.mxu0 0
        %1221 = vmatpush1.bf16.msra.mxu0 0
        %1222 = vmatprep.subr.bf16.mxu0 0
        %1223 = vmatpush1.bf16.msra.mxu0 0
        %1224 = vmatprep.subr.bf16.mxu0 0
        %1225 = vmatpush1.bf16.msra.mxu0 0
        %1226 = vmatprep.subr.bf16.mxu0 0
        %1227 = vmatpush1.bf16.msra.mxu0 0
        %1228 = vmatprep.subr.bf16.mxu0 0
        %1229 = vmatpush1.bf16.msra.mxu0 0
        %1230 = vmatprep.subr.bf16.mxu0 0
        %1231 = vmatpush1.bf16.msra.mxu0 0
        %1232 = vmatprep.subr.bf16.mxu0 0
        %1233 = vmatpush1.bf16.msra.mxu0 0
        %1234 = vmatprep.subr.bf16.mxu0 0
        %1235 = vmatpush1.bf16.msra.mxu0 0
        %1236 = vmatprep.subr.bf16.mxu0 0
        %1237 = vmatpush1.bf16.msra.mxu0 0
        %1238 = vmatprep.mubr.bf16.mxu0 0
        %1239 = vmatmul.mubr.bf16.gmra.mrb[0].mxu0 %v1201
        %v1240 = vpop.f32.mrb[0].mxu0
        %v1241 = vadd.f32 0.0, %v1240
        %v1242 = vpop.f32.mrb[0].mxu0
        %v1243 = vpop.f32.mrb[0].mxu0
        %v1244 = vpop.f32.mrb[0].mxu0
        %1245 = vdwg.mxu0
        %v1246 = vpack.c.bf16 %v1241, %v1241
        %v1248 = vunpack.c.l.b16 %v1246
        %v1249 = vpack.c.b16 %v1248, %v1248
        %1250 = vrot.lane.b32.xlu0 %v1249, 64
        %v1251 = vpop.permute.xlu0 %1250
        %vm1253 = vcmask 1043968
        %1254 = vst.msk [vmem:[#allocation4] sm:$0xf] %vm1253, %v1251
        %v1255 = vld [vmem:[#allocation4] sm:$0xf]
        %v1256 = vld [vmem:[%s7] sm:$0xf]
        %v1257 = vld [vmem:[%s7 + $0x4] sm:$0xf]
        %v1258 = vld [vmem:[%s7 + $0x8] sm:$0xf]
        %v1259 = vld [vmem:[%s7 + $0xc] sm:$0xf]
        %v1260 = vld [vmem:[%s7 + $0x10] sm:$0xf]
        %v1261 = vld [vmem:[%s7 + $0x14] sm:$0xf]
        %v1262 = vld [vmem:[%s7 + $0x18] sm:$0xf]
        %v1263 = vld [vmem:[%s7 + $0x1c] sm:$0xf]
        %v1264 = vld [vmem:[%s7 + $0x20] sm:$0xf]
        %v1265 = vld [vmem:[%s7 + $0x24] sm:$0xf]
        %v1266 = vld [vmem:[%s7 + $0x28] sm:$0xf]
        %v1267 = vld [vmem:[%s7 + $0x2c] sm:$0xf]
        %v1268 = vld [vmem:[%s7 + $0x30] sm:$0xf]
        %v1269 = vld [vmem:[%s7 + $0x34] sm:$0xf]
        %v1270 = vld [vmem:[%s7 + $0x38] sm:$0xf]
        %v1271 = vld [vmem:[%s7 + $0x3c] sm:$0xf]
        %v1288 = vunpack.c.l.b16 %v1256
        %v1289 = vunpack.c.l.b16 %v1257
        %v1290 = vunpack.c.l.b16 %v1258
        %v1291 = vunpack.c.l.b16 %v1259
        %v1292 = vunpack.c.l.b16 %v1260
        %v1293 = vunpack.c.l.b16 %v1261
        %v1294 = vunpack.c.l.b16 %v1262
        %v1295 = vunpack.c.l.b16 %v1263
        %v1296 = vunpack.c.l.b16 %v1264
        %v1297 = vunpack.c.l.b16 %v1265
        %v1298 = vunpack.c.l.b16 %v1266
        %v1299 = vunpack.c.l.b16 %v1267
        %v1300 = vunpack.c.l.b16 %v1268
        %v1301 = vunpack.c.l.b16 %v1269
        %v1302 = vunpack.c.l.b16 %v1270
        %v1303 = vunpack.c.l.b16 %v1271
        %v1304 = vpack.c.b16 %v1289, %v1288
        %v1305 = vpack.c.b16 %v1291, %v1290
        %v1306 = vpack.c.b16 %v1293, %v1292
        %v1307 = vpack.c.b16 %v1295, %v1294
        %v1308 = vpack.c.b16 %v1297, %v1296
        %v1309 = vpack.c.b16 %v1299, %v1298
        %v1310 = vpack.c.b16 %v1301, %v1300
        %v1311 = vpack.c.b16 %v1303, %v1302
        %1320 = vmatprep.subr.bf16.mxu0 0
        %1321 = vmatpush1.bf16.msra.mxu0 %v1304
        %1322 = vmatprep.subr.bf16.mxu0 0
        %1323 = vmatpush1.bf16.msra.mxu0 %v1305
        %1324 = vmatprep.subr.bf16.mxu0 0
        %1325 = vmatpush1.bf16.msra.mxu0 %v1306
        %1326 = vmatprep.subr.bf16.mxu0 0
        %1327 = vmatpush1.bf16.msra.mxu0 %v1307
        %1328 = vmatprep.subr.bf16.mxu0 0
        %1329 = vmatpush1.bf16.msra.mxu0 %v1308
        %1330 = vmatprep.subr.bf16.mxu0 0
        %1331 = vmatpush1.bf16.msra.mxu0 %v1309
        %1332 = vmatprep.subr.bf16.mxu0 0
        %1333 = vmatpush1.bf16.msra.mxu0 %v1310
        %1334 = vmatprep.subr.bf16.mxu0 0
        %1335 = vmatpush1.bf16.msra.mxu0 %v1311
        %1336 = vmatprep.subr.bf16.mxu0 0
        %1337 = vmatpush1.bf16.msra.mxu0 0
        %1338 = vmatprep.subr.bf16.mxu0 0
        %1339 = vmatpush1.bf16.msra.mxu0 0
        %1340 = vmatprep.subr.bf16.mxu0 0
        %1341 = vmatpush1.bf16.msra.mxu0 0
        %1342 = vmatprep.subr.bf16.mxu0 0
        %1343 = vmatpush1.bf16.msra.mxu0 0
        %1344 = vmatprep.subr.bf16.mxu0 0
        %1345 = vmatpush1.bf16.msra.mxu0 0
        %1346 = vmatprep.subr.bf16.mxu0 0
        %1347 = vmatpush1.bf16.msra.mxu0 0
        %1348 = vmatprep.subr.bf16.mxu0 0
        %1349 = vmatpush1.bf16.msra.mxu0 0
        %1350 = vmatprep.subr.bf16.mxu0 0
        %1351 = vmatpush1.bf16.msra.mxu0 0
        %1352 = vmatprep.mubr.bf16.mxu0 0
        %1353 = vmatmul.mubr.bf16.gmra.mrb[0].mxu0 %v1255
        %v1354 = vpop.f32.mrb[0].mxu0
        %v1355 = vadd.f32 0.0, %v1354
        %v1356 = vpop.f32.mrb[0].mxu0
        %v1357 = vpop.f32.mrb[0].mxu0
        %v1358 = vpop.f32.mrb[0].mxu0
        %1359 = vdwg.mxu0
        %v1360 = vld [vmem:[%s8] sm:$0x1]
        %v1361 = vld [vmem:[%s9] sm:$0x1]
        %v1362 = vunpack.c.l.bf16 %v850
        %v1363 = vadd.f32 %v1362, %v1355
        %1364 = vadd.xlane.f32.xlu0 %v1363
        %v1365 = vpop.xlane.xlu0 %1364
        %v1366 = vrcp.pop 128.0
        %v1367 = vmul.f32 %v1365, %v1366
        %v1368 = vsub.f32 %v1363, %v1367
        %v1369 = vmul.f32 %v1368, %v1368
        %1370 = vadd.xlane.f32.xlu0 %v1369
        %v1371 = vpop.xlane.xlu0 %1370
        %v1372 = vmul.f32 %v1371, %v1366
        %v1373 = vadd.f32 %v1372, 1e-05
        %v1374 = vrsqrt.pop %v1373
        %v1375 = vmul.f32 %v1368, %v1374
        %v1377 = vlaneseq
        %v1378 = vshrl.u32 %v1377, 7
        %v1379 = vsub.s32 0, %v1378
        %v1380 = vrot.slane %v1360, %v1379
        %v1382 = vmul.f32 %v1375, %v1380
        %v1384 = vlaneseq
        %v1385 = vshrl.u32 %v1384, 7
        %v1386 = vsub.s32 0, %v1385
        %v1387 = vrot.slane %v1361, %v1386
        %v1389 = vadd.f32 %v1382, %v1387
        %v1390 = vpack.c.bf16 %v1389, %v1389
        %v1391 = vld [vmem:[#allocation11] sm:$0xff]
        %v1392 = vld [vmem:[#allocation11 + $0x8] sm:$0xff]
        %v1393 = vld [vmem:[#allocation11 + $0x10] sm:$0xff]
        %v1394 = vld [vmem:[#allocation11 + $0x18] sm:$0xff]
        %v1395 = vld [vmem:[#allocation11 + $0x20] sm:$0xff]
        %v1396 = vld [vmem:[#allocation11 + $0x28] sm:$0xff]
        %v1397 = vld [vmem:[#allocation11 + $0x30] sm:$0xff]
        %v1398 = vld [vmem:[#allocation11 + $0x38] sm:$0xff]
        %v1399 = vld [vmem:[#allocation11 + $0x40] sm:$0xff]
        %v1400 = vld [vmem:[#allocation11 + $0x48] sm:$0xff]
        %v1401 = vld [vmem:[#allocation11 + $0x50] sm:$0xff]
        %v1402 = vld [vmem:[#allocation11 + $0x58] sm:$0xff]
        %v1403 = vld [vmem:[#allocation11 + $0x60] sm:$0xff]
        %v1404 = vld [vmem:[#allocation11 + $0x68] sm:$0xff]
        %v1405 = vld [vmem:[#allocation11 + $0x70] sm:$0xff]
        %v1406 = vld [vmem:[#allocation11 + $0x78] sm:$0xff]
        %v1407 = vld [vmem:[#allocation11 + $0x80] sm:$0xff]
        %v1408 = vld [vmem:[#allocation11 + $0x88] sm:$0xff]
        %v1409 = vld [vmem:[#allocation11 + $0x90] sm:$0xff]
        %v1410 = vld [vmem:[#allocation11 + $0x98] sm:$0xff]
        %v1411 = vld [vmem:[#allocation11 + $0xa0] sm:$0xff]
        %v1412 = vld [vmem:[#allocation11 + $0xa8] sm:$0xff]
        %v1413 = vld [vmem:[#allocation11 + $0xb0] sm:$0xff]
        %v1414 = vld [vmem:[#allocation11 + $0xb8] sm:$0xff]
        %v1415 = vld [vmem:[#allocation11 + $0xc0] sm:$0xff]
        %v1416 = vld [vmem:[#allocation11 + $0xc8] sm:$0xff]
        %v1417 = vld [vmem:[#allocation11 + $0xd0] sm:$0xff]
        %v1418 = vld [vmem:[#allocation11 + $0xd8] sm:$0xff]
        %v1419 = vld [vmem:[#allocation11 + $0xe0] sm:$0xff]
        %v1420 = vld [vmem:[#allocation11 + $0xe8] sm:$0xff]
        %v1421 = vld [vmem:[#allocation11 + $0xf0] sm:$0xff]
        %v1422 = vld [vmem:[#allocation11 + $0xf8] sm:$0xff]
        %v1423 = vld [vmem:[%s11] sm:$0xf]
        %v1425 = vlaneseq
        %v1426 = vshrl.u32 %v1425, 7
        %v1427 = vsub.s32 0, %v1426
        %v1428 = vrot.slane %v1423, %v1427
        %v1429 = vlaneseq
        %v1430 = vshrl.u32 %v1429, 7
        %v1431 = vsub.s32 1, %v1430
        %v1432 = vrot.slane %v1423, %v1431
        %v1433 = vlaneseq
        %v1434 = vshrl.u32 %v1433, 7
        %v1435 = vsub.s32 2, %v1434
        %v1436 = vrot.slane %v1423, %v1435
        %v1437 = vlaneseq
        %v1438 = vshrl.u32 %v1437, 7
        %v1439 = vsub.s32 3, %v1438
        %v1440 = vrot.slane %v1423, %v1439
        %v1477 = vunpack.c.l.b16 %v1391
        %v1478 = vunpack.c.h.b16 %v1391
        %v1479 = vunpack.c.l.b16 %v1392
        %v1480 = vunpack.c.h.b16 %v1392
        %v1481 = vunpack.c.l.b16 %v1393
        %v1482 = vunpack.c.h.b16 %v1393
        %v1483 = vunpack.c.l.b16 %v1394
        %v1484 = vunpack.c.h.b16 %v1394
        %v1485 = vunpack.c.l.b16 %v1395
        %v1486 = vunpack.c.h.b16 %v1395
        %v1487 = vunpack.c.l.b16 %v1396
        %v1488 = vunpack.c.h.b16 %v1396
        %v1489 = vunpack.c.l.b16 %v1397
        %v1490 = vunpack.c.h.b16 %v1397
        %v1491 = vunpack.c.l.b16 %v1398
        %v1492 = vunpack.c.h.b16 %v1398
        %v1493 = vunpack.c.l.b16 %v1399
        %v1494 = vunpack.c.h.b16 %v1399
        %v1495 = vunpack.c.l.b16 %v1400
        %v1496 = vunpack.c.h.b16 %v1400
        %v1497 = vunpack.c.l.b16 %v1401
        %v1498 = vunpack.c.h.b16 %v1401
        %v1499 = vunpack.c.l.b16 %v1402
        %v1500 = vunpack.c.h.b16 %v1402
        %v1501 = vunpack.c.l.b16 %v1403
        %v1502 = vunpack.c.h.b16 %v1403
        %v1503 = vunpack.c.l.b16 %v1404
        %v1504 = vunpack.c.h.b16 %v1404
        %v1505 = vunpack.c.l.b16 %v1405
        %v1506 = vunpack.c.h.b16 %v1405
        %v1507 = vunpack.c.l.b16 %v1406
        %v1508 = vunpack.c.h.b16 %v1406
        %v1509 = vunpack.c.l.b16 %v1407
        %v1510 = vunpack.c.h.b16 %v1407
        %v1511 = vunpack.c.l.b16 %v1408
        %v1512 = vunpack.c.h.b16 %v1408
        %v1513 = vunpack.c.l.b16 %v1409
        %v1514 = vunpack.c.h.b16 %v1409
        %v1515 = vunpack.c.l.b16 %v1410
        %v1516 = vunpack.c.h.b16 %v1410
        %v1517 = vunpack.c.l.b16 %v1411
        %v1518 = vunpack.c.h.b16 %v1411
        %v1519 = vunpack.c.l.b16 %v1412
        %v1520 = vunpack.c.h.b16 %v1412
        %v1521 = vunpack.c.l.b16 %v1413
        %v1522 = vunpack.c.h.b16 %v1413
        %v1523 = vunpack.c.l.b16 %v1414
        %v1524 = vunpack.c.h.b16 %v1414
        %v1525 = vunpack.c.l.b16 %v1415
        %v1526 = vunpack.c.h.b16 %v1415
        %v1527 = vunpack.c.l.b16 %v1416
        %v1528 = vunpack.c.h.b16 %v1416
        %v1529 = vunpack.c.l.b16 %v1417
        %v1530 = vunpack.c.h.b16 %v1417
        %v1531 = vunpack.c.l.b16 %v1418
        %v1532 = vunpack.c.h.b16 %v1418
        %v1533 = vunpack.c.l.b16 %v1419
        %v1534 = vunpack.c.h.b16 %v1419
        %v1535 = vunpack.c.l.b16 %v1420
        %v1536 = vunpack.c.h.b16 %v1420
        %v1537 = vunpack.c.l.b16 %v1421
        %v1538 = vunpack.c.h.b16 %v1421
        %v1539 = vunpack.c.l.b16 %v1422
        %v1540 = vunpack.c.h.b16 %v1422
        %v1541 = vpack.c.b16 %v1481, %v1477
        %v1542 = vpack.c.b16 %v1482, %v1478
        %v1543 = vpack.c.b16 %v1483, %v1479
        %v1544 = vpack.c.b16 %v1484, %v1480
        %v1545 = vpack.c.b16 %v1489, %v1485
        %v1546 = vpack.c.b16 %v1490, %v1486
        %v1547 = vpack.c.b16 %v1491, %v1487
        %v1548 = vpack.c.b16 %v1492, %v1488
        %v1549 = vpack.c.b16 %v1497, %v1493
        %v1550 = vpack.c.b16 %v1498, %v1494
        %v1551 = vpack.c.b16 %v1499, %v1495
        %v1552 = vpack.c.b16 %v1500, %v1496
        %v1553 = vpack.c.b16 %v1505, %v1501
        %v1554 = vpack.c.b16 %v1506, %v1502
        %v1555 = vpack.c.b16 %v1507, %v1503
        %v1556 = vpack.c.b16 %v1508, %v1504
        %v1557 = vpack.c.b16 %v1513, %v1509
        %v1558 = vpack.c.b16 %v1514, %v1510
        %v1559 = vpack.c.b16 %v1515, %v1511
        %v1560 = vpack.c.b16 %v1516, %v1512
        %v1561 = vpack.c.b16 %v1521, %v1517
        %v1562 = vpack.c.b16 %v1522, %v1518
        %v1563 = vpack.c.b16 %v1523, %v1519
        %v1564 = vpack.c.b16 %v1524, %v1520
        %v1565 = vpack.c.b16 %v1529, %v1525
        %v1566 = vpack.c.b16 %v1530, %v1526
        %v1567 = vpack.c.b16 %v1531, %v1527
        %v1568 = vpack.c.b16 %v1532, %v1528
        %v1569 = vpack.c.b16 %v1537, %v1533
        %v1570 = vpack.c.b16 %v1538, %v1534
        %v1571 = vpack.c.b16 %v1539, %v1535
        %v1572 = vpack.c.b16 %v1540, %v1536
        %1605 = vmatprep.subr.bf16.mxu0 %v1542
        %1606 = vmatpush1.bf16.msra.mxu0 %v1541
        %1607 = vmatprep.subr.bf16.mxu0 %v1546
        %1608 = vmatpush1.bf16.msra.mxu0 %v1545
        %1609 = vmatprep.subr.bf16.mxu0 %v1550
        %1610 = vmatpush1.bf16.msra.mxu0 %v1549
        %1611 = vmatprep.subr.bf16.mxu0 %v1554
        %1612 = vmatpush1.bf16.msra.mxu0 %v1553
        %1613 = vmatprep.subr.bf16.mxu0 %v1558
        %1614 = vmatpush1.bf16.msra.mxu0 %v1557
        %1615 = vmatprep.subr.bf16.mxu0 %v1562
        %1616 = vmatpush1.bf16.msra.mxu0 %v1561
        %1617 = vmatprep.subr.bf16.mxu0 %v1566
        %1618 = vmatpush1.bf16.msra.mxu0 %v1565
        %1619 = vmatprep.subr.bf16.mxu0 %v1570
        %1620 = vmatpush1.bf16.msra.mxu0 %v1569
        %1621 = vmatprep.subr.bf16.mxu0 0
        %1622 = vmatpush1.bf16.msra.mxu0 0
        %1623 = vmatprep.subr.bf16.mxu0 0
        %1624 = vmatpush1.bf16.msra.mxu0 0
        %1625 = vmatprep.subr.bf16.mxu0 0
        %1626 = vmatpush1.bf16.msra.mxu0 0
        %1627 = vmatprep.subr.bf16.mxu0 0
        %1628 = vmatpush1.bf16.msra.mxu0 0
        %1629 = vmatprep.subr.bf16.mxu0 0
        %1630 = vmatpush1.bf16.msra.mxu0 0
        %1631 = vmatprep.subr.bf16.mxu0 0
        %1632 = vmatpush1.bf16.msra.mxu0 0
        %1633 = vmatprep.subr.bf16.mxu0 0
        %1634 = vmatpush1.bf16.msra.mxu0 0
        %1635 = vmatprep.subr.bf16.mxu0 0
        %1636 = vmatpush1.bf16.msra.mxu0 0
        %1637 = vmatprep.mubr.bf16.mxu0 0
        %1638 = vmatmul.mubr.bf16.gmra.mrb[0].mxu0 %v1390
        %v1639 = vpop.f32.mrb[0].mxu0
        %v1640 = vadd.f32 %v1428, %v1639
        %v1641 = vpop.f32.mrb[0].mxu0
        %v1642 = vadd.f32 %v1432, %v1641
        %v1643 = vpop.f32.mrb[0].mxu0
        %v1644 = vpop.f32.mrb[0].mxu0
        %1645 = vdwg.mxu0
        %1646 = vmatprep.subr.bf16.mxu0 %v1544
        %1647 = vmatpush1.bf16.msra.mxu0 %v1543
        %1648 = vmatprep.subr.bf16.mxu0 %v1548
        %1649 = vmatpush1.bf16.msra.mxu0 %v1547
        %1650 = vmatprep.subr.bf16.mxu0 %v1552
        %1651 = vmatpush1.bf16.msra.mxu0 %v1551
        %1652 = vmatprep.subr.bf16.mxu0 %v1556
        %1653 = vmatpush1.bf16.msra.mxu0 %v1555
        %1654 = vmatprep.subr.bf16.mxu0 %v1560
        %1655 = vmatpush1.bf16.msra.mxu0 %v1559
        %1656 = vmatprep.subr.bf16.mxu0 %v1564
        %1657 = vmatpush1.bf16.msra.mxu0 %v1563
        %1658 = vmatprep.subr.bf16.mxu0 %v1568
        %1659 = vmatpush1.bf16.msra.mxu0 %v1567
        %1660 = vmatprep.subr.bf16.mxu0 %v1572
        %1661 = vmatpush1.bf16.msra.mxu0 %v1571
        %1662 = vmatprep.subr.bf16.mxu0 0
        %1663 = vmatpush1.bf16.msra.mxu0 0
        %1664 = vmatprep.subr.bf16.mxu0 0
        %1665 = vmatpush1.bf16.msra.mxu0 0
        %1666 = vmatprep.subr.bf16.mxu0 0
        %1667 = vmatpush1.bf16.msra.mxu0 0
        %1668 = vmatprep.subr.bf16.mxu0 0
        %1669 = vmatpush1.bf16.msra.mxu0 0
        %1670 = vmatprep.subr.bf16.mxu0 0
        %1671 = vmatpush1.bf16.msra.mxu0 0
        %1672 = vmatprep.subr.bf16.mxu0 0
        %1673 = vmatpush1.bf16.msra.mxu0 0
        %1674 = vmatprep.subr.bf16.mxu0 0
        %1675 = vmatpush1.bf16.msra.mxu0 0
        %1676 = vmatprep.subr.bf16.mxu0 0
        %1677 = vmatpush1.bf16.msra.mxu0 0
        %1678 = vmatprep.mubr.bf16.mxu0 0
        %1679 = vmatmul.mubr.bf16.gmra.mrb[0].mxu0 %v1390
        %v1680 = vpop.f32.mrb[0].mxu0
        %v1681 = vadd.f32 %v1436, %v1680
        %v1682 = vpop.f32.mrb[0].mxu0
        %v1683 = vadd.f32 %v1440, %v1682
        %v1684 = vpop.f32.mrb[0].mxu0
        %v1685 = vpop.f32.mrb[0].mxu0
        %1686 = vdwg.mxu0
        %v1687 = vmul.f32 %v1640, 0.5
        %v1688 = vmul.f32 %v1642, 0.5
        %v1689 = vmul.f32 %v1681, 0.5
        %v1690 = vmul.f32 %v1683, 0.5
        %v1691 = vmul.f32 %v1640, 0.70710677
        %v1692 = vmul.f32 %v1642, 0.70710677
        %v1693 = vmul.f32 %v1681, 0.70710677
        %v1694 = vmul.f32 %v1683, 0.70710677
        %v1695 = verf.f32.pop %v1691
        %v1696 = verf.f32.pop %v1692
        %v1697 = verf.f32.pop %v1693
        %v1698 = verf.f32.pop %v1694
        %v1699 = vadd.f32 %v1695, 1.0
        %v1700 = vadd.f32 %v1696, 1.0
        %v1701 = vadd.f32 %v1697, 1.0
        %v1702 = vadd.f32 %v1698, 1.0
        %v1703 = vmul.f32 %v1687, %v1699
        %v1704 = vmul.f32 %v1688, %v1700
        %v1705 = vmul.f32 %v1689, %v1701
        %v1706 = vmul.f32 %v1690, %v1702
        %v1707 = vpack.c.bf16 %v1703, %v1703
        %v1708 = vpack.c.bf16 %v1704, %v1704
        %v1709 = vpack.c.bf16 %v1705, %v1705
        %v1710 = vpack.c.bf16 %v1706, %v1706
        %v1711 = vld [vmem:[#allocation13] sm:$0xf]
        %v1712 = vld [vmem:[#allocation13 + $0x4] sm:$0xf]
        %v1713 = vld [vmem:[#allocation13 + $0x8] sm:$0xf]
        %v1714 = vld [vmem:[#allocation13 + $0xc] sm:$0xf]
        %v1715 = vld [vmem:[#allocation13 + $0x10] sm:$0xf]
        %v1716 = vld [vmem:[#allocation13 + $0x14] sm:$0xf]
        %v1717 = vld [vmem:[#allocation13 + $0x18] sm:$0xf]
        %v1718 = vld [vmem:[#allocation13 + $0x1c] sm:$0xf]
        %v1719 = vld [vmem:[#allocation13 + $0x20] sm:$0xf]
        %v1720 = vld [vmem:[#allocation13 + $0x24] sm:$0xf]
        %v1721 = vld [vmem:[#allocation13 + $0x28] sm:$0xf]
        %v1722 = vld [vmem:[#allocation13 + $0x2c] sm:$0xf]
        %v1723 = vld [vmem:[#allocation13 + $0x30] sm:$0xf]
        %v1724 = vld [vmem:[#allocation13 + $0x34] sm:$0xf]
        %v1725 = vld [vmem:[#allocation13 + $0x38] sm:$0xf]
        %v1726 = vld [vmem:[#allocation13 + $0x3c] sm:$0xf]
        %v1727 = vld [vmem:[#allocation13 + $0x40] sm:$0xf]
        %v1728 = vld [vmem:[#allocation13 + $0x44] sm:$0xf]
        %v1729 = vld [vmem:[#allocation13 + $0x48] sm:$0xf]
        %v1730 = vld [vmem:[#allocation13 + $0x4c] sm:$0xf]
        %v1731 = vld [vmem:[#allocation13 + $0x50] sm:$0xf]
        %v1732 = vld [vmem:[#allocation13 + $0x54] sm:$0xf]
        %v1733 = vld [vmem:[#allocation13 + $0x58] sm:$0xf]
        %v1734 = vld [vmem:[#allocation13 + $0x5c] sm:$0xf]
        %v1735 = vld [vmem:[#allocation13 + $0x60] sm:$0xf]
        %v1736 = vld [vmem:[#allocation13 + $0x64] sm:$0xf]
        %v1737 = vld [vmem:[#allocation13 + $0x68] sm:$0xf]
        %v1738 = vld [vmem:[#allocation13 + $0x6c] sm:$0xf]
        %v1739 = vld [vmem:[#allocation13 + $0x70] sm:$0xf]
        %v1740 = vld [vmem:[#allocation13 + $0x74] sm:$0xf]
        %v1741 = vld [vmem:[#allocation13 + $0x78] sm:$0xf]
        %v1742 = vld [vmem:[#allocation13 + $0x7c] sm:$0xf]
        %v1743 = vld [vmem:[#allocation13 + $0x80] sm:$0xf]
        %v1744 = vld [vmem:[#allocation13 + $0x84] sm:$0xf]
        %v1745 = vld [vmem:[#allocation13 + $0x88] sm:$0xf]
        %v1746 = vld [vmem:[#allocation13 + $0x8c] sm:$0xf]
        %v1747 = vld [vmem:[#allocation13 + $0x90] sm:$0xf]
        %v1748 = vld [vmem:[#allocation13 + $0x94] sm:$0xf]
        %v1749 = vld [vmem:[#allocation13 + $0x98] sm:$0xf]
        %v1750 = vld [vmem:[#allocation13 + $0x9c] sm:$0xf]
        %v1751 = vld [vmem:[#allocation13 + $0xa0] sm:$0xf]
        %v1752 = vld [vmem:[#allocation13 + $0xa4] sm:$0xf]
        %v1753 = vld [vmem:[#allocation13 + $0xa8] sm:$0xf]
        %v1754 = vld [vmem:[#allocation13 + $0xac] sm:$0xf]
        %v1755 = vld [vmem:[#allocation13 + $0xb0] sm:$0xf]
        %v1756 = vld [vmem:[#allocation13 + $0xb4] sm:$0xf]
        %v1757 = vld [vmem:[#allocation13 + $0xb8] sm:$0xf]
        %v1758 = vld [vmem:[#allocation13 + $0xbc] sm:$0xf]
        %v1759 = vld [vmem:[#allocation13 + $0xc0] sm:$0xf]
        %v1760 = vld [vmem:[#allocation13 + $0xc4] sm:$0xf]
        %v1761 = vld [vmem:[#allocation13 + $0xc8] sm:$0xf]
        %v1762 = vld [vmem:[#allocation13 + $0xcc] sm:$0xf]
        %v1763 = vld [vmem:[#allocation13 + $0xd0] sm:$0xf]
        %v1764 = vld [vmem:[#allocation13 + $0xd4] sm:$0xf]
        %v1765 = vld [vmem:[#allocation13 + $0xd8] sm:$0xf]
        %v1766 = vld [vmem:[#allocation13 + $0xdc] sm:$0xf]
        %v1767 = vld [vmem:[#allocation13 + $0xe0] sm:$0xf]
        %v1768 = vld [vmem:[#allocation13 + $0xe4] sm:$0xf]
        %v1769 = vld [vmem:[#allocation13 + $0xe8] sm:$0xf]
        %v1770 = vld [vmem:[#allocation13 + $0xec] sm:$0xf]
        %v1771 = vld [vmem:[#allocation13 + $0xf0] sm:$0xf]
        %v1772 = vld [vmem:[#allocation13 + $0xf4] sm:$0xf]
        %v1773 = vld [vmem:[#allocation13 + $0xf8] sm:$0xf]
        %v1774 = vld [vmem:[#allocation13 + $0xfc] sm:$0xf]
        %v1775 = vld [vmem:[%s13] sm:$0x1]
        %v1777 = vlaneseq
        %v1778 = vshrl.u32 %v1777, 7
        %v1779 = vsub.s32 0, %v1778
        %v1780 = vrot.slane %v1775, %v1779
        %v1846 = vunpack.c.l.b16 %v1711
        %v1847 = vunpack.c.l.b16 %v1712
        %v1848 = vunpack.c.l.b16 %v1713
        %v1849 = vunpack.c.l.b16 %v1714
        %v1850 = vunpack.c.l.b16 %v1715
        %v1851 = vunpack.c.l.b16 %v1716
        %v1852 = vunpack.c.l.b16 %v1717
        %v1853 = vunpack.c.l.b16 %v1718
        %v1854 = vunpack.c.l.b16 %v1719
        %v1855 = vunpack.c.l.b16 %v1720
        %v1856 = vunpack.c.l.b16 %v1721
        %v1857 = vunpack.c.l.b16 %v1722
        %v1858 = vunpack.c.l.b16 %v1723
        %v1859 = vunpack.c.l.b16 %v1724
        %v1860 = vunpack.c.l.b16 %v1725
        %v1861 = vunpack.c.l.b16 %v1726
        %v1862 = vunpack.c.l.b16 %v1727
        %v1863 = vunpack.c.l.b16 %v1728
        %v1864 = vunpack.c.l.b16 %v1729
        %v1865 = vunpack.c.l.b16 %v1730
        %v1866 = vunpack.c.l.b16 %v1731
        %v1867 = vunpack.c.l.b16 %v1732
        %v1868 = vunpack.c.l.b16 %v1733
        %v1869 = vunpack.c.l.b16 %v1734
        %v1870 = vunpack.c.l.b16 %v1735
        %v1871 = vunpack.c.l.b16 %v1736
        %v1872 = vunpack.c.l.b16 %v1737
        %v1873 = vunpack.c.l.b16 %v1738
        %v1874 = vunpack.c.l.b16 %v1739
        %v1875 = vunpack.c.l.b16 %v1740
        %v1876 = vunpack.c.l.b16 %v1741
        %v1877 = vunpack.c.l.b16 %v1742
        %v1878 = vunpack.c.l.b16 %v1743
        %v1879 = vunpack.c.l.b16 %v1744
        %v1880 = vunpack.c.l.b16 %v1745
        %v1881 = vunpack.c.l.b16 %v1746
        %v1882 = vunpack.c.l.b16 %v1747
        %v1883 = vunpack.c.l.b16 %v1748
        %v1884 = vunpack.c.l.b16 %v1749
        %v1885 = vunpack.c.l.b16 %v1750
        %v1886 = vunpack.c.l.b16 %v1751
        %v1887 = vunpack.c.l.b16 %v1752
        %v1888 = vunpack.c.l.b16 %v1753
        %v1889 = vunpack.c.l.b16 %v1754
        %v1890 = vunpack.c.l.b16 %v1755
        %v1891 = vunpack.c.l.b16 %v1756
        %v1892 = vunpack.c.l.b16 %v1757
        %v1893 = vunpack.c.l.b16 %v1758
        %v1894 = vunpack.c.l.b16 %v1759
        %v1895 = vunpack.c.l.b16 %v1760
        %v1896 = vunpack.c.l.b16 %v1761
        %v1897 = vunpack.c.l.b16 %v1762
        %v1898 = vunpack.c.l.b16 %v1763
        %v1899 = vunpack.c.l.b16 %v1764
        %v1900 = vunpack.c.l.b16 %v1765
        %v1901 = vunpack.c.l.b16 %v1766
        %v1902 = vunpack.c.l.b16 %v1767
        %v1903 = vunpack.c.l.b16 %v1768
        %v1904 = vunpack.c.l.b16 %v1769
        %v1905 = vunpack.c.l.b16 %v1770
        %v1906 = vunpack.c.l.b16 %v1771
        %v1907 = vunpack.c.l.b16 %v1772
        %v1908 = vunpack.c.l.b16 %v1773
        %v1909 = vunpack.c.l.b16 %v1774
        %v1910 = vpack.c.b16 %v1847, %v1846
        %v1911 = vpack.c.b16 %v1849, %v1848
        %v1912 = vpack.c.b16 %v1851, %v1850
        %v1913 = vpack.c.b16 %v1853, %v1852
        %v1914 = vpack.c.b16 %v1855, %v1854
        %v1915 = vpack.c.b16 %v1857, %v1856
        %v1916 = vpack.c.b16 %v1859, %v1858
        %v1917 = vpack.c.b16 %v1861, %v1860
        %v1918 = vpack.c.b16 %v1863, %v1862
        %v1919 = vpack.c.b16 %v1865, %v1864
        %v1920 = vpack.c.b16 %v1867, %v1866
        %v1921 = vpack.c.b16 %v1869, %v1868
        %v1922 = vpack.c.b16 %v1871, %v1870
        %v1923 = vpack.c.b16 %v1873, %v1872
        %v1924 = vpack.c.b16 %v1875, %v1874
        %v1925 = vpack.c.b16 %v1877, %v1876
        %v1926 = vpack.c.b16 %v1879, %v1878
        %v1927 = vpack.c.b16 %v1881, %v1880
        %v1928 = vpack.c.b16 %v1883, %v1882
        %v1929 = vpack.c.b16 %v1885, %v1884
        %v1930 = vpack.c.b16 %v1887, %v1886
        %v1931 = vpack.c.b16 %v1889, %v1888
        %v1932 = vpack.c.b16 %v1891, %v1890
        %v1933 = vpack.c.b16 %v1893, %v1892
        %v1934 = vpack.c.b16 %v1895, %v1894
        %v1935 = vpack.c.b16 %v1897, %v1896
        %v1936 = vpack.c.b16 %v1899, %v1898
        %v1937 = vpack.c.b16 %v1901, %v1900
        %v1938 = vpack.c.b16 %v1903, %v1902
        %v1939 = vpack.c.b16 %v1905, %v1904
        %v1940 = vpack.c.b16 %v1907, %v1906
        %v1941 = vpack.c.b16 %v1909, %v1908
        %1974 = vmatprep.subr.bf16.mxu0 0
        %1975 = vmatpush1.bf16.msra.mxu0 %v1910
        %1976 = vmatprep.subr.bf16.mxu0 0
        %1977 = vmatpush1.bf16.msra.mxu0 %v1911
        %1978 = vmatprep.subr.bf16.mxu0 0
        %1979 = vmatpush1.bf16.msra.mxu0 %v1912
        %1980 = vmatprep.subr.bf16.mxu0 0
        %1981 = vmatpush1.bf16.msra.mxu0 %v1913
        %1982 = vmatprep.subr.bf16.mxu0 0
        %1983 = vmatpush1.bf16.msra.mxu0 %v1914
        %1984 = vmatprep.subr.bf16.mxu0 0
        %1985 = vmatpush1.bf16.msra.mxu0 %v1915
        %1986 = vmatprep.subr.bf16.mxu0 0
        %1987 = vmatpush1.bf16.msra.mxu0 %v1916
        %1988 = vmatprep.subr.bf16.mxu0 0
        %1989 = vmatpush1.bf16.msra.mxu0 %v1917
        %1990 = vmatprep.subr.bf16.mxu0 0
        %1991 = vmatpush1.bf16.msra.mxu0 %v1918
        %1992 = vmatprep.subr.bf16.mxu0 0
        %1993 = vmatpush1.bf16.msra.mxu0 %v1919
        %1994 = vmatprep.subr.bf16.mxu0 0
        %1995 = vmatpush1.bf16.msra.mxu0 %v1920
        %1996 = vmatprep.subr.bf16.mxu0 0
        %1997 = vmatpush1.bf16.msra.mxu0 %v1921
        %1998 = vmatprep.subr.bf16.mxu0 0
        %1999 = vmatpush1.bf16.msra.mxu0 %v1922
        %2000 = vmatprep.subr.bf16.mxu0 0
        %2001 = vmatpush1.bf16.msra.mxu0 %v1923
        %2002 = vmatprep.subr.bf16.mxu0 0
        %2003 = vmatpush1.bf16.msra.mxu0 %v1924
        %2004 = vmatprep.subr.bf16.mxu0 0
        %2005 = vmatpush1.bf16.msra.mxu0 %v1925
        %2006 = vmatprep.mubr.bf16.mxu0 %v1708
        %2007 = vmatmul.mubr.bf16.gmra.mrb[0].mxu0 %v1707
        %v2008 = vpop.f32.mrb[0].mxu0
        %v2009 = vadd.f32 %v1780, %v2008
        %v2010 = vpop.f32.mrb[0].mxu0
        %v2011 = vpop.f32.mrb[0].mxu0
        %v2012 = vpop.f32.mrb[0].mxu0
        %2013 = vdwg.mxu0
        %2014 = vmatprep.subr.bf16.mxu0 0
        %2015 = vmatpush1.bf16.msra.mxu0 %v1926
        %2016 = vmatprep.subr.bf16.mxu0 0
        %2017 = vmatpush1.bf16.msra.mxu0 %v1927
        %2018 = vmatprep.subr.bf16.mxu0 0
        %2019 = vmatpush1.bf16.msra.mxu0 %v1928
        %2020 = vmatprep.subr.bf16.mxu0 0
        %2021 = vmatpush1.bf16.msra.mxu0 %v1929
        %2022 = vmatprep.subr.bf16.mxu0 0
        %2023 = vmatpush1.bf16.msra.mxu0 %v1930
        %2024 = vmatprep.subr.bf16.mxu0 0
        %2025 = vmatpush1.bf16.msra.mxu0 %v1931
        %2026 = vmatprep.subr.bf16.mxu0 0
        %2027 = vmatpush1.bf16.msra.mxu0 %v1932
        %2028 = vmatprep.subr.bf16.mxu0 0
        %2029 = vmatpush1.bf16.msra.mxu0 %v1933
        %2030 = vmatprep.subr.bf16.mxu0 0
        %2031 = vmatpush1.bf16.msra.mxu0 %v1934
        %2032 = vmatprep.subr.bf16.mxu0 0
        %2033 = vmatpush1.bf16.msra.mxu0 %v1935
        %2034 = vmatprep.subr.bf16.mxu0 0
        %2035 = vmatpush1.bf16.msra.mxu0 %v1936
        %2036 = vmatprep.subr.bf16.mxu0 0
        %2037 = vmatpush1.bf16.msra.mxu0 %v1937
        %2038 = vmatprep.subr.bf16.mxu0 0
        %2039 = vmatpush1.bf16.msra.mxu0 %v1938
        %2040 = vmatprep.subr.bf16.mxu0 0
        %2041 = vmatpush1.bf16.msra.mxu0 %v1939
        %2042 = vmatprep.subr.bf16.mxu0 0
        %2043 = vmatpush1.bf16.msra.mxu0 %v1940
        %2044 = vmatprep.subr.bf16.mxu0 0
        %2045 = vmatpush1.bf16.msra.mxu0 %v1941
        %2046 = vmatprep.mubr.bf16.mxu0 %v1710
        %2047 = vmatmul.mubr.bf16.gmra.mrb[0].mxu0 %v1709
        %v2048 = vpop.f32.mrb[0].mxu0
        %v2049 = vadd.f32 %v2009, %v2048
        %v2050 = vpop.f32.mrb[0].mxu0
        %v2051 = vpop.f32.mrb[0].mxu0
        %v2052 = vpop.f32.mrb[0].mxu0
        %2053 = vdwg.mxu0
        %v2054 = vadd.f32 %v1389, %v2049
        %2055 = vadd.xlane.f32.xlu0 %v2054
        %v2056 = vpop.xlane.xlu0 %2055
        %v2057 = vmul.f32 %v2056, %v1366
        %v2058 = vsub.f32 %v2054, %v2057
        %v2059 = vmul.f32 %v2058, %v2058
        %2060 = vadd.xlane.f32.xlu0 %v2059
        %v2061 = vpop.xlane.xlu0 %2060
        %v2062 = vmul.f32 %v2061, %v1366
        %v2063 = vadd.f32 %v2062, 1e-05
        %v2064 = vrsqrt.pop %v2063
        %v2065 = vmul.f32 %v2058, %v2064
        %v2066 = vmul.f32 %v2065, %v1380
        %v2067 = vadd.f32 %v2066, %v1387
        %2068 = vst [vmem:[%s591] sm:$0xff] %v2067
        %s2069 = sand.u32 %s366, 1
        %s2070 = scalar_lea.sflag [#allocation7], %s2069
        %s2071 = sand.u32 %s366, 1
        %s2072 = smul.addr %s2071, 8
        %s2073 = scalar_lea.vmem [#allocation14], %s2072
        // Predicated region
        $region101: #{tpu_custom_call.1} parent=75 // pred_check
          %p2074 = pneg %p376
        $region102: #{tpu_custom_call.1} parent=75 // pred_check_branch
          %2076 = sbr.rel (%p2074) target = $region104
        $region103: #{tpu_custom_call.1} parent=75 // pred_region
          %s2078 = ssub.s32 128, 128
          %2079 = vsyncadd %s2070, %s2078
          %s2080 = smul.addr %s37, 3
          %s2081 = sadd.s32 %s38, %s2080
          %s2082 = smul.addr %s2081, 128
          %s2083 = scalar_lea.hbm %s14, %s2082
          %s2085 = sshll.u32 %s2073, 4
          %s2086 = int_to_ptr.vmem [resolvable:$true] %s2085
          %2088 = dma.vmem_to_hbm [thread:$0]  %s2086, 128, %s2083, %s2070
        $region104: #{tpu_custom_call.1} parent=75 // pred_fallthru
          _
      $region76: #{tpu_custom_call.1} parent=5 // pred_fallthru
        _
      %p2089 = scmp.le.s32.totalorder 2, %s28
      // Predicated region
      $region105: #{tpu_custom_call.1} parent=5 // pred_check
        %p2090 = pneg %p2089
      $region106: #{tpu_custom_call.1} parent=5 // pred_check_branch
        %2092 = sbr.rel (%p2090) target = $region108
      $region107: #{tpu_custom_call.1} parent=5 // pred_region
        %s2093 = ssub.s32 %s28, 2
        // Predicated region
        $region109: #{tpu_custom_call.1} parent=107 // pred_check
          %p2094 = pneg %p382
        $region110: #{tpu_custom_call.1} parent=107 // pred_check_branch
          %2096 = sbr.rel (%p2094) target = $region112
        $region111: #{tpu_custom_call.1} parent=107 // pred_region
          %s2097 = sand.u32 %s367, 1
          %s2098 = scalar_lea.sflag [#allocation7], %s2097
          %s2099 = sand.u32 %s367, 1
          %s2100 = smul.addr %s2099, 8
          %s2101 = scalar_lea.vmem [#allocation14], %s2100
          %2102 = dma.done %s2098, 128
        $region112: #{tpu_custom_call.1} parent=107 // pred_fallthru
          _
      $region108: #{tpu_custom_call.1} parent=5 // pred_fallthru
        _
    $region6: #{tpu_custom_call.1} parent=1 // loop_footer
      %s32 = sadd.s32 1, %s28
    $region7: #{tpu_custom_call.1} parent=1 // loop_footer_branch
      %27 = sbr.rel target = $region3
    $region8: #{tpu_custom_call.1} parent=1 // loop_exit
      _
    %2103 = vsyncpa [#allocation6], 1
    %s2104 = scalar_lea.sflag [#allocation6], 1
    %2105 = vsyncpa %s2104, 1
    %2106 = vsyncpa [#allocation9], 1
    %2107 = vsyncpa [#allocation12], 1
    %2108 = vsyncpa [#allocation7], 1
    %s2109 = scalar_lea.sflag [#allocation7], 1
    %2110 = vsyncpa %s2109, 1

// kernel: tpu_custom_call.1
$region0: #{tpu_custom_call.1}
  #allocation0 [shape = 'u32[]', space=smem, size = 0x4, offset = 0x4, fixed_abs, tag = 'smem constant byte address 0x4 - core index']
  #allocation1 [shape = 'u32[144,128]{1,0:T(1,128)}', space=vmem, size = 0x12000, scoped, tag = 'internal scratch']
  #allocation2 [shape = 'bf16[128,24]{1,0:T(16,128)(2,1)}', space=vmem, size = 0x8000, scoped, tag = 'scratch operand']
  #allocation3 [shape = 'bf16[24,128]{1,0:T(8,128)(2,1)}', space=vmem, size = 0x1800, scoped, tag = 'scratch operand']
  #allocation4 [shape = 'bf16[8,128]{1,0:T(8,128)(2,1)}', space=vmem, size = 0x800, scoped, tag = 'scratch operand']
  %s0 = inlined_call_operand.vmem [shape: f32[2,1,24], index: 0, kind: input, shape index: {}]
  %s1 = inlined_call_operand.vmem [shape: f32[2,24,1], index: 1, kind: input, shape index: {}]
  %s2 = inlined_call_operand.hbm [shape: bf16[2,24,128], index: 2, kind: input, shape index: {}]
  %s3 = inlined_call_operand.hbm [shape: bf16[128,128], index: 3, kind: input, shape index: {}]
  %s4 = inlined_call_operand.vmem [shape: f32[1,128], index: 4, kind: input, shape index: {}]
  %s5 = inlined_call_operand.hbm [shape: bf16[128,256], index: 5, kind: input, shape index: {}]
  %s6 = inlined_call_operand.vmem [shape: f32[1,256], index: 6, kind: input, shape index: {}]
  %s7 = inlined_call_operand.vmem [shape: bf16[128,128], index: 7, kind: input, shape index: {}]
  %s8 = inlined_call_operand.vmem [shape: f32[1,128], index: 8, kind: input, shape index: {}]
  %s9 = inlined_call_operand.vmem [shape: f32[1,128], index: 9, kind: input, shape index: {}]
  %s10 = inlined_call_operand.hbm [shape: bf16[128,512], index: 10, kind: input, shape index: {}]
  %s11 = inlined_call_operand.vmem [shape: f32[1,512], index: 11, kind: input, shape index: {}]
  %s12 = inlined_call_operand.hbm [shape: bf16[512,128], index: 12, kind: input, shape index: {}]
  %s13 = inlined_call_operand.vmem [shape: f32[1,128], index: 13, kind: input, shape index: {}]
  %s14 = inlined_call_operand.hbm [shape: f32[2,24,128], index: 14, kind: output, shape index: {}]
  %s15 = sld [smem:[#allocation0]]
  $region113: #{tpu_custom_call.1} parent=0
    _
  %s17 = ssub.s32 1, %s15
  %s18 = scalar_select 0, %s17, %s15
  $region1: #{tpu_custom_call.1} parent=0
    #allocation5 [shape = 'u8[12288]{0}', space=vmem, size = 0x3000, scoped, tag = 'input window, operand 2']
    #allocation6 [shape = 's32[2]{0}', space=sflag, size = 0x8, scoped, tag = 'scoped memory for tpu_custom_call.1']
    #allocation7 [shape = 's32[2]{0}', space=sflag, size = 0x8, scoped, tag = 'scoped memory for tpu_custom_call.1']
    #allocation8 [shape = 'u8[32768]{0}', space=vmem, size = 0x8000, scoped, tag = 'input window, operand 3, single buffered']
    #allocation9 [shape = 's32[1]{0}', space=sflag, size = 0x4, scoped, tag = 'scoped memory for tpu_custom_call.1']
    #allocation10 [shape = 'u8[65536]{0}', space=vmem, size = 0x10000, scoped, tag = 'input window, operand 5, single buffered']
    #allocation11 [shape = 'u8[131072]{0}', space=vmem, size = 0x20000, scoped, tag = 'input window, operand 10, single buffered']
    #allocation12 [shape = 's32[1]{0}', space=sflag, size = 0x4, scoped, tag = 'scoped memory for tpu_custom_call.1']
    #allocation13 [shape = 'u8[131072]{0}', space=vmem, size = 0x20000, scoped, tag = 'input window, operand 12, single buffered']
    #allocation14 [shape = 'u8[8192]{0}', space=vmem, size = 0x2000, scoped, tag = 'output window, operand 0']
    %19 = vsyncpa [#allocation6], 0
    %s20 = scalar_lea.sflag [#allocation6], 1
    %21 = vsyncpa %s20, 0
    %22 = vsyncpa [#allocation9], 0
    %23 = vsyncpa [#allocation12], 0
    %24 = vsyncpa [#allocation7], 0
    %s25 = scalar_lea.sflag [#allocation7], 1
    %26 = vsyncpa %s25, 0
    loop: start=0, step=1, limit=8
    $region2: #{tpu_custom_call.1} parent=1 // loop_pre_header
      _
    $region3: #{tpu_custom_call.1} parent=1 // loop_header
      %s28 = sphi 0, %s32
      %p29 = scmp.ge.s32.totalorder %s28, 8
      %s35 = sphi 0, %s47
      %s36 = sphi 0, %s43
      %s37 = sphi 0, %s35
      %s38 = sphi 0, %s36
      %s39 = sphi 0, %s37
      %s40 = sphi 0, %s38
      %s50 = sphi 0, %s52
      %s53 = sphi 0, %s50
      %s54 = sphi 0, %s53
      %s70 = sphi 0, %s54
      %s78 = sphi 0, %s80
      %s81 = sphi 0, %s78
      %s82 = sphi 0, %s81
      %s98 = sphi 0, %s82
      %s104 = sphi 0, %s106
      %s107 = sphi 0, %s104
      %s108 = sphi 0, %s107
      %s124 = sphi 0, %s108
      %s128 = sphi 0, %s128
      %s130 = sphi 0, %s128
      %s131 = sphi 0, %s130
      %s145 = sphi 0, %s131
      %s149 = sphi 0, %s149
      %s151 = sphi 0, %s149
      %s152 = sphi 0, %s151
      %s166 = sphi 0, %s152
      %s170 = sphi 0, %s170
      %s172 = sphi 0, %s170
      %s173 = sphi 0, %s172
      %s187 = sphi 0, %s173
      %s191 = sphi 0, %s191
      %s193 = sphi 0, %s191
      %s194 = sphi 0, %s193
      %s208 = sphi 0, %s194
      %s212 = sphi 0, %s212
      %s214 = sphi 0, %s212
      %s215 = sphi 0, %s214
      %s229 = sphi 0, %s215
      %s233 = sphi 0, %s233
      %s235 = sphi 0, %s233
      %s236 = sphi 0, %s235
      %s250 = sphi 0, %s236
      %s254 = sphi 0, %s254
      %s256 = sphi 0, %s254
      %s257 = sphi 0, %s256
      %s271 = sphi 0, %s257
      %s275 = sphi 0, %s275
      %s277 = sphi 0, %s275
      %s278 = sphi 0, %s277
      %s292 = sphi 0, %s278
      %s296 = sphi 0, %s296
      %s298 = sphi 0, %s296
      %s299 = sphi 0, %s298
      %s313 = sphi 0, %s299
      %s317 = sphi 0, %s317
      %s319 = sphi 0, %s317
      %s320 = sphi 0, %s319
      %s334 = sphi 0, %s320
      %s338 = sphi 0, %s338
      %s340 = sphi 0, %s338
      %s341 = sphi 0, %s340
      %s355 = sphi 0, %s341
      %s363 = sphi 0, %s365
      %s366 = sphi 0, %s363
      %s367 = sphi 0, %s366
      %s383 = sphi 0, %s367
    $region4: #{tpu_custom_call.1} parent=1 // loop_header_branch
      %31 = sbr.rel (%p29) target = $region8
    $region5: #{tpu_custom_call.1} parent=1 // loop_body
      %s33 = ssub.s32 %s28, 1
      %s34 = ssub.s32 %s28, 2
      %s41 = sadd.s32 1, %s36
      %p42 = scmp.ge.s32.totalorder %s41, 3
      %s43 = scalar_select %p42, 0, %s41
      %s44 = sadd.s32 1, %s35
      %s45 = scalar_select %p42, %s44, %s35
      %p46 = scmp.ge.s32.totalorder %s45, 2
      %s47 = scalar_select %p46, 0, %s45
      %s48 = ssub.s32 %s35, %s47
      %p49 = scmp.eq.s32.totalorder %s48, 0
      %s51 = sadd.s32 %s50, 1
      %s52 = scalar_select %p49, %s50, %s51
      %p55 = pneg %p49
      %p56 = scmp.eq.s32.totalorder %s28, 5
      %p57 = por %p55, %p56
      %p58 = scmp.ne.s32.totalorder %s50, %s53
      %p59 = scmp.eq.s32.totalorder %s28, 0
      %p60 = por %p58, %p59
      %p61 = scmp.ne.s32.totalorder %s50, %s53
      %p62 = scmp.eq.s32.totalorder %s33, 5
      %p63 = por %p61, %p62
      %p64 = scmp.ne.s32.totalorder %s53, %s54
      %p65 = scmp.eq.s32.totalorder %s33, 0
      %p66 = por %p64, %p65
      %p67 = scmp.ne.s32.totalorder %s53, %s54
      %p68 = scmp.eq.s32.totalorder %s34, 5
      %p69 = por %p67, %p68
      %p71 = scmp.ne.s32.totalorder %s54, %s70
      %p72 = scmp.eq.s32.totalorder %s34, 0
      %p73 = por %p71, %p72
      %s74 = ssub.s32 %s35, %s47
      %s75 = ssub.s32 %s36, %s43
      %s76 = sor.u32 %s74, %s75
      %p77 = scmp.eq.s32.totalorder %s76, 0
      %s79 = sadd.s32 %s78, 1
      %s80 = scalar_select %p77, %s78, %s79
      %p83 = pneg %p77
      %p84 = scmp.eq.s32.totalorder %s28, 5
      %p85 = por %p83, %p84
      %p86 = scmp.ne.s32.totalorder %s78, %s81
      %p87 = scmp.eq.s32.totalorder %s28, 0
      %p88 = por %p86, %p87
      %p89 = scmp.ne.s32.totalorder %s78, %s81
      %p90 = scmp.eq.s32.totalorder %s33, 5
      %p91 = por %p89, %p90
      %p92 = scmp.ne.s32.totalorder %s81, %s82
      %p93 = scmp.eq.s32.totalorder %s33, 0
      %p94 = por %p92, %p93
      %p95 = scmp.ne.s32.totalorder %s81, %s82
      %p96 = scmp.eq.s32.totalorder %s34, 5
      %p97 = por %p95, %p96
      %p99 = scmp.ne.s32.totalorder %s82, %s98
      %p100 = scmp.eq.s32.totalorder %s34, 0
      %p101 = por %p99, %p100
      %s102 = ssub.s32 %s35, %s47
      %p103 = scmp.eq.s32.totalorder %s102, 0
      %s105 = sadd.s32 %s104, 1
      %s106 = scalar_select %p103, %s104, %s105
      %p109 = pneg %p103
      %p110 = scmp.eq.s32.totalorder %s28, 5
      %p111 = por %p109, %p110
      %p112 = scmp.ne.s32.totalorder %s104, %s107
      %p113 = scmp.eq.s32.totalorder %s28, 0
      %p114 = por %p112, %p113
      %p115 = scmp.ne.s32.totalorder %s104, %s107
      %p116 = scmp.eq.s32.totalorder %s33, 5
      %p117 = por %p115, %p116
      %p118 = scmp.ne.s32.totalorder %s107, %s108
      %p119 = scmp.eq.s32.totalorder %s33, 0
      %p120 = por %p118, %p119
      %p121 = scmp.ne.s32.totalorder %s107, %s108
      %p122 = scmp.eq.s32.totalorder %s34, 5
      %p123 = por %p121, %p122
      %p125 = scmp.ne.s32.totalorder %s108, %s124
      %p126 = scmp.eq.s32.totalorder %s34, 0
      %p127 = por %p125, %p126
      %s129 = sadd.s32 %s128, 1
      %p132 = scmp.eq.s32.totalorder %s28, 5
      %p133 = scmp.ne.s32.totalorder %s128, %s130
      %p134 = scmp.eq.s32.totalorder %s28, 0
      %p135 = por %p133, %p134
      %p136 = scmp.ne.s32.totalorder %s128, %s130
      %p137 = scmp.eq.s32.totalorder %s33, 5
      %p138 = por %p136, %p137
      %p139 = scmp.ne.s32.totalorder %s130, %s131
      %p140 = scmp.eq.s32.totalorder %s33, 0
      %p141 = por %p139, %p140
      %p142 = scmp.ne.s32.totalorder %s130, %s131
      %p143 = scmp.eq.s32.totalorder %s34, 5
      %p144 = por %p142, %p143
      %p146 = scmp.ne.s32.totalorder %s131, %s145
      %p147 = scmp.eq.s32.totalorder %s34, 0
      %p148 = por %p146, %p147
      %s150 = sadd.s32 %s149, 1
      %p153 = scmp.eq.s32.totalorder %s28, 5
      %p154 = scmp.ne.s32.totalorder %s149, %s151
      %p155 = scmp.eq.s32.totalorder %s28, 0
      %p156 = por %p154, %p155
      %p157 = scmp.ne.s32.totalorder %s149, %s151
      %p158 = scmp.eq.s32.totalorder %s33, 5
      %p159 = por %p157, %p158
      %p160 = scmp.ne.s32.totalorder %s151, %s152
      %p161 = scmp.eq.s32.totalorder %s33, 0
      %p162 = por %p160, %p161
      %p163 = scmp.ne.s32.totalorder %s151, %s152
      %p164 = scmp.eq.s32.totalorder %s34, 5
      %p165 = por %p163, %p164
      %p167 = scmp.ne.s32.totalorder %s152, %s166
      %p168 = scmp.eq.s32.totalorder %s34, 0
      %p169 = por %p167, %p168
      %s171 = sadd.s32 %s170, 1
      %p174 = scmp.eq.s32.totalorder %s28, 5
      %p175 = scmp.ne.s32.totalorder %s170, %s172
      %p176 = scmp.eq.s32.totalorder %s28, 0
      %p177 = por %p175, %p176
      %p178 = scmp.ne.s32.totalorder %s170, %s172
      %p179 = scmp.eq.s32.totalorder %s33, 5
      %p180 = por %p178, %p179
      %p181 = scmp.ne.s32.totalorder %s172, %s173
      %p182 = scmp.eq.s32.totalorder %s33, 0
      %p183 = por %p181, %p182
      %p184 = scmp.ne.s32.totalorder %s172, %s173
      %p185 = scmp.eq.s32.totalorder %s34, 5
      %p186 = por %p184, %p185
      %p188 = scmp.ne.s32.totalorder %s173, %s187
      %p189 = scmp.eq.s32.totalorder %s34, 0
      %p190 = por %p188, %p189
      %s192 = sadd.s32 %s191, 1
      %p195 = scmp.eq.s32.totalorder %s28, 5
      %p196 = scmp.ne.s32.totalorder %s191, %s193
      %p197 = scmp.eq.s32.totalorder %s28, 0
      %p198 = por %p196, %p197
      %p199 = scmp.ne.s32.totalorder %s191, %s193
      %p200 = scmp.eq.s32.totalorder %s33, 5
      %p201 = por %p199, %p200
      %p202 = scmp.ne.s32.totalorder %s193, %s194
      %p203 = scmp.eq.s32.totalorder %s33, 0
      %p204 = por %p202, %p203
      %p205 = scmp.ne.s32.totalorder %s193, %s194
      %p206 = scmp.eq.s32.totalorder %s34, 5
      %p207 = por %p205, %p206
      %p209 = scmp.ne.s32.totalorder %s194, %s208
      %p210 = scmp.eq.s32.totalorder %s34, 0
      %p211 = por %p209, %p210
      %s213 = sadd.s32 %s212, 1
      %p216 = scmp.eq.s32.totalorder %s28, 5
      %p217 = scmp.ne.s32.totalorder %s212, %s214
      %p218 = scmp.eq.s32.totalorder %s28, 0
      %p219 = por %p217, %p218
      %p220 = scmp.ne.s32.totalorder %s212, %s214
      %p221 = scmp.eq.s32.totalorder %s33, 5
      %p222 = por %p220, %p221
      %p223 = scmp.ne.s32.totalorder %s214, %s215
      %p224 = scmp.eq.s32.totalorder %s33, 0
      %p225 = por %p223, %p224
      %p226 = scmp.ne.s32.totalorder %s214, %s215
      %p227 = scmp.eq.s32.totalorder %s34, 5
      %p228 = por %p226, %p227
      %p230 = scmp.ne.s32.totalorder %s215, %s229
      %p231 = scmp.eq.s32.totalorder %s34, 0
      %p232 = por %p230, %p231
      %s234 = sadd.s32 %s233, 1
      %p237 = scmp.eq.s32.totalorder %s28, 5
      %p238 = scmp.ne.s32.totalorder %s233, %s235
      %p239 = scmp.eq.s32.totalorder %s28, 0
      %p240 = por %p238, %p239
      %p241 = scmp.ne.s32.totalorder %s233, %s235
      %p242 = scmp.eq.s32.totalorder %s33, 5
      %p243 = por %p241, %p242
      %p244 = scmp.ne.s32.totalorder %s235, %s236
      %p245 = scmp.eq.s32.totalorder %s33, 0
      %p246 = por %p244, %p245
      %p247 = scmp.ne.s32.totalorder %s235, %s236
      %p248 = scmp.eq.s32.totalorder %s34, 5
      %p249 = por %p247, %p248
      %p251 = scmp.ne.s32.totalorder %s236, %s250
      %p252 = scmp.eq.s32.totalorder %s34, 0
      %p253 = por %p251, %p252
      %s255 = sadd.s32 %s254, 1
      %p258 = scmp.eq.s32.totalorder %s28, 5
      %p259 = scmp.ne.s32.totalorder %s254, %s256
      %p260 = scmp.eq.s32.totalorder %s28, 0
      %p261 = por %p259, %p260
      %p262 = scmp.ne.s32.totalorder %s254, %s256
      %p263 = scmp.eq.s32.totalorder %s33, 5
      %p264 = por %p262, %p263
      %p265 = scmp.ne.s32.totalorder %s256, %s257
      %p266 = scmp.eq.s32.totalorder %s33, 0
      %p267 = por %p265, %p266
      %p268 = scmp.ne.s32.totalorder %s256, %s257
      %p269 = scmp.eq.s32.totalorder %s34, 5
      %p270 = por %p268, %p269
      %p272 = scmp.ne.s32.totalorder %s257, %s271
      %p273 = scmp.eq.s32.totalorder %s34, 0
      %p274 = por %p272, %p273
      %s276 = sadd.s32 %s275, 1
      %p279 = scmp.eq.s32.totalorder %s28, 5
      %p280 = scmp.ne.s32.totalorder %s275, %s277
      %p281 = scmp.eq.s32.totalorder %s28, 0
      %p282 = por %p280, %p281
      %p283 = scmp.ne.s32.totalorder %s275, %s277
      %p284 = scmp.eq.s32.totalorder %s33, 5
      %p285 = por %p283, %p284
      %p286 = scmp.ne.s32.totalorder %s277, %s278
      %p287 = scmp.eq.s32.totalorder %s33, 0
      %p288 = por %p286, %p287
      %p289 = scmp.ne.s32.totalorder %s277, %s278
      %p290 = scmp.eq.s32.totalorder %s34, 5
      %p291 = por %p289, %p290
      %p293 = scmp.ne.s32.totalorder %s278, %s292
      %p294 = scmp.eq.s32.totalorder %s34, 0
      %p295 = por %p293, %p294
      %s297 = sadd.s32 %s296, 1
      %p300 = scmp.eq.s32.totalorder %s28, 5
      %p301 = scmp.ne.s32.totalorder %s296, %s298
      %p302 = scmp.eq.s32.totalorder %s28, 0
      %p303 = por %p301, %p302
      %p304 = scmp.ne.s32.totalorder %s296, %s298
      %p305 = scmp.eq.s32.totalorder %s33, 5
      %p306 = por %p304, %p305
      %p307 = scmp.ne.s32.totalorder %s298, %s299
      %p308 = scmp.eq.s32.totalorder %s33, 0
      %p309 = por %p307, %p308
      %p310 = scmp.ne.s32.totalorder %s298, %s299
      %p311 = scmp.eq.s32.totalorder %s34, 5
      %p312 = por %p310, %p311
      %p314 = scmp.ne.s32.totalorder %s299, %s313
      %p315 = scmp.eq.s32.totalorder %s34, 0
      %p316 = por %p314, %p315
      %s318 = sadd.s32 %s317, 1
      %p321 = scmp.eq.s32.totalorder %s28, 5
      %p322 = scmp.ne.s32.totalorder %s317, %s319
      %p323 = scmp.eq.s32.totalorder %s28, 0
      %p324 = por %p322, %p323
      %p325 = scmp.ne.s32.totalorder %s317, %s319
      %p326 = scmp.eq.s32.totalorder %s33, 5
      %p327 = por %p325, %p326
      %p328 = scmp.ne.s32.totalorder %s319, %s320
      %p329 = scmp.eq.s32.totalorder %s33, 0
      %p330 = por %p328, %p329
      %p331 = scmp.ne.s32.totalorder %s319, %s320
      %p332 = scmp.eq.s32.totalorder %s34, 5
      %p333 = por %p331, %p332
      %p335 = scmp.ne.s32.totalorder %s320, %s334
      %p336 = scmp.eq.s32.totalorder %s34, 0
      %p337 = por %p335, %p336
      %s339 = sadd.s32 %s338, 1
      %p342 = scmp.eq.s32.totalorder %s28, 5
      %p343 = scmp.ne.s32.totalorder %s338, %s340
      %p344 = scmp.eq.s32.totalorder %s28, 0
      %p345 = por %p343, %p344
      %p346 = scmp.ne.s32.totalorder %s338, %s340
      %p347 = scmp.eq.s32.totalorder %s33, 5
      %p348 = por %p346, %p347
      %p349 = scmp.ne.s32.totalorder %s340, %s341
      %p350 = scmp.eq.s32.totalorder %s33, 0
      %p351 = por %p349, %p350
      %p352 = scmp.ne.s32.totalorder %s340, %s341
      %p353 = scmp.eq.s32.totalorder %s34, 5
      %p354 = por %p352, %p353
      %p356 = scmp.ne.s32.totalorder %s341, %s355
      %p357 = scmp.eq.s32.totalorder %s34, 0
      %p358 = por %p356, %p357
      %s359 = ssub.s32 %s35, %s47
      %s360 = ssub.s32 %s36, %s43
      %s361 = sor.u32 %s359, %s360
      %p362 = scmp.eq.s32.totalorder %s361, 0
      %s364 = sadd.s32 %s363, 1
      %s365 = scalar_select %p362, %s363, %s364
      %p368 = pneg %p362
      %p369 = scmp.eq.s32.totalorder %s28, 5
      %p370 = por %p368, %p369
      %p371 = scmp.ne.s32.totalorder %s363, %s366
      %p372 = scmp.eq.s32.totalorder %s28, 0
      %p373 = por %p371, %p372
      %p374 = scmp.ne.s32.totalorder %s363, %s366
      %p375 = scmp.eq.s32.totalorder %s33, 5
      %p376 = por %p374, %p375
      %p377 = scmp.ne.s32.totalorder %s366, %s367
      %p378 = scmp.eq.s32.totalorder %s33, 0
      %p379 = por %p377, %p378
      %p380 = scmp.ne.s32.totalorder %s366, %s367
      %p381 = scmp.eq.s32.totalorder %s34, 5
      %p382 = por %p380, %p381
      %p384 = scmp.ne.s32.totalorder %s367, %s383
      %p385 = scmp.eq.s32.totalorder %s34, 0
      %p386 = por %p384, %p385
      %p387 = scmp.le.s32.totalorder 1, %s28
      %p388 = scmp.lt.s32.totalorder %s28, 7
      %p389 = pnand %p387, %p388
      %p390 = pneg %p389
      // Predicated region
      $region9: #{tpu_custom_call.1} parent=5 // pred_check
        _
      $region10: #{tpu_custom_call.1} parent=5 // pred_check_branch
        %392 = sbr.rel (%p389) target = $region12
      $region11: #{tpu_custom_call.1} parent=5 // pred_region
        %s393 = ssub.s32 %s28, 1
        // Predicated region
        $region13: #{tpu_custom_call.1} parent=11 // pred_check
          %p394 = pneg %p141
        $region14: #{tpu_custom_call.1} parent=11 // pred_check_branch
          %396 = sbr.rel (%p394) target = $region16
        $region15: #{tpu_custom_call.1} parent=11 // pred_region
          %s398 = ssub.s32 1024, 1024
          %399 = vsyncadd [#allocation9], %s398
          %s400 = sshll.u32 [#allocation8], 4
          %s401 = int_to_ptr.vmem [resolvable:$true] %s400
          %406 = dma.hbm_to_vmem [thread:$0]  %s3, 1024, %s401, [#allocation9], 64, 64, 4
        $region16: #{tpu_custom_call.1} parent=11 // pred_fallthru
          _
        // Predicated region
        $region17: #{tpu_custom_call.1} parent=11 // pred_check
          %p407 = pneg %p162
        $region18: #{tpu_custom_call.1} parent=11 // pred_check_branch
          %409 = sbr.rel (%p407) target = $region20
        $region19: #{tpu_custom_call.1} parent=11 // pred_region
          _
        $region20: #{tpu_custom_call.1} parent=11 // pred_fallthru
          _
        // Predicated region
        $region21: #{tpu_custom_call.1} parent=11 // pred_check
          %p410 = pneg %p183
        $region22: #{tpu_custom_call.1} parent=11 // pred_check_branch
          %412 = sbr.rel (%p410) target = $region24
        $region23: #{tpu_custom_call.1} parent=11 // pred_region
          %s414 = ssub.s32 2048, 2048
          %415 = vsyncadd [#allocation9], %s414
          %s416 = sshll.u32 [#allocation10], 4
          %s417 = int_to_ptr.vmem [resolvable:$true] %s416
          %422 = dma.hbm_to_vmem [thread:$0]  %s5, 2048, %s417, [#allocation9], 128, 128, 8
        $region24: #{tpu_custom_call.1} parent=11 // pred_fallthru
          _
        // Predicated region
        $region25: #{tpu_custom_call.1} parent=11 // pred_check
          %p423 = pneg %p204
        $region26: #{tpu_custom_call.1} parent=11 // pred_check_branch
          %425 = sbr.rel (%p423) target = $region28
        $region27: #{tpu_custom_call.1} parent=11 // pred_region
          _
        $region28: #{tpu_custom_call.1} parent=11 // pred_fallthru
          _
        // Predicated region
        $region29: #{tpu_custom_call.1} parent=11 // pred_check
          %p426 = pneg %p225
        $region30: #{tpu_custom_call.1} parent=11 // pred_check_branch
          %428 = sbr.rel (%p426) target = $region32
        $region31: #{tpu_custom_call.1} parent=11 // pred_region
          _
        $region32: #{tpu_custom_call.1} parent=11 // pred_fallthru
          _
        // Predicated region
        $region33: #{tpu_custom_call.1} parent=11 // pred_check
          %p429 = pneg %p246
        $region34: #{tpu_custom_call.1} parent=11 // pred_check_branch
          %431 = sbr.rel (%p429) target = $region36
        $region35: #{tpu_custom_call.1} parent=11 // pred_region
          _
        $region36: #{tpu_custom_call.1} parent=11 // pred_fallthru
          _
        // Predicated region
        $region37: #{tpu_custom_call.1} parent=11 // pred_check
          %p432 = pneg %p267
        $region38: #{tpu_custom_call.1} parent=11 // pred_check_branch
          %434 = sbr.rel (%p432) target = $region40
        $region39: #{tpu_custom_call.1} parent=11 // pred_region
          _
        $region40: #{tpu_custom_call.1} parent=11 // pred_fallthru
          _
        // Predicated region
        $region41: #{tpu_custom_call.1} parent=11 // pred_check
          %p435 = pneg %p288
        $region42: #{tpu_custom_call.1} parent=11 // pred_check_branch
          %437 = sbr.rel (%p435) target = $region44
        $region43: #{tpu_custom_call.1} parent=11 // pred_region
          %s439 = ssub.s32 4096, 4096
          %440 = vsyncadd [#allocation12], %s439
          %s441 = sshll.u32 [#allocation11], 4
          %s442 = int_to_ptr.vmem [resolvable:$true] %s441
          %447 = dma.hbm_to_vmem [thread:$0]  %s10, 4096, %s442, [#allocation12], 256, 256, 16
        $region44: #{tpu_custom_call.1} parent=11 // pred_fallthru
          _
        // Predicated region
        $region45: #{tpu_custom_call.1} parent=11 // pred_check
          %p448 = pneg %p309
        $region46: #{tpu_custom_call.1} parent=11 // pred_check_branch
          %450 = sbr.rel (%p448) target = $region48
        $region47: #{tpu_custom_call.1} parent=11 // pred_region
          _
        $region48: #{tpu_custom_call.1} parent=11 // pred_fallthru
          _
        // Predicated region
        $region49: #{tpu_custom_call.1} parent=11 // pred_check
          %p451 = pneg %p330
        $region50: #{tpu_custom_call.1} parent=11 // pred_check_branch
          %453 = sbr.rel (%p451) target = $region52
        $region51: #{tpu_custom_call.1} parent=11 // pred_region
          %s455 = ssub.s32 4096, 4096
          %456 = vsyncadd [#allocation12], %s455
          %s457 = sshll.u32 [#allocation13], 4
          %s458 = int_to_ptr.vmem [resolvable:$true] %s457
          %463 = dma.hbm_to_vmem [thread:$0]  %s12, 4096, %s458, [#allocation12], 64, 64, 4
        $region52: #{tpu_custom_call.1} parent=11 // pred_fallthru
          _
        // Predicated region
        $region53: #{tpu_custom_call.1} parent=11 // pred_check
          %p464 = pneg %p351
        $region54: #{tpu_custom_call.1} parent=11 // pred_check_branch
          %466 = sbr.rel (%p464) target = $region56
        $region55: #{tpu_custom_call.1} parent=11 // pred_region
          _
        $region56: #{tpu_custom_call.1} parent=11 // pred_fallthru
          _
      $region12: #{tpu_custom_call.1} parent=5 // pred_fallthru
        _
      %p467 = scmp.lt.s32.totalorder %s28, 6
      // Predicated region
      $region57: #{tpu_custom_call.1} parent=5 // pred_check
        %p468 = pneg %p467
      $region58: #{tpu_custom_call.1} parent=5 // pred_check_branch
        %470 = sbr.rel (%p468) target = $region60
      $region59: #{tpu_custom_call.1} parent=5 // pred_region
        // Predicated region
        $region61: #{tpu_custom_call.1} parent=59 // pred_check
          %p471 = pneg %p60
        $region62: #{tpu_custom_call.1} parent=59 // pred_check_branch
          %473 = sbr.rel (%p471) target = $region64
        $region63: #{tpu_custom_call.1} parent=59 // pred_region
          %p474 = scmp.lt.s32.totalorder %s35, 1
          %s475 = scalar_select %p474, %s35, 1
          %s476 = scalar_lea.vmem %s0, %s475
        $region64: #{tpu_custom_call.1} parent=59 // pred_fallthru
          _
        // Predicated region
        $region65: #{tpu_custom_call.1} parent=59 // pred_check
          %p477 = pneg %p88
        $region66: #{tpu_custom_call.1} parent=59 // pred_check_branch
          %479 = sbr.rel (%p477) target = $region68
        $region67: #{tpu_custom_call.1} parent=59 // pred_region
          %p480 = scmp.lt.s32.totalorder %s35, 1
          %s481 = scalar_select %p480, %s35, 1
          %p482 = scmp.lt.s32.totalorder %s36, 2
          %s483 = scalar_select %p482, %s36, 2
          %s484 = smul.addr %s481, 3
          %s485 = sadd.s32 %s483, %s484
          %s486 = smul.addr %s485, 8
          %s487 = scalar_lea.vmem %s1, %s486
        $region68: #{tpu_custom_call.1} parent=59 // pred_fallthru
          _
        // Predicated region
        $region69: #{tpu_custom_call.1} parent=59 // pred_check
          %p488 = pneg %p114
        $region70: #{tpu_custom_call.1} parent=59 // pred_check_branch
          %490 = sbr.rel (%p488) target = $region72
        $region71: #{tpu_custom_call.1} parent=59 // pred_region
          %s491 = sand.u32 %s104, 1
          %s492 = scalar_lea.sflag [#allocation6], %s491
          %s493 = sand.u32 %s104, 1
          %s494 = smul.addr %s493, 12
          %s495 = scalar_lea.vmem [#allocation5], %s494
          %s497 = ssub.s32 192, 192
          %498 = vsyncadd %s492, %s497
          %s499 = smul.addr %s35, 3
          %s500 = smul.addr %s499, 64
          %s501 = scalar_lea.hbm %s2, %s500
          %s502 = sshll.u32 %s495, 4
          %s503 = int_to_ptr.vmem [resolvable:$true] %s502
          %508 = dma.hbm_to_vmem [thread:$0]  %s501, 192, %s503, %s492, 64, 64, 4
        $region72: #{tpu_custom_call.1} parent=59 // pred_fallthru
          _
      $region60: #{tpu_custom_call.1} parent=5 // pred_fallthru
        _
      %p509 = scmp.le.s32.totalorder 1, %s28
      %p510 = scmp.lt.s32.totalorder %s28, 7
      %p511 = pnand %p509, %p510
      %p512 = pneg %p511
      // Predicated region
      $region73: #{tpu_custom_call.1} parent=5 // pred_check
        _
      $region74: #{tpu_custom_call.1} parent=5 // pred_check_branch
        %514 = sbr.rel (%p511) target = $region76
      $region75: #{tpu_custom_call.1} parent=5 // pred_region
        %s515 = ssub.s32 %s28, 1
        %s516 = sand.u32 %s107, 1
        %s517 = scalar_lea.sflag [#allocation6], %s516
        %s518 = sand.u32 %s107, 1
        %s519 = smul.addr %s518, 12
        %s520 = scalar_lea.vmem [#allocation5], %s519
        // Predicated region
        $region77: #{tpu_custom_call.1} parent=75 // pred_check
          %p521 = pneg %p120
        $region78: #{tpu_custom_call.1} parent=75 // pred_check_branch
          %523 = sbr.rel (%p521) target = $region80
        $region79: #{tpu_custom_call.1} parent=75 // pred_region
          %524 = dma.done %s517, 192
        $region80: #{tpu_custom_call.1} parent=75 // pred_fallthru
          _
        // Predicated region
        $region81: #{tpu_custom_call.1} parent=75 // pred_check
          %p525 = pneg %p141
        $region82: #{tpu_custom_call.1} parent=75 // pred_check_branch
          %527 = sbr.rel (%p525) target = $region84
        $region83: #{tpu_custom_call.1} parent=75 // pred_region
          %528 = dma.done [#allocation9], 1024
        $region84: #{tpu_custom_call.1} parent=75 // pred_fallthru
          _
        // Predicated region
        $region85: #{tpu_custom_call.1} parent=75 // pred_check
          %p529 = pneg %p183
        $region86: #{tpu_custom_call.1} parent=75 // pred_check_branch
          %531 = sbr.rel (%p529) target = $region88
        $region87: #{tpu_custom_call.1} parent=75 // pred_region
          %532 = dma.done [#allocation9], 2048
        $region88: #{tpu_custom_call.1} parent=75 // pred_fallthru
          _
        // Predicated region
        $region89: #{tpu_custom_call.1} parent=75 // pred_check
          %p533 = pneg %p288
        $region90: #{tpu_custom_call.1} parent=75 // pred_check_branch
          %535 = sbr.rel (%p533) target = $region92
        $region91: #{tpu_custom_call.1} parent=75 // pred_region
          %536 = dma.done [#allocation12], 4096
        $region92: #{tpu_custom_call.1} parent=75 // pred_fallthru
          _
        // Predicated region
        $region93: #{tpu_custom_call.1} parent=75 // pred_check
          %p537 = pneg %p330
        $region94: #{tpu_custom_call.1} parent=75 // pred_check_branch
          %539 = sbr.rel (%p537) target = $region96
        $region95: #{tpu_custom_call.1} parent=75 // pred_region
          %540 = dma.done [#allocation12], 4096
        $region96: #{tpu_custom_call.1} parent=75 // pred_fallthru
          _
        %p541 = scmp.lt.s32.totalorder %s37, 1
        %s542 = scalar_select %p541, %s37, 1
        %s543 = scalar_lea.vmem %s0, %s542
        %p544 = pneg %p66
        %p545 = pneg %p63
        %p546 = scmp.lt.s32.totalorder %s37, 1
        %s547 = scalar_select %p546, %s37, 1
        %p548 = scmp.lt.s32.totalorder %s38, 2
        %s549 = scalar_select %p548, %s38, 2
        %s550 = smul.addr %s547, 3
        %s551 = sadd.s32 %s549, %s550
        %s552 = smul.addr %s551, 8
        %s553 = scalar_lea.vmem %s1, %s552
        %p554 = pneg %p94
        %p555 = pneg %p91
        %s556 = sand.u32 %s107, 1
        %s557 = scalar_lea.sflag [#allocation6], %s556
        %s558 = sand.u32 %s107, 1
        %s559 = smul.addr %s558, 12
        %s560 = scalar_lea.vmem [#allocation5], %s559
        %p561 = pneg %p120
        %p562 = pneg %p117
        %p563 = pneg %p141
        %p564 = pneg %p138
        %p565 = pneg %p162
        %p566 = pneg %p159
        %p567 = pneg %p183
        %p568 = pneg %p180
        %p569 = pneg %p204
        %p570 = pneg %p201
        %p571 = pneg %p225
        %p572 = pneg %p222
        %p573 = pneg %p246
        %p574 = pneg %p243
        %p575 = pneg %p267
        %p576 = pneg %p264
        %p577 = pneg %p288
        %p578 = pneg %p285
        %p579 = pneg %p309
        %p580 = pneg %p306
        %p581 = pneg %p330
        %p582 = pneg %p327
        %p583 = pneg %p351
        %p584 = pneg %p348
        %p585 = pneg %p379
        %p586 = pneg %p376
        %s587 = sand.u32 %s366, 1
        %s588 = scalar_lea.sflag [#allocation7], %s587
        %s589 = sand.u32 %s366, 1
        %s590 = smul.addr %s589, 8
        %s591 = scalar_lea.vmem [#allocation14], %s590
        %p592 = scmp.lt.s32.totalorder %s37, 1
        %s593 = scalar_select %p592, %s37, 1
        %s594 = scalar_lea.vmem %s0, %s593
        %p595 = scmp.lt.s32.totalorder %s37, 1
        %s596 = scalar_select %p595, %s37, 1
        %p597 = scmp.lt.s32.totalorder %s38, 2
        %s598 = scalar_select %p597, %s38, 2
        %s599 = smul.addr %s596, 3
        %s600 = sadd.s32 %s598, %s599
        %s601 = smul.addr %s600, 8
        %s602 = scalar_lea.vmem %s1, %s601
        %s604 = smul.u32 %s38, 8
        %p605 = scmp.eq.s32.totalorder %s38, 0
        // Predicated region
        $region97: #{tpu_custom_call.1} parent=75 // pred_check
          %p606 = pneg %p605
        $region98: #{tpu_custom_call.1} parent=75 // pred_check_branch
          %608 = sbr.rel (%p606) target = $region100
        $region99: #{tpu_custom_call.1} parent=75 // pred_region
          %v609 = vld [vmem:[%s520] sm:$0xf]
          %v610 = vld [vmem:[%s520 + $0x4] sm:$0xf]
          %v611 = vld [vmem:[%s520 + $0x8] sm:$0xf]
          %v612 = vld [vmem:[#allocation10] sm:$0xff]
          %v613 = vld [vmem:[#allocation10 + $0x8] sm:$0xff]
          %v614 = vld [vmem:[#allocation10 + $0x10] sm:$0xff]
          %v615 = vld [vmem:[#allocation10 + $0x18] sm:$0xff]
          %v616 = vld [vmem:[#allocation10 + $0x20] sm:$0xff]
          %v617 = vld [vmem:[#allocation10 + $0x28] sm:$0xff]
          %v618 = vld [vmem:[#allocation10 + $0x30] sm:$0xff]
          %v619 = vld [vmem:[#allocation10 + $0x38] sm:$0xff]
          %v620 = vld [vmem:[#allocation10 + $0x40] sm:$0xff]
          %v621 = vld [vmem:[#allocation10 + $0x48] sm:$0xff]
          %v622 = vld [vmem:[#allocation10 + $0x50] sm:$0xff]
          %v623 = vld [vmem:[#allocation10 + $0x58] sm:$0xff]
          %v624 = vld [vmem:[#allocation10 + $0x60] sm:$0xff]
          %v625 = vld [vmem:[#allocation10 + $0x68] sm:$0xff]
          %v626 = vld [vmem:[#allocation10 + $0x70] sm:$0xff]
          %v627 = vld [vmem:[#allocation10 + $0x78] sm:$0xff]
          %v628 = vld [vmem:[%s6] sm:$0x3]
          %v630 = vlaneseq
          %v631 = vshrl.u32 %v630, 7
          %v632 = vsub.s32 0, %v631
          %v633 = vrot.slane %v628, %v632
          %v634 = vlaneseq
          %v635 = vshrl.u32 %v634, 7
          %v636 = vsub.s32 1, %v635
          %v637 = vrot.slane %v628, %v636
          %v643 = vunpack.c.l.b16 %v609
          %v644 = vunpack.c.l.b16 %v610
          %v645 = vunpack.c.l.b16 %v611
          %v646 = vpack.c.b16 %v644, %v643
          %v647 = vpack.c.b16 %v645, %v645
          %v666 = vunpack.c.l.b16 %v612
          %v667 = vunpack.c.h.b16 %v612
          %v668 = vunpack.c.l.b16 %v613
          %v669 = vunpack.c.h.b16 %v613
          %v670 = vunpack.c.l.b16 %v614
          %v671 = vunpack.c.h.b16 %v614
          %v672 = vunpack.c.l.b16 %v615
          %v673 = vunpack.c.h.b16 %v615
          %v674 = vunpack.c.l.b16 %v616
          %v675 = vunpack.c.h.b16 %v616
          %v676 = vunpack.c.l.b16 %v617
          %v677 = vunpack.c.h.b16 %v617
          %v678 = vunpack.c.l.b16 %v618
          %v679 = vunpack.c.h.b16 %v618
          %v680 = vunpack.c.l.b16 %v619
          %v681 = vunpack.c.h.b16 %v619
          %v682 = vunpack.c.l.b16 %v620
          %v683 = vunpack.c.h.b16 %v620
          %v684 = vunpack.c.l.b16 %v621
          %v685 = vunpack.c.h.b16 %v621
          %v686 = vunpack.c.l.b16 %v622
          %v687 = vunpack.c.h.b16 %v622
          %v688 = vunpack.c.l.b16 %v623
          %v689 = vunpack.c.h.b16 %v623
          %v690 = vunpack.c.l.b16 %v624
          %v691 = vunpack.c.h.b16 %v624
          %v692 = vunpack.c.l.b16 %v625
          %v693 = vunpack.c.h.b16 %v625
          %v694 = vunpack.c.l.b16 %v626
          %v695 = vunpack.c.h.b16 %v626
          %v696 = vunpack.c.l.b16 %v627
          %v697 = vunpack.c.h.b16 %v627
          %v698 = vpack.c.b16 %v668, %v666
          %v699 = vpack.c.b16 %v669, %v667
          %v700 = vpack.c.b16 %v672, %v670
          %v701 = vpack.c.b16 %v673, %v671
          %v702 = vpack.c.b16 %v676, %v674
          %v703 = vpack.c.b16 %v677, %v675
          %v704 = vpack.c.b16 %v680, %v678
          %v705 = vpack.c.b16 %v681, %v679
          %v706 = vpack.c.b16 %v684, %v682
          %v707 = vpack.c.b16 %v685, %v683
          %v708 = vpack.c.b16 %v688, %v686
          %v709 = vpack.c.b16 %v689, %v687
          %v710 = vpack.c.b16 %v692, %v690
          %v711 = vpack.c.b16 %v693, %v691
          %v712 = vpack.c.b16 %v696, %v694
          %v713 = vpack.c.b16 %v697, %v695
          %730 = vmatprep.subr.bf16.mxu0 %v699
          %731 = vmatpush1.bf16.msra.mxu0 %v698
          %732 = vmatprep.subr.bf16.mxu0 %v701
          %733 = vmatpush1.bf16.msra.mxu0 %v700
          %734 = vmatprep.subr.bf16.mxu0 %v703
          %735 = vmatpush1.bf16.msra.mxu0 %v702
          %736 = vmatprep.subr.bf16.mxu0 %v705
          %737 = vmatpush1.bf16.msra.mxu0 %v704
          %738 = vmatprep.subr.bf16.mxu0 %v707
          %739 = vmatpush1.bf16.msra.mxu0 %v706
          %740 = vmatprep.subr.bf16.mxu0 %v709
          %741 = vmatpush1.bf16.msra.mxu0 %v708
          %742 = vmatprep.subr.bf16.mxu0 %v711
          %743 = vmatpush1.bf16.msra.mxu0 %v710
          %744 = vmatprep.subr.bf16.mxu0 %v713
          %745 = vmatpush1.bf16.msra.mxu0 %v712
          %746 = vmatprep.subr.bf16.mxu0 0
          %747 = vmatpush1.bf16.msra.mxu0 0
          %748 = vmatprep.subr.bf16.mxu0 0
          %749 = vmatpush1.bf16.msra.mxu0 0
          %750 = vmatprep.subr.bf16.mxu0 0
          %751 = vmatpush1.bf16.msra.mxu0 0
          %752 = vmatprep.subr.bf16.mxu0 0
          %753 = vmatpush1.bf16.msra.mxu0 0
          %754 = vmatprep.subr.bf16.mxu0 0
          %755 = vmatpush1.bf16.msra.mxu0 0
          %756 = vmatprep.subr.bf16.mxu0 0
          %757 = vmatpush1.bf16.msra.mxu0 0
          %758 = vmatprep.subr.bf16.mxu0 0
          %759 = vmatpush1.bf16.msra.mxu0 0
          %760 = vmatprep.subr.bf16.mxu0 0
          %761 = vmatpush1.bf16.msra.mxu0 0
          %762 = vmatprep.mubr.bf16.mxu0 0
          %763 = vmatmul.mubr.bf16.gmra.mrb[0].mxu0 %v646
          %v764 = vpop.f32.mrb[0].mxu0
          %v765 = vadd.f32 %v633, %v764
          %v766 = vpop.f32.mrb[0].mxu0
          %v767 = vadd.f32 %v637, %v766
          %v768 = vpop.f32.mrb[0].mxu0
          %v769 = vadd.f32 %v633, %v768
          %v770 = vpop.f32.mrb[0].mxu0
          %v771 = vadd.f32 %v637, %v770
          %772 = vmatprep.mubr.bf16.mxu0 0
          %773 = vmatmul.mubr.bf16.gmra.mrb[0].mxu0 %v647
          %v774 = vpop.f32.mrb[0].mxu0
          %v775 = vadd.f32 %v633, %v774
          %v776 = vpop.f32.mrb[0].mxu0
          %v777 = vadd.f32 %v637, %v776
          %v778 = vpop.f32.mrb[0].mxu0
          %v779 = vpop.f32.mrb[0].mxu0
          %780 = vdwg.mxu0
          %781 = vxpose.xlu0.b32.start [1/16] %v765, 128
          %782 = vxpose.xlu0.b32.cont [2/16] %v769, 128
          %783 = vxpose.xlu0.b32.cont [3/16] %v775, 128
          %784 = vxpose.xlu0.b32.cont [4/16] 0.0, 128
          %785 = vxpose.xlu0.b32.cont [5/16] 0.0, 128
          %786 = vxpose.xlu0.b32.cont [6/16] 0.0, 128
          %787 = vxpose.xlu0.b32.cont [7/16] 0.0, 128
          %788 = vxpose.xlu0.b32.cont [8/16] 0.0, 128
          %789 = vxpose.xlu0.b32.cont [9/16] 0.0, 128
          %790 = vxpose.xlu0.b32.cont [10/16] 0.0, 128
          %791 = vxpose.xlu0.b32.cont [11/16] 0.0, 128
          %792 = vxpose.xlu0.b32.cont [12/16] 0.0, 128
          %793 = vxpose.xlu0.b32.cont [13/16] 0.0, 128
          %794 = vxpose.xlu0.b32.cont [14/16] 0.0, 128
          %795 = vxpose.xlu0.b32.cont [15/16] 0.0, 128
          %796 = vxpose.xlu0.b32.end [16/16] 0.0, 128
          %v797 = vpop.trf.xlu0
          %v798 = vpop.trf.xlu0
          %v799 = vpop.trf.xlu0
          %v800 = vpop.trf.xlu0
          %v801 = vpop.trf.xlu0
          %v802 = vpop.trf.xlu0
          %v803 = vpop.trf.xlu0
          %v804 = vpop.trf.xlu0
          %v805 = vpop.trf.xlu0
          %v806 = vpop.trf.xlu0
          %v807 = vpop.trf.xlu0
          %v808 = vpop.trf.xlu0
          %v809 = vpop.trf.xlu0
          %v810 = vpop.trf.xlu0
          %v811 = vpop.trf.xlu0
          %v812 = vpop.trf.xlu0
          %v813 = vpack.c.bf16 %v798, %v797
          %v814 = vpack.c.bf16 %v800, %v799
          %v815 = vpack.c.bf16 %v802, %v801
          %v816 = vpack.c.bf16 %v804, %v803
          %v817 = vpack.c.bf16 %v806, %v805
          %v818 = vpack.c.bf16 %v808, %v807
          %v819 = vpack.c.bf16 %v810, %v809
          %v820 = vpack.c.bf16 %v812, %v811
          %vm821 = vcmask 195584
          %822 = vst.msk [vmem:[#allocation2] sm:$0xff] %vm821, %v813
          %823 = vst.msk [vmem:[#allocation2 + $0x8] sm:$0xff] %vm821, %v814
          %824 = vst.msk [vmem:[#allocation2 + $0x10] sm:$0xff] %vm821, %v815
          %825 = vst.msk [vmem:[#allocation2 + $0x18] sm:$0xff] %vm821, %v816
          %826 = vst.msk [vmem:[#allocation2 + $0x20] sm:$0xff] %vm821, %v817
          %827 = vst.msk [vmem:[#allocation2 + $0x28] sm:$0xff] %vm821, %v818
          %828 = vst.msk [vmem:[#allocation2 + $0x30] sm:$0xff] %vm821, %v819
          %829 = vst.msk [vmem:[#allocation2 + $0x38] sm:$0xff] %vm821, %v820
          %v830 = vpack.c.bf16 %v771, %v767
          %v831 = vpack.c.bf16 %v777, %v777
          %v834 = vunpack.c.l.b16 %v830
          %v835 = vunpack.c.h.b16 %v830
          %v836 = vunpack.c.l.b16 %v831
          %v837 = vpack.c.b16 %v834, %v834
          %v838 = vpack.c.b16 %v835, %v835
          %v839 = vpack.c.b16 %v836, %v836
          %843 = vst [vmem:[#allocation3] sm:$0xf] %v837
          %844 = vst [vmem:[#allocation3 + $0x4] sm:$0xf] %v838
          %845 = vst [vmem:[#allocation3 + $0x8] sm:$0xf] %v839
        $region100: #{tpu_custom_call.1} parent=75 // pred_fallthru
          _
        %s846 = sshra.s32 %s604, 3
        %s847 = sand.u32 %s604, 7
        %s848 = smul.addr %s846, 4
        %s849 = scalar_lea.vmem %s520, %s848 [#allocation5]
        %v850 = vld [vmem:[%s849] sm:$0xf]
        %v851 = vld [vmem:[#allocation8] sm:$0xf]
        %v852 = vld [vmem:[#allocation8 + $0x4] sm:$0xf]
        %v853 = vld [vmem:[#allocation8 + $0x8] sm:$0xf]
        %v854 = vld [vmem:[#allocation8 + $0xc] sm:$0xf]
        %v855 = vld [vmem:[#allocation8 + $0x10] sm:$0xf]
        %v856 = vld [vmem:[#allocation8 + $0x14] sm:$0xf]
        %v857 = vld [vmem:[#allocation8 + $0x18] sm:$0xf]
        %v858 = vld [vmem:[#allocation8 + $0x1c] sm:$0xf]
        %v859 = vld [vmem:[#allocation8 + $0x20] sm:$0xf]
        %v860 = vld [vmem:[#allocation8 + $0x24] sm:$0xf]
        %v861 = vld [vmem:[#allocation8 + $0x28] sm:$0xf]
        %v862 = vld [vmem:[#allocation8 + $0x2c] sm:$0xf]
        %v863 = vld [vmem:[#allocation8 + $0x30] sm:$0xf]
        %v864 = vld [vmem:[#allocation8 + $0x34] sm:$0xf]
        %v865 = vld [vmem:[#allocation8 + $0x38] sm:$0xf]
        %v866 = vld [vmem:[#allocation8 + $0x3c] sm:$0xf]
        %v867 = vld [vmem:[%s4] sm:$0x1]
        %v869 = vlaneseq
        %v870 = vshrl.u32 %v869, 7
        %v871 = vsub.s32 0, %v870
        %v872 = vrot.slane %v867, %v871
        %v890 = vunpack.c.l.b16 %v851
        %v891 = vunpack.c.l.b16 %v852
        %v892 = vunpack.c.l.b16 %v853
        %v893 = vunpack.c.l.b16 %v854
        %v894 = vunpack.c.l.b16 %v855
        %v895 = vunpack.c.l.b16 %v856
        %v896 = vunpack.c.l.b16 %v857
        %v897 = vunpack.c.l.b16 %v858
        %v898 = vunpack.c.l.b16 %v859
        %v899 = vunpack.c.l.b16 %v860
        %v900 = vunpack.c.l.b16 %v861
        %v901 = vunpack.c.l.b16 %v862
        %v902 = vunpack.c.l.b16 %v863
        %v903 = vunpack.c.l.b16 %v864
        %v904 = vunpack.c.l.b16 %v865
        %v905 = vunpack.c.l.b16 %v866
        %v906 = vpack.c.b16 %v891, %v890
        %v907 = vpack.c.b16 %v893, %v892
        %v908 = vpack.c.b16 %v895, %v894
        %v909 = vpack.c.b16 %v897, %v896
        %v910 = vpack.c.b16 %v899, %v898
        %v911 = vpack.c.b16 %v901, %v900
        %v912 = vpack.c.b16 %v903, %v902
        %v913 = vpack.c.b16 %v905, %v904
        %922 = vmatprep.subr.bf16.mxu0 0
        %923 = vmatpush1.bf16.msra.mxu0 %v906
        %924 = vmatprep.subr.bf16.mxu0 0
        %925 = vmatpush1.bf16.msra.mxu0 %v907
        %926 = vmatprep.subr.bf16.mxu0 0
        %927 = vmatpush1.bf16.msra.mxu0 %v908
        %928 = vmatprep.subr.bf16.mxu0 0
        %929 = vmatpush1.bf16.msra.mxu0 %v909
        %930 = vmatprep.subr.bf16.mxu0 0
        %931 = vmatpush1.bf16.msra.mxu0 %v910
        %932 = vmatprep.subr.bf16.mxu0 0
        %933 = vmatpush1.bf16.msra.mxu0 %v911
        %934 = vmatprep.subr.bf16.mxu0 0
        %935 = vmatpush1.bf16.msra.mxu0 %v912
        %936 = vmatprep.subr.bf16.mxu0 0
        %937 = vmatpush1.bf16.msra.mxu0 %v913
        %938 = vmatprep.subr.bf16.mxu0 0
        %939 = vmatpush1.bf16.msra.mxu0 0
        %940 = vmatprep.subr.bf16.mxu0 0
        %941 = vmatpush1.bf16.msra.mxu0 0
        %942 = vmatprep.subr.bf16.mxu0 0
        %943 = vmatpush1.bf16.msra.mxu0 0
        %944 = vmatprep.subr.bf16.mxu0 0
        %945 = vmatpush1.bf16.msra.mxu0 0
        %946 = vmatprep.subr.bf16.mxu0 0
        %947 = vmatpush1.bf16.msra.mxu0 0
        %948 = vmatprep.subr.bf16.mxu0 0
        %949 = vmatpush1.bf16.msra.mxu0 0
        %950 = vmatprep.subr.bf16.mxu0 0
        %951 = vmatpush1.bf16.msra.mxu0 0
        %952 = vmatprep.subr.bf16.mxu0 0
        %953 = vmatpush1.bf16.msra.mxu0 0
        %954 = vmatprep.mubr.bf16.mxu0 0
        %955 = vmatmul.mubr.bf16.gmra.mrb[0].mxu0 %v850
        %v956 = vpop.f32.mrb[0].mxu0
        %v957 = vadd.f32 %v872, %v956
        %v958 = vpop.f32.mrb[0].mxu0
        %v959 = vpop.f32.mrb[0].mxu0
        %v960 = vpop.f32.mrb[0].mxu0
        %961 = vdwg.mxu0
        %v962 = vpack.c.bf16 %v957, %v957
        %v963 = vlaneseq
        %v964 = vshrl.u32 %v963, 7
        %v965 = vstv %s604
        %v966 = vadd.s32 %v964, %v965
        %v967 = vlaneseq
        %v968 = vand.u32 %v967, 127
        %vm969 = vcmp.eq.s32.totalorder %v966, %v968
        %v970 = vsel %vm969, 1, 0
        %v971 = vcvt.s32.f32 %v970
        %v972 = vld [vmem:[%s594] sm:$0x1]
        %v973 = vsub.f32 1.0, %v972
        %v974 = vld [vmem:[%s602] sm:$0xff]
        %v975 = vsub.f32 1.0, %v974
        %977 = vset.pattern.permute.xlu0 0
        %978 = vperm.xlu0 %977, %v975
        %v979 = vpop.permute.xlu0 %978
        %v982 = vlaneseq
        %v983 = vshrl.u32 %v982, 7
        %v984 = vsub.s32 0, %v983
        %v985 = vrot.slane %v973, %v984
        %v987 = vmul.f32 %v979, %v985
        %v988 = vsub.f32 1.0, %v987
        %v989 = vadd.f32 %v988, %v971
        %v990 = vmin.f32 %v989, 1.0
        %v991 = vmul.f32 %v990, 1e+12
        %v992 = vsub.f32 1.0, %v990
        %v993 = vld [vmem:[#allocation2] sm:$0xff]
        %v994 = vld [vmem:[#allocation2 + $0x8] sm:$0xff]
        %v995 = vld [vmem:[#allocation2 + $0x10] sm:$0xff]
        %v996 = vld [vmem:[#allocation2 + $0x18] sm:$0xff]
        %v997 = vld [vmem:[#allocation3] sm:$0xf]
        %v998 = vld [vmem:[#allocation3 + $0x4] sm:$0xf]
        %v999 = vld [vmem:[#allocation3 + $0x8] sm:$0xf]
        %vm1000 = vcmask 523264
        %v1002 = vsel %vm1000, %v962, 0
        %1004 = vmatprep.subr.bf16.mxu0 0
        %1005 = vmatpush1.bf16.msra.mxu0 %v993
        %1006 = vmatprep.subr.bf16.mxu0 0
        %1007 = vmatpush1.bf16.msra.mxu0 %v994
        %1008 = vmatprep.subr.bf16.mxu0 0
        %1009 = vmatpush1.bf16.msra.mxu0 %v995
        %1010 = vmatprep.subr.bf16.mxu0 0
        %1011 = vmatpush1.bf16.msra.mxu0 %v996
        %1012 = vmatprep.subr.bf16.mxu0 0
        %1013 = vmatpush1.bf16.msra.mxu0 0
        %1014 = vmatprep.subr.bf16.mxu0 0
        %1015 = vmatpush1.bf16.msra.mxu0 0
        %1016 = vmatprep.subr.bf16.mxu0 0
        %1017 = vmatpush1.bf16.msra.mxu0 0
        %1018 = vmatprep.subr.bf16.mxu0 0
        %1019 = vmatpush1.bf16.msra.mxu0 0
        %1020 = vmatprep.subr.bf16.mxu0 0
        %1021 = vmatpush1.bf16.msra.mxu0 0
        %1022 = vmatprep.subr.bf16.mxu0 0
        %1023 = vmatpush1.bf16.msra.mxu0 0
        %1024 = vmatprep.subr.bf16.mxu0 0
        %1025 = vmatpush1.bf16.msra.mxu0 0
        %1026 = vmatprep.subr.bf16.mxu0 0
        %1027 = vmatpush1.bf16.msra.mxu0 0
        %1028 = vmatprep.subr.bf16.mxu0 0
        %1029 = vmatpush1.bf16.msra.mxu0 0
        %1030 = vmatprep.subr.bf16.mxu0 0
        %1031 = vmatpush1.bf16.msra.mxu0 0
        %1032 = vmatprep.subr.bf16.mxu0 0
        %1033 = vmatpush1.bf16.msra.mxu0 0
        %1034 = vmatprep.subr.bf16.mxu0 0
        %1035 = vmatpush1.bf16.msra.mxu0 0
        %1036 = vmatprep.mubr.bf16.mxu0 0
        %1037 = vmatmul.mubr.bf16.gmra.mrb[0].mxu0 %v1002
        %v1038 = vpop.f32.mrb[0].mxu0
        %v1039 = vadd.f32 0.0, %v1038
        %v1040 = vpop.f32.mrb[0].mxu0
        %v1041 = vpop.f32.mrb[0].mxu0
        %v1042 = vpop.f32.mrb[0].mxu0
        %1043 = vdwg.mxu0
        %v1044 = vmul.f32 %v1039, 0.125
        %v1045 = vsub.f32 %v1044, %v991
        %vm1046 = vcmask 195584
        %v1047 = vsel %vm1046, %v1045, -inf
        %1048 = vmax.xlane.f32.xlu0 %v1047
        %v1049 = vpop.xlane.xlu0 %1048
        %v1050 = vsub.f32 %v1045, %v1049
        %v1051 = vmul.f32 %v1050, 1.442695
        %v1052 = vpow.pop %v1051
        %v1053 = vsel %vm1046, %v1052, 0.0
        %1054 = vadd.xlane.f32.xlu0 %v1053
        %v1055 = vpop.xlane.xlu0 %1054
        %v1056 = vrcp.pop %v1055
        %v1057 = vmul.f32 %v1052, %v1056
        %v1058 = vmul.f32 %v1057, %v992
        %v1059 = vpack.c.bf16 %v1058, %v1058
        %v1063 = vunpack.c.l.b16 %v997
        %v1064 = vunpack.c.l.b16 %v998
        %v1065 = vunpack.c.l.b16 %v999
        %v1066 = vpack.c.b16 %v1064, %v1063
        %v1067 = vpack.c.b16 %v1065, %v1065
        %v1070 = vsel %vm1046, %v1059, 0
        %vm1072 = vcmask 1043456
        %v1074 = vsel %vm1072, %v1067, 0
        %1076 = vmatprep.subr.bf16.mxu0 0
        %1077 = vmatpush1.bf16.msra.mxu0 %v1066
        %1078 = vmatprep.subr.bf16.mxu0 0
        %1079 = vmatpush1.bf16.msra.mxu0 %v1074
        %1080 = vmatprep.subr.bf16.mxu0 0
        %1081 = vmatpush1.bf16.msra.mxu0 0
        %1082 = vmatprep.subr.bf16.mxu0 0
        %1083 = vmatpush1.bf16.msra.mxu0 0
        %1084 = vmatprep.subr.bf16.mxu0 0
        %1085 = vmatpush1.bf16.msra.mxu0 0
        %1086 = vmatprep.subr.bf16.mxu0 0
        %1087 = vmatpush1.bf16.msra.mxu0 0
        %1088 = vmatprep.subr.bf16.mxu0 0
        %1089 = vmatpush1.bf16.msra.mxu0 0
        %1090 = vmatprep.subr.bf16.mxu0 0
        %1091 = vmatpush1.bf16.msra.mxu0 0
        %1092 = vmatprep.subr.bf16.mxu0 0
        %1093 = vmatpush1.bf16.msra.mxu0 0
        %1094 = vmatprep.subr.bf16.mxu0 0
        %1095 = vmatpush1.bf16.msra.mxu0 0
        %1096 = vmatprep.subr.bf16.mxu0 0
        %1097 = vmatpush1.bf16.msra.mxu0 0
        %1098 = vmatprep.subr.bf16.mxu0 0
        %1099 = vmatpush1.bf16.msra.mxu0 0
        %1100 = vmatprep.subr.bf16.mxu0 0
        %1101 = vmatpush1.bf16.msra.mxu0 0
        %1102 = vmatprep.subr.bf16.mxu0 0
        %1103 = vmatpush1.bf16.msra.mxu0 0
        %1104 = vmatprep.subr.bf16.mxu0 0
        %1105 = vmatpush1.bf16.msra.mxu0 0
        %1106 = vmatprep.subr.bf16.mxu0 0
        %1107 = vmatpush1.bf16.msra.mxu0 0
        %1108 = vmatprep.mubr.bf16.mxu0 0
        %1109 = vmatmul.mubr.bf16.gmra.mrb[0].mxu0 %v1070
        %v1110 = vpop.f32.mrb[0].mxu0
        %v1111 = vadd.f32 0.0, %v1110
        %v1112 = vpop.f32.mrb[0].mxu0
        %v1113 = vpop.f32.mrb[0].mxu0
        %v1114 = vpop.f32.mrb[0].mxu0
        %1115 = vdwg.mxu0
        %v1116 = vpack.c.bf16 %v1111, %v1111
        %vm1117 = vcmask 519168
        %1118 = vst.msk [vmem:[#allocation4] sm:$0xf] %vm1117, %v1116
        %v1119 = vld [vmem:[#allocation2 + $0x20] sm:$0xff]
        %v1120 = vld [vmem:[#allocation2 + $0x28] sm:$0xff]
        %v1121 = vld [vmem:[#allocation2 + $0x30] sm:$0xff]
        %v1122 = vld [vmem:[#allocation2 + $0x38] sm:$0xff]
        %v1123 = vld [vmem:[#allocation3] sm:$0xf]
        %v1124 = vld [vmem:[#allocation3 + $0x4] sm:$0xf]
        %v1125 = vld [vmem:[#allocation3 + $0x8] sm:$0xf]
        %1127 = vrot.lane.b32.xlu0 %v962, 64
        %v1128 = vpop.permute.xlu0 %1127
        %v1130 = vsel %vm1000, %v1128, 0
        %1132 = vmatprep.subr.bf16.mxu0 0
        %1133 = vmatpush1.bf16.msra.mxu0 %v1119
        %1134 = vmatprep.subr.bf16.mxu0 0
        %1135 = vmatpush1.bf16.msra.mxu0 %v1120
        %1136 = vmatprep.subr.bf16.mxu0 0
        %1137 = vmatpush1.bf16.msra.mxu0 %v1121
        %1138 = vmatprep.subr.bf16.mxu0 0
        %1139 = vmatpush1.bf16.msra.mxu0 %v1122
        %1140 = vmatprep.subr.bf16.mxu0 0
        %1141 = vmatpush1.bf16.msra.mxu0 0
        %1142 = vmatprep.subr.bf16.mxu0 0
        %1143 = vmatpush1.bf16.msra.mxu0 0
        %1144 = vmatprep.subr.bf16.mxu0 0
        %1145 = vmatpush1.bf16.msra.mxu0 0
        %1146 = vmatprep.subr.bf16.mxu0 0
        %1147 = vmatpush1.bf16.msra.mxu0 0
        %1148 = vmatprep.subr.bf16.mxu0 0
        %1149 = vmatpush1.bf16.msra.mxu0 0
        %1150 = vmatprep.subr.bf16.mxu0 0
        %1151 = vmatpush1.bf16.msra.mxu0 0
        %1152 = vmatprep.subr.bf16.mxu0 0
        %1153 = vmatpush1.bf16.msra.mxu0 0
        %1154 = vmatprep.subr.bf16.mxu0 0
        %1155 = vmatpush1.bf16.msra.mxu0 0
        %1156 = vmatprep.subr.bf16.mxu0 0
        %1157 = vmatpush1.bf16.msra.mxu0 0
        %1158 = vmatprep.subr.bf16.mxu0 0
        %1159 = vmatpush1.bf16.msra.mxu0 0
        %1160 = vmatprep.subr.bf16.mxu0 0
        %1161 = vmatpush1.bf16.msra.mxu0 0
        %1162 = vmatprep.subr.bf16.mxu0 0
        %1163 = vmatpush1.bf16.msra.mxu0 0
        %1164 = vmatprep.mubr.bf16.mxu0 0
        %1165 = vmatmul.mubr.bf16.gmra.mrb[0].mxu0 %v1130
        %v1166 = vpop.f32.mrb[0].mxu0
        %v1167 = vadd.f32 0.0, %v1166
        %v1168 = vpop.f32.mrb[0].mxu0
        %v1169 = vpop.f32.mrb[0].mxu0
        %v1170 = vpop.f32.mrb[0].mxu0
        %1171 = vdwg.mxu0
        %v1172 = vmul.f32 %v1167, 0.125
        %v1173 = vsub.f32 %v1172, %v991
        %v1174 = vsel %vm1046, %v1173, -inf
        %1175 = vmax.xlane.f32.xlu0 %v1174
        %v1176 = vpop.xlane.xlu0 %1175
        %v1177 = vsub.f32 %v1173, %v1176
        %v1178 = vmul.f32 %v1177, 1.442695
        %v1179 = vpow.pop %v1178
        %v1180 = vsel %vm1046, %v1179, 0.0
        %1181 = vadd.xlane.f32.xlu0 %v1180
        %v1182 = vpop.xlane.xlu0 %1181
        %v1183 = vrcp.pop %v1182
        %v1184 = vmul.f32 %v1179, %v1183
        %v1185 = vmul.f32 %v1184, %v992
        %v1186 = vpack.c.bf16 %v1185, %v1185
        %v1190 = vunpack.c.l.b16 %v1123
        %v1191 = vunpack.c.l.b16 %v1124
        %v1192 = vunpack.c.l.b16 %v1125
        %v1193 = vpack.c.b16 %v1191, %v1190
        %v1194 = vpack.c.b16 %v1192, %v1192
        %1195 = vrot.lane.b32.xlu0 %v1193, 64
        %v1196 = vpop.permute.xlu0 %1195
        %1197 = vrot.lane.b32.xlu0 %v1194, 64
        %v1198 = vpop.permute.xlu0 %1197
        %v1201 = vsel %vm1046, %v1186, 0
        %v1204 = vsel %vm1072, %v1198, 0
        %1206 = vmatprep.subr.bf16.mxu0 0
        %1207 = vmatpush1.bf16.msra.mxu0 %v1196
        %1208 = vmatprep.subr.bf16.mxu0 0
        %1209 = vmatpush1.bf16.msra.mxu0 %v1204
        %1210 = vmatprep.subr.bf16.mxu0 0
        %1211 = vmatpush1.bf16.msra.mxu0 0
        %1212 = vmatprep.subr.bf16.mxu0 0
        %1213 = vmatpush1.bf16.msra.mxu0 0
        %1214 = vmatprep.subr.bf16.mxu0 0
        %1215 = vmatpush1.bf16.msra.mxu0 0
        %1216 = vmatprep.subr.bf16.mxu0 0
        %1217 = vmatpush1.bf16.msra.mxu0 0
        %1218 = vmatprep.subr.bf16.mxu0 0
        %1219 = vmatpush1.bf16.msra.mxu0 0
        %1220 = vmatprep.subr.bf16.mxu0 0
        %1221 = vmatpush1.bf16.msra.mxu0 0
        %1222 = vmatprep.subr.bf16.mxu0 0
        %1223 = vmatpush1.bf16.msra.mxu0 0
        %1224 = vmatprep.subr.bf16.mxu0 0
        %1225 = vmatpush1.bf16.msra.mxu0 0
        %1226 = vmatprep.subr.bf16.mxu0 0
        %1227 = vmatpush1.bf16.msra.mxu0 0
        %1228 = vmatprep.subr.bf16.mxu0 0
        %1229 = vmatpush1.bf16.msra.mxu0 0
        %1230 = vmatprep.subr.bf16.mxu0 0
        %1231 = vmatpush1.bf16.msra.mxu0 0
        %1232 = vmatprep.subr.bf16.mxu0 0
        %1233 = vmatpush1.bf16.msra.mxu0 0
        %1234 = vmatprep.subr.bf16.mxu0 0
        %1235 = vmatpush1.bf16.msra.mxu0 0
        %1236 = vmatprep.subr.bf16.mxu0 0
        %1237 = vmatpush1.bf16.msra.mxu0 0
        %1238 = vmatprep.mubr.bf16.mxu0 0
        %1239 = vmatmul.mubr.bf16.gmra.mrb[0].mxu0 %v1201
        %v1240 = vpop.f32.mrb[0].mxu0
        %v1241 = vadd.f32 0.0, %v1240
        %v1242 = vpop.f32.mrb[0].mxu0
        %v1243 = vpop.f32.mrb[0].mxu0
        %v1244 = vpop.f32.mrb[0].mxu0
        %1245 = vdwg.mxu0
        %v1246 = vpack.c.bf16 %v1241, %v1241
        %v1248 = vunpack.c.l.b16 %v1246
        %v1249 = vpack.c.b16 %v1248, %v1248
        %1250 = vrot.lane.b32.xlu0 %v1249, 64
        %v1251 = vpop.permute.xlu0 %1250
        %vm1253 = vcmask 1043968
        %1254 = vst.msk [vmem:[#allocation4] sm:$0xf] %vm1253, %v1251
        %v1255 = vld [vmem:[#allocation4] sm:$0xf]
        %v1256 = vld [vmem:[%s7] sm:$0xf]
        %v1257 = vld [vmem:[%s7 + $0x4] sm:$0xf]
        %v1258 = vld [vmem:[%s7 + $0x8] sm:$0xf]
        %v1259 = vld [vmem:[%s7 + $0xc] sm:$0xf]
        %v1260 = vld [vmem:[%s7 + $0x10] sm:$0xf]
        %v1261 = vld [vmem:[%s7 + $0x14] sm:$0xf]
        %v1262 = vld [vmem:[%s7 + $0x18] sm:$0xf]
        %v1263 = vld [vmem:[%s7 + $0x1c] sm:$0xf]
        %v1264 = vld [vmem:[%s7 + $0x20] sm:$0xf]
        %v1265 = vld [vmem:[%s7 + $0x24] sm:$0xf]
        %v1266 = vld [vmem:[%s7 + $0x28] sm:$0xf]
        %v1267 = vld [vmem:[%s7 + $0x2c] sm:$0xf]
        %v1268 = vld [vmem:[%s7 + $0x30] sm:$0xf]
        %v1269 = vld [vmem:[%s7 + $0x34] sm:$0xf]
        %v1270 = vld [vmem:[%s7 + $0x38] sm:$0xf]
        %v1271 = vld [vmem:[%s7 + $0x3c] sm:$0xf]
        %v1288 = vunpack.c.l.b16 %v1256
        %v1289 = vunpack.c.l.b16 %v1257
        %v1290 = vunpack.c.l.b16 %v1258
        %v1291 = vunpack.c.l.b16 %v1259
        %v1292 = vunpack.c.l.b16 %v1260
        %v1293 = vunpack.c.l.b16 %v1261
        %v1294 = vunpack.c.l.b16 %v1262
        %v1295 = vunpack.c.l.b16 %v1263
        %v1296 = vunpack.c.l.b16 %v1264
        %v1297 = vunpack.c.l.b16 %v1265
        %v1298 = vunpack.c.l.b16 %v1266
        %v1299 = vunpack.c.l.b16 %v1267
        %v1300 = vunpack.c.l.b16 %v1268
        %v1301 = vunpack.c.l.b16 %v1269
        %v1302 = vunpack.c.l.b16 %v1270
        %v1303 = vunpack.c.l.b16 %v1271
        %v1304 = vpack.c.b16 %v1289, %v1288
        %v1305 = vpack.c.b16 %v1291, %v1290
        %v1306 = vpack.c.b16 %v1293, %v1292
        %v1307 = vpack.c.b16 %v1295, %v1294
        %v1308 = vpack.c.b16 %v1297, %v1296
        %v1309 = vpack.c.b16 %v1299, %v1298
        %v1310 = vpack.c.b16 %v1301, %v1300
        %v1311 = vpack.c.b16 %v1303, %v1302
        %1320 = vmatprep.subr.bf16.mxu0 0
        %1321 = vmatpush1.bf16.msra.mxu0 %v1304
        %1322 = vmatprep.subr.bf16.mxu0 0
        %1323 = vmatpush1.bf16.msra.mxu0 %v1305
        %1324 = vmatprep.subr.bf16.mxu0 0
        %1325 = vmatpush1.bf16.msra.mxu0 %v1306
        %1326 = vmatprep.subr.bf16.mxu0 0
        %1327 = vmatpush1.bf16.msra.mxu0 %v1307
        %1328 = vmatprep.subr.bf16.mxu0 0
        %1329 = vmatpush1.bf16.msra.mxu0 %v1308
        %1330 = vmatprep.subr.bf16.mxu0 0
        %1331 = vmatpush1.bf16.msra.mxu0 %v1309
        %1332 = vmatprep.subr.bf16.mxu0 0
        %1333 = vmatpush1.bf16.msra.mxu0 %v1310
        %1334 = vmatprep.subr.bf16.mxu0 0
        %1335 = vmatpush1.bf16.msra.mxu0 %v1311
        %1336 = vmatprep.subr.bf16.mxu0 0
        %1337 = vmatpush1.bf16.msra.mxu0 0
        %1338 = vmatprep.subr.bf16.mxu0 0
        %1339 = vmatpush1.bf16.msra.mxu0 0
        %1340 = vmatprep.subr.bf16.mxu0 0
        %1341 = vmatpush1.bf16.msra.mxu0 0
        %1342 = vmatprep.subr.bf16.mxu0 0
        %1343 = vmatpush1.bf16.msra.mxu0 0
        %1344 = vmatprep.subr.bf16.mxu0 0
        %1345 = vmatpush1.bf16.msra.mxu0 0
        %1346 = vmatprep.subr.bf16.mxu0 0
        %1347 = vmatpush1.bf16.msra.mxu0 0
        %1348 = vmatprep.subr.bf16.mxu0 0
        %1349 = vmatpush1.bf16.msra.mxu0 0
        %1350 = vmatprep.subr.bf16.mxu0 0
        %1351 = vmatpush1.bf16.msra.mxu0 0
        %1352 = vmatprep.mubr.bf16.mxu0 0
        %1353 = vmatmul.mubr.bf16.gmra.mrb[0].mxu0 %v1255
        %v1354 = vpop.f32.mrb[0].mxu0
        %v1355 = vadd.f32 0.0, %v1354
        %v1356 = vpop.f32.mrb[0].mxu0
        %v1357 = vpop.f32.mrb[0].mxu0
        %v1358 = vpop.f32.mrb[0].mxu0
        %1359 = vdwg.mxu0
        %v1360 = vld [vmem:[%s8] sm:$0x1]
        %v1361 = vld [vmem:[%s9] sm:$0x1]
        %v1362 = vunpack.c.l.bf16 %v850
        %v1363 = vadd.f32 %v1362, %v1355
        %1364 = vadd.xlane.f32.xlu0 %v1363
        %v1365 = vpop.xlane.xlu0 %1364
        %v1366 = vrcp.pop 128.0
        %v1367 = vmul.f32 %v1365, %v1366
        %v1368 = vsub.f32 %v1363, %v1367
        %v1369 = vmul.f32 %v1368, %v1368
        %1370 = vadd.xlane.f32.xlu0 %v1369
        %v1371 = vpop.xlane.xlu0 %1370
        %v1372 = vmul.f32 %v1371, %v1366
        %v1373 = vadd.f32 %v1372, 1e-05
        %v1374 = vrsqrt.pop %v1373
        %v1375 = vmul.f32 %v1368, %v1374
        %v1377 = vlaneseq
        %v1378 = vshrl.u32 %v1377, 7
        %v1379 = vsub.s32 0, %v1378
        %v1380 = vrot.slane %v1360, %v1379
        %v1382 = vmul.f32 %v1375, %v1380
        %v1384 = vlaneseq
        %v1385 = vshrl.u32 %v1384, 7
        %v1386 = vsub.s32 0, %v1385
        %v1387 = vrot.slane %v1361, %v1386
        %v1389 = vadd.f32 %v1382, %v1387
        %v1390 = vpack.c.bf16 %v1389, %v1389
        %v1391 = vld [vmem:[#allocation11] sm:$0xff]
        %v1392 = vld [vmem:[#allocation11 + $0x8] sm:$0xff]
        %v1393 = vld [vmem:[#allocation11 + $0x10] sm:$0xff]
        %v1394 = vld [vmem:[#allocation11 + $0x18] sm:$0xff]
        %v1395 = vld [vmem:[#allocation11 + $0x20] sm:$0xff]
        %v1396 = vld [vmem:[#allocation11 + $0x28] sm:$0xff]
        %v1397 = vld [vmem:[#allocation11 + $0x30] sm:$0xff]
        %v1398 = vld [vmem:[#allocation11 + $0x38] sm:$0xff]
        %v1399 = vld [vmem:[#allocation11 + $0x40] sm:$0xff]
        %v1400 = vld [vmem:[#allocation11 + $0x48] sm:$0xff]
        %v1401 = vld [vmem:[#allocation11 + $0x50] sm:$0xff]
        %v1402 = vld [vmem:[#allocation11 + $0x58] sm:$0xff]
        %v1403 = vld [vmem:[#allocation11 + $0x60] sm:$0xff]
        %v1404 = vld [vmem:[#allocation11 + $0x68] sm:$0xff]
        %v1405 = vld [vmem:[#allocation11 + $0x70] sm:$0xff]
        %v1406 = vld [vmem:[#allocation11 + $0x78] sm:$0xff]
        %v1407 = vld [vmem:[#allocation11 + $0x80] sm:$0xff]
        %v1408 = vld [vmem:[#allocation11 + $0x88] sm:$0xff]
        %v1409 = vld [vmem:[#allocation11 + $0x90] sm:$0xff]
        %v1410 = vld [vmem:[#allocation11 + $0x98] sm:$0xff]
        %v1411 = vld [vmem:[#allocation11 + $0xa0] sm:$0xff]
        %v1412 = vld [vmem:[#allocation11 + $0xa8] sm:$0xff]
        %v1413 = vld [vmem:[#allocation11 + $0xb0] sm:$0xff]
        %v1414 = vld [vmem:[#allocation11 + $0xb8] sm:$0xff]
        %v1415 = vld [vmem:[#allocation11 + $0xc0] sm:$0xff]
        %v1416 = vld [vmem:[#allocation11 + $0xc8] sm:$0xff]
        %v1417 = vld [vmem:[#allocation11 + $0xd0] sm:$0xff]
        %v1418 = vld [vmem:[#allocation11 + $0xd8] sm:$0xff]
        %v1419 = vld [vmem:[#allocation11 + $0xe0] sm:$0xff]
        %v1420 = vld [vmem:[#allocation11 + $0xe8] sm:$0xff]
        %v1421 = vld [vmem:[#allocation11 + $0xf0] sm:$0xff]
        %v1422 = vld [vmem:[#allocation11 + $0xf8] sm:$0xff]
        %v1423 = vld [vmem:[%s11] sm:$0xf]
        %v1425 = vlaneseq
        %v1426 = vshrl.u32 %v1425, 7
        %v1427 = vsub.s32 0, %v1426
        %v1428 = vrot.slane %v1423, %v1427
        %v1429 = vlaneseq
        %v1430 = vshrl.u32 %v1429, 7
        %v1431 = vsub.s32 1, %v1430
        %v1432 = vrot.slane %v1423, %v1431
        %v1433 = vlaneseq
        %v1434 = vshrl.u32 %v1433, 7
        %v1435 = vsub.s32 2, %v1434
        %v1436 = vrot.slane %v1423, %v1435
        %v1437 = vlaneseq
        %v1438 = vshrl.u32 %v1437, 7
        %v1439 = vsub.s32 3, %v1438
        %v1440 = vrot.slane %v1423, %v1439
        %v1477 = vunpack.c.l.b16 %v1391
        %v1478 = vunpack.c.h.b16 %v1391
        %v1479 = vunpack.c.l.b16 %v1392
        %v1480 = vunpack.c.h.b16 %v1392
        %v1481 = vunpack.c.l.b16 %v1393
        %v1482 = vunpack.c.h.b16 %v1393
        %v1483 = vunpack.c.l.b16 %v1394
        %v1484 = vunpack.c.h.b16 %v1394
        %v1485 = vunpack.c.l.b16 %v1395
        %v1486 = vunpack.c.h.b16 %v1395
        %v1487 = vunpack.c.l.b16 %v1396
        %v1488 = vunpack.c.h.b16 %v1396
        %v1489 = vunpack.c.l.b16 %v1397
        %v1490 = vunpack.c.h.b16 %v1397
        %v1491 = vunpack.c.l.b16 %v1398
        %v1492 = vunpack.c.h.b16 %v1398
        %v1493 = vunpack.c.l.b16 %v1399
        %v1494 = vunpack.c.h.b16 %v1399
        %v1495 = vunpack.c.l.b16 %v1400
        %v1496 = vunpack.c.h.b16 %v1400
        %v1497 = vunpack.c.l.b16 %v1401
        %v1498 = vunpack.c.h.b16 %v1401
        %v1499 = vunpack.c.l.b16 %v1402
        %v1500 = vunpack.c.h.b16 %v1402
        %v1501 = vunpack.c.l.b16 %v1403
        %v1502 = vunpack.c.h.b16 %v1403
        %v1503 = vunpack.c.l.b16 %v1404
        %v1504 = vunpack.c.h.b16 %v1404
        %v1505 = vunpack.c.l.b16 %v1405
        %v1506 = vunpack.c.h.b16 %v1405
        %v1507 = vunpack.c.l.b16 %v1406
        %v1508 = vunpack.c.h.b16 %v1406
        %v1509 = vunpack.c.l.b16 %v1407
        %v1510 = vunpack.c.h.b16 %v1407
        %v1511 = vunpack.c.l.b16 %v1408
        %v1512 = vunpack.c.h.b16 %v1408
        %v1513 = vunpack.c.l.b16 %v1409
        %v1514 = vunpack.c.h.b16 %v1409
        %v1515 = vunpack.c.l.b16 %v1410
        %v1516 = vunpack.c.h.b16 %v1410
        %v1517 = vunpack.c.l.b16 %v1411
        %v1518 = vunpack.c.h.b16 %v1411
        %v1519 = vunpack.c.l.b16 %v1412
        %v1520 = vunpack.c.h.b16 %v1412
        %v1521 = vunpack.c.l.b16 %v1413
        %v1522 = vunpack.c.h.b16 %v1413
        %v1523 = vunpack.c.l.b16 %v1414
        %v1524 = vunpack.c.h.b16 %v1414
        %v1525 = vunpack.c.l.b16 %v1415
        %v1526 = vunpack.c.h.b16 %v1415
        %v1527 = vunpack.c.l.b16 %v1416
        %v1528 = vunpack.c.h.b16 %v1416
        %v1529 = vunpack.c.l.b16 %v1417
        %v1530 = vunpack.c.h.b16 %v1417
        %v1531 = vunpack.c.l.b16 %v1418
        %v1532 = vunpack.c.h.b16 %v1418
        %v1533 = vunpack.c.l.b16 %v1419
        %v1534 = vunpack.c.h.b16 %v1419
        %v1535 = vunpack.c.l.b16 %v1420
        %v1536 = vunpack.c.h.b16 %v1420
        %v1537 = vunpack.c.l.b16 %v1421
        %v1538 = vunpack.c.h.b16 %v1421
        %v1539 = vunpack.c.l.b16 %v1422
        %v1540 = vunpack.c.h.b16 %v1422
        %v1541 = vpack.c.b16 %v1481, %v1477
        %v1542 = vpack.c.b16 %v1482, %v1478
        %v1543 = vpack.c.b16 %v1483, %v1479
        %v1544 = vpack.c.b16 %v1484, %v1480
        %v1545 = vpack.c.b16 %v1489, %v1485
        %v1546 = vpack.c.b16 %v1490, %v1486
        %v1547 = vpack.c.b16 %v1491, %v1487
        %v1548 = vpack.c.b16 %v1492, %v1488
        %v1549 = vpack.c.b16 %v1497, %v1493
        %v1550 = vpack.c.b16 %v1498, %v1494
        %v1551 = vpack.c.b16 %v1499, %v1495
        %v1552 = vpack.c.b16 %v1500, %v1496
        %v1553 = vpack.c.b16 %v1505, %v1501
        %v1554 = vpack.c.b16 %v1506, %v1502
        %v1555 = vpack.c.b16 %v1507, %v1503
        %v1556 = vpack.c.b16 %v1508, %v1504
        %v1557 = vpack.c.b16 %v1513, %v1509
        %v1558 = vpack.c.b16 %v1514, %v1510
        %v1559 = vpack.c.b16 %v1515, %v1511
        %v1560 = vpack.c.b16 %v1516, %v1512
        %v1561 = vpack.c.b16 %v1521, %v1517
        %v1562 = vpack.c.b16 %v1522, %v1518
        %v1563 = vpack.c.b16 %v1523, %v1519
        %v1564 = vpack.c.b16 %v1524, %v1520
        %v1565 = vpack.c.b16 %v1529, %v1525
        %v1566 = vpack.c.b16 %v1530, %v1526
        %v1567 = vpack.c.b16 %v1531, %v1527
        %v1568 = vpack.c.b16 %v1532, %v1528
        %v1569 = vpack.c.b16 %v1537, %v1533
        %v1570 = vpack.c.b16 %v1538, %v1534
        %v1571 = vpack.c.b16 %v1539, %v1535
        %v1572 = vpack.c.b16 %v1540, %v1536
        %1605 = vmatprep.subr.bf16.mxu0 %v1542
        %1606 = vmatpush1.bf16.msra.mxu0 %v1541
        %1607 = vmatprep.subr.bf16.mxu0 %v1546
        %1608 = vmatpush1.bf16.msra.mxu0 %v1545
        %1609 = vmatprep.subr.bf16.mxu0 %v1550
        %1610 = vmatpush1.bf16.msra.mxu0 %v1549
        %1611 = vmatprep.subr.bf16.mxu0 %v1554
        %1612 = vmatpush1.bf16.msra.mxu0 %v1553
        %1613 = vmatprep.subr.bf16.mxu0 %v1558
        %1614 = vmatpush1.bf16.msra.mxu0 %v1557
        %1615 = vmatprep.subr.bf16.mxu0 %v1562
        %1616 = vmatpush1.bf16.msra.mxu0 %v1561
        %1617 = vmatprep.subr.bf16.mxu0 %v1566
        %1618 = vmatpush1.bf16.msra.mxu0 %v1565
        %1619 = vmatprep.subr.bf16.mxu0 %v1570
        %1620 = vmatpush1.bf16.msra.mxu0 %v1569
        %1621 = vmatprep.subr.bf16.mxu0 0
        %1622 = vmatpush1.bf16.msra.mxu0 0
        %1623 = vmatprep.subr.bf16.mxu0 0
        %1624 = vmatpush1.bf16.msra.mxu0 0
        %1625 = vmatprep.subr.bf16.mxu0 0
        %1626 = vmatpush1.bf16.msra.mxu0 0
        %1627 = vmatprep.subr.bf16.mxu0 0
        %1628 = vmatpush1.bf16.msra.mxu0 0
        %1629 = vmatprep.subr.bf16.mxu0 0
        %1630 = vmatpush1.bf16.msra.mxu0 0
        %1631 = vmatprep.subr.bf16.mxu0 0
        %1632 = vmatpush1.bf16.msra.mxu0 0
        %1633 = vmatprep.subr.bf16.mxu0 0
        %1634 = vmatpush1.bf16.msra.mxu0 0
        %1635 = vmatprep.subr.bf16.mxu0 0
        %1636 = vmatpush1.bf16.msra.mxu0 0
        %1637 = vmatprep.mubr.bf16.mxu0 0
        %1638 = vmatmul.mubr.bf16.gmra.mrb[0].mxu0 %v1390
        %v1639 = vpop.f32.mrb[0].mxu0
        %v1640 = vadd.f32 %v1428, %v1639
        %v1641 = vpop.f32.mrb[0].mxu0
        %v1642 = vadd.f32 %v1432, %v1641
        %v1643 = vpop.f32.mrb[0].mxu0
        %v1644 = vpop.f32.mrb[0].mxu0
        %1645 = vdwg.mxu0
        %1646 = vmatprep.subr.bf16.mxu0 %v1544
        %1647 = vmatpush1.bf16.msra.mxu0 %v1543
        %1648 = vmatprep.subr.bf16.mxu0 %v1548
        %1649 = vmatpush1.bf16.msra.mxu0 %v1547
        %1650 = vmatprep.subr.bf16.mxu0 %v1552
        %1651 = vmatpush1.bf16.msra.mxu0 %v1551
        %1652 = vmatprep.subr.bf16.mxu0 %v1556
        %1653 = vmatpush1.bf16.msra.mxu0 %v1555
        %1654 = vmatprep.subr.bf16.mxu0 %v1560
        %1655 = vmatpush1.bf16.msra.mxu0 %v1559
        %1656 = vmatprep.subr.bf16.mxu0 %v1564
        %1657 = vmatpush1.bf16.msra.mxu0 %v1563
        %1658 = vmatprep.subr.bf16.mxu0 %v1568
        %1659 = vmatpush1.bf16.msra.mxu0 %v1567
        %1660 = vmatprep.subr.bf16.mxu0 %v1572
        %1661 = vmatpush1.bf16.msra.mxu0 %v1571
        %1662 = vmatprep.subr.bf16.mxu0 0
        %1663 = vmatpush1.bf16.msra.mxu0 0
        %1664 = vmatprep.subr.bf16.mxu0 0
        %1665 = vmatpush1.bf16.msra.mxu0 0
        %1666 = vmatprep.subr.bf16.mxu0 0
        %1667 = vmatpush1.bf16.msra.mxu0 0
        %1668 = vmatprep.subr.bf16.mxu0 0
        %1669 = vmatpush1.bf16.msra.mxu0 0
        %1670 = vmatprep.subr.bf16.mxu0 0
        %1671 = vmatpush1.bf16.msra.mxu0 0
        %1672 = vmatprep.subr.bf16.mxu0 0
        %1673 = vmatpush1.bf16.msra.mxu0 0
        %1674 = vmatprep.subr.bf16.mxu0 0
        %1675 = vmatpush1.bf16.msra.mxu0 0
        %1676 = vmatprep.subr.bf16.mxu0 0
        %1677 = vmatpush1.bf16.msra.mxu0 0
        %1678 = vmatprep.mubr.bf16.mxu0 0
        %1679 = vmatmul.mubr.bf16.gmra.mrb[0].mxu0 %v1390
        %v1680 = vpop.f32.mrb[0].mxu0
        %v1681 = vadd.f32 %v1436, %v1680
        %v1682 = vpop.f32.mrb[0].mxu0
        %v1683 = vadd.f32 %v1440, %v1682
        %v1684 = vpop.f32.mrb[0].mxu0
        %v1685 = vpop.f32.mrb[0].mxu0
        %1686 = vdwg.mxu0
        %v1687 = vmul.f32 %v1640, 0.5
        %v1688 = vmul.f32 %v1642, 0.5
        %v1689 = vmul.f32 %v1681, 0.5
        %v1690 = vmul.f32 %v1683, 0.5
        %v1691 = vmul.f32 %v1640, 0.70710677
        %v1692 = vmul.f32 %v1642, 0.70710677
        %v1693 = vmul.f32 %v1681, 0.70710677
        %v1694 = vmul.f32 %v1683, 0.70710677
        %v1695 = verf.f32.pop %v1691
        %v1696 = verf.f32.pop %v1692
        %v1697 = verf.f32.pop %v1693
        %v1698 = verf.f32.pop %v1694
        %v1699 = vadd.f32 %v1695, 1.0
        %v1700 = vadd.f32 %v1696, 1.0
        %v1701 = vadd.f32 %v1697, 1.0
        %v1702 = vadd.f32 %v1698, 1.0
        %v1703 = vmul.f32 %v1687, %v1699
        %v1704 = vmul.f32 %v1688, %v1700
        %v1705 = vmul.f32 %v1689, %v1701
        %v1706 = vmul.f32 %v1690, %v1702
        %v1707 = vpack.c.bf16 %v1703, %v1703
        %v1708 = vpack.c.bf16 %v1704, %v1704
        %v1709 = vpack.c.bf16 %v1705, %v1705
        %v1710 = vpack.c.bf16 %v1706, %v1706
        %v1711 = vld [vmem:[#allocation13] sm:$0xf]
        %v1712 = vld [vmem:[#allocation13 + $0x4] sm:$0xf]
        %v1713 = vld [vmem:[#allocation13 + $0x8] sm:$0xf]
        %v1714 = vld [vmem:[#allocation13 + $0xc] sm:$0xf]
        %v1715 = vld [vmem:[#allocation13 + $0x10] sm:$0xf]
        %v1716 = vld [vmem:[#allocation13 + $0x14] sm:$0xf]
        %v1717 = vld [vmem:[#allocation13 + $0x18] sm:$0xf]
        %v1718 = vld [vmem:[#allocation13 + $0x1c] sm:$0xf]
        %v1719 = vld [vmem:[#allocation13 + $0x20] sm:$0xf]
        %v1720 = vld [vmem:[#allocation13 + $0x24] sm:$0xf]
        %v1721 = vld [vmem:[#allocation13 + $0x28] sm:$0xf]
        %v1722 = vld [vmem:[#allocation13 + $0x2c] sm:$0xf]
        %v1723 = vld [vmem:[#allocation13 + $0x30] sm:$0xf]
        %v1724 = vld [vmem:[#allocation13 + $0x34] sm:$0xf]
        %v1725 = vld [vmem:[#allocation13 + $0x38] sm:$0xf]
        %v1726 = vld [vmem:[#allocation13 + $0x3c] sm:$0xf]
        %v1727 = vld [vmem:[#allocation13 + $0x40] sm:$0xf]
        %v1728 = vld [vmem:[#allocation13 + $0x44] sm:$0xf]
        %v1729 = vld [vmem:[#allocation13 + $0x48] sm:$0xf]
        %v1730 = vld [vmem:[#allocation13 + $0x4c] sm:$0xf]
        %v1731 = vld [vmem:[#allocation13 + $0x50] sm:$0xf]
        %v1732 = vld [vmem:[#allocation13 + $0x54] sm:$0xf]
        %v1733 = vld [vmem:[#allocation13 + $0x58] sm:$0xf]
        %v1734 = vld [vmem:[#allocation13 + $0x5c] sm:$0xf]
        %v1735 = vld [vmem:[#allocation13 + $0x60] sm:$0xf]
        %v1736 = vld [vmem:[#allocation13 + $0x64] sm:$0xf]
        %v1737 = vld [vmem:[#allocation13 + $0x68] sm:$0xf]
        %v1738 = vld [vmem:[#allocation13 + $0x6c] sm:$0xf]
        %v1739 = vld [vmem:[#allocation13 + $0x70] sm:$0xf]
        %v1740 = vld [vmem:[#allocation13 + $0x74] sm:$0xf]
        %v1741 = vld [vmem:[#allocation13 + $0x78] sm:$0xf]
        %v1742 = vld [vmem:[#allocation13 + $0x7c] sm:$0xf]
        %v1743 = vld [vmem:[#allocation13 + $0x80] sm:$0xf]
        %v1744 = vld [vmem:[#allocation13 + $0x84] sm:$0xf]
        %v1745 = vld [vmem:[#allocation13 + $0x88] sm:$0xf]
        %v1746 = vld [vmem:[#allocation13 + $0x8c] sm:$0xf]
        %v1747 = vld [vmem:[#allocation13 + $0x90] sm:$0xf]
        %v1748 = vld [vmem:[#allocation13 + $0x94] sm:$0xf]
        %v1749 = vld [vmem:[#allocation13 + $0x98] sm:$0xf]
        %v1750 = vld [vmem:[#allocation13 + $0x9c] sm:$0xf]
        %v1751 = vld [vmem:[#allocation13 + $0xa0] sm:$0xf]
        %v1752 = vld [vmem:[#allocation13 + $0xa4] sm:$0xf]
        %v1753 = vld [vmem:[#allocation13 + $0xa8] sm:$0xf]
        %v1754 = vld [vmem:[#allocation13 + $0xac] sm:$0xf]
        %v1755 = vld [vmem:[#allocation13 + $0xb0] sm:$0xf]
        %v1756 = vld [vmem:[#allocation13 + $0xb4] sm:$0xf]
        %v1757 = vld [vmem:[#allocation13 + $0xb8] sm:$0xf]
        %v1758 = vld [vmem:[#allocation13 + $0xbc] sm:$0xf]
        %v1759 = vld [vmem:[#allocation13 + $0xc0] sm:$0xf]
        %v1760 = vld [vmem:[#allocation13 + $0xc4] sm:$0xf]
        %v1761 = vld [vmem:[#allocation13 + $0xc8] sm:$0xf]
        %v1762 = vld [vmem:[#allocation13 + $0xcc] sm:$0xf]
        %v1763 = vld [vmem:[#allocation13 + $0xd0] sm:$0xf]
        %v1764 = vld [vmem:[#allocation13 + $0xd4] sm:$0xf]
        %v1765 = vld [vmem:[#allocation13 + $0xd8] sm:$0xf]
        %v1766 = vld [vmem:[#allocation13 + $0xdc] sm:$0xf]
        %v1767 = vld [vmem:[#allocation13 + $0xe0] sm:$0xf]
        %v1768 = vld [vmem:[#allocation13 + $0xe4] sm:$0xf]
        %v1769 = vld [vmem:[#allocation13 + $0xe8] sm:$0xf]
        %v1770 = vld [vmem:[#allocation13 + $0xec] sm:$0xf]
        %v1771 = vld [vmem:[#allocation13 + $0xf0] sm:$0xf]
        %v1772 = vld [vmem:[#allocation13 + $0xf4] sm:$0xf]
        %v1773 = vld [vmem:[#allocation13 + $0xf8] sm:$0xf]
        %v1774 = vld [vmem:[#allocation13 + $0xfc] sm:$0xf]
        %v1775 = vld [vmem:[%s13] sm:$0x1]
        %v1777 = vlaneseq
        %v1778 = vshrl.u32 %v1777, 7
        %v1779 = vsub.s32 0, %v1778
        %v1780 = vrot.slane %v1775, %v1779
        %v1846 = vunpack.c.l.b16 %v1711
        %v1847 = vunpack.c.l.b16 %v1712
        %v1848 = vunpack.c.l.b16 %v1713
        %v1849 = vunpack.c.l.b16 %v1714
        %v1850 = vunpack.c.l.b16 %v1715
        %v1851 = vunpack.c.l.b16 %v1716
        %v1852 = vunpack.c.l.b16 %v1717
        %v1853 = vunpack.c.l.b16 %v1718
        %v1854 = vunpack.c.l.b16 %v1719
        %v1855 = vunpack.c.l.b16 %v1720
        %v1856 = vunpack.c.l.b16 %v1721
        %v1857 = vunpack.c.l.b16 %v1722
        %v1858 = vunpack.c.l.b16 %v1723
        %v1859 = vunpack.c.l.b16 %v1724
        %v1860 = vunpack.c.l.b16 %v1725
        %v1861 = vunpack.c.l.b16 %v1726
        %v1862 = vunpack.c.l.b16 %v1727
        %v1863 = vunpack.c.l.b16 %v1728
        %v1864 = vunpack.c.l.b16 %v1729
        %v1865 = vunpack.c.l.b16 %v1730
        %v1866 = vunpack.c.l.b16 %v1731
        %v1867 = vunpack.c.l.b16 %v1732
        %v1868 = vunpack.c.l.b16 %v1733
        %v1869 = vunpack.c.l.b16 %v1734
        %v1870 = vunpack.c.l.b16 %v1735
        %v1871 = vunpack.c.l.b16 %v1736
        %v1872 = vunpack.c.l.b16 %v1737
        %v1873 = vunpack.c.l.b16 %v1738
        %v1874 = vunpack.c.l.b16 %v1739
        %v1875 = vunpack.c.l.b16 %v1740
        %v1876 = vunpack.c.l.b16 %v1741
        %v1877 = vunpack.c.l.b16 %v1742
        %v1878 = vunpack.c.l.b16 %v1743
        %v1879 = vunpack.c.l.b16 %v1744
        %v1880 = vunpack.c.l.b16 %v1745
        %v1881 = vunpack.c.l.b16 %v1746
        %v1882 = vunpack.c.l.b16 %v1747
        %v1883 = vunpack.c.l.b16 %v1748
        %v1884 = vunpack.c.l.b16 %v1749
        %v1885 = vunpack.c.l.b16 %v1750
        %v1886 = vunpack.c.l.b16 %v1751
        %v1887 = vunpack.c.l.b16 %v1752
        %v1888 = vunpack.c.l.b16 %v1753
        %v1889 = vunpack.c.l.b16 %v1754
        %v1890 = vunpack.c.l.b16 %v1755
        %v1891 = vunpack.c.l.b16 %v1756
        %v1892 = vunpack.c.l.b16 %v1757
        %v1893 = vunpack.c.l.b16 %v1758
        %v1894 = vunpack.c.l.b16 %v1759
        %v1895 = vunpack.c.l.b16 %v1760
        %v1896 = vunpack.c.l.b16 %v1761
        %v1897 = vunpack.c.l.b16 %v1762
        %v1898 = vunpack.c.l.b16 %v1763
        %v1899 = vunpack.c.l.b16 %v1764
        %v1900 = vunpack.c.l.b16 %v1765
        %v1901 = vunpack.c.l.b16 %v1766
        %v1902 = vunpack.c.l.b16 %v1767
        %v1903 = vunpack.c.l.b16 %v1768
        %v1904 = vunpack.c.l.b16 %v1769
        %v1905 = vunpack.c.l.b16 %v1770
        %v1906 = vunpack.c.l.b16 %v1771
        %v1907 = vunpack.c.l.b16 %v1772
        %v1908 = vunpack.c.l.b16 %v1773
        %v1909 = vunpack.c.l.b16 %v1774
        %v1910 = vpack.c.b16 %v1847, %v1846
        %v1911 = vpack.c.b16 %v1849, %v1848
        %v1912 = vpack.c.b16 %v1851, %v1850
        %v1913 = vpack.c.b16 %v1853, %v1852
        %v1914 = vpack.c.b16 %v1855, %v1854
        %v1915 = vpack.c.b16 %v1857, %v1856
        %v1916 = vpack.c.b16 %v1859, %v1858
        %v1917 = vpack.c.b16 %v1861, %v1860
        %v1918 = vpack.c.b16 %v1863, %v1862
        %v1919 = vpack.c.b16 %v1865, %v1864
        %v1920 = vpack.c.b16 %v1867, %v1866
        %v1921 = vpack.c.b16 %v1869, %v1868
        %v1922 = vpack.c.b16 %v1871, %v1870
        %v1923 = vpack.c.b16 %v1873, %v1872
        %v1924 = vpack.c.b16 %v1875, %v1874
        %v1925 = vpack.c.b16 %v1877, %v1876
        %v1926 = vpack.c.b16 %v1879, %v1878
        %v1927 = vpack.c.b16 %v1881, %v1880
        %v1928 = vpack.c.b16 %v1883, %v1882
        %v1929 = vpack.c.b16 %v1885, %v1884
        %v1930 = vpack.c.b16 %v1887, %v1886
        %v1931 = vpack.c.b16 %v1889, %v1888
        %v1932 = vpack.c.b16 %v1891, %v1890
        %v1933 = vpack.c.b16 %v1893, %v1892
        %v1934 = vpack.c.b16 %v1895, %v1894
        %v1935 = vpack.c.b16 %v1897, %v1896
        %v1936 = vpack.c.b16 %v1899, %v1898
        %v1937 = vpack.c.b16 %v1901, %v1900
        %v1938 = vpack.c.b16 %v1903, %v1902
        %v1939 = vpack.c.b16 %v1905, %v1904
        %v1940 = vpack.c.b16 %v1907, %v1906
        %v1941 = vpack.c.b16 %v1909, %v1908
        %1974 = vmatprep.subr.bf16.mxu0 0
        %1975 = vmatpush1.bf16.msra.mxu0 %v1910
        %1976 = vmatprep.subr.bf16.mxu0 0
        %1977 = vmatpush1.bf16.msra.mxu0 %v1911
        %1978 = vmatprep.subr.bf16.mxu0 0
        %1979 = vmatpush1.bf16.msra.mxu0 %v1912
        %1980 = vmatprep.subr.bf16.mxu0 0
        %1981 = vmatpush1.bf16.msra.mxu0 %v1913
        %1982 = vmatprep.subr.bf16.mxu0 0
        %1983 = vmatpush1.bf16.msra.mxu0 %v1914
        %1984 = vmatprep.subr.bf16.mxu0 0
        %1985 = vmatpush1.bf16.msra.mxu0 %v1915
        %1986 = vmatprep.subr.bf16.mxu0 0
        %1987 = vmatpush1.bf16.msra.mxu0 %v1916
        %1988 = vmatprep.subr.bf16.mxu0 0
        %1989 = vmatpush1.bf16.msra.mxu0 %v1917
        %1990 = vmatprep.subr.bf16.mxu0 0
        %1991 = vmatpush1.bf16.msra.mxu0 %v1918
        %1992 = vmatprep.subr.bf16.mxu0 0
        %1993 = vmatpush1.bf16.msra.mxu0 %v1919
        %1994 = vmatprep.subr.bf16.mxu0 0
        %1995 = vmatpush1.bf16.msra.mxu0 %v1920
        %1996 = vmatprep.subr.bf16.mxu0 0
        %1997 = vmatpush1.bf16.msra.mxu0 %v1921
        %1998 = vmatprep.subr.bf16.mxu0 0
        %1999 = vmatpush1.bf16.msra.mxu0 %v1922
        %2000 = vmatprep.subr.bf16.mxu0 0
        %2001 = vmatpush1.bf16.msra.mxu0 %v1923
        %2002 = vmatprep.subr.bf16.mxu0 0
        %2003 = vmatpush1.bf16.msra.mxu0 %v1924
        %2004 = vmatprep.subr.bf16.mxu0 0
        %2005 = vmatpush1.bf16.msra.mxu0 %v1925
        %2006 = vmatprep.mubr.bf16.mxu0 %v1708
        %2007 = vmatmul.mubr.bf16.gmra.mrb[0].mxu0 %v1707
        %v2008 = vpop.f32.mrb[0].mxu0
        %v2009 = vadd.f32 %v1780, %v2008
        %v2010 = vpop.f32.mrb[0].mxu0
        %v2011 = vpop.f32.mrb[0].mxu0
        %v2012 = vpop.f32.mrb[0].mxu0
        %2013 = vdwg.mxu0
        %2014 = vmatprep.subr.bf16.mxu0 0
        %2015 = vmatpush1.bf16.msra.mxu0 %v1926
        %2016 = vmatprep.subr.bf16.mxu0 0
        %2017 = vmatpush1.bf16.msra.mxu0 %v1927
        %2018 = vmatprep.subr.bf16.mxu0 0
        %2019 = vmatpush1.bf16.msra.mxu0 %v1928
        %2020 = vmatprep.subr.bf16.mxu0 0
        %2021 = vmatpush1.bf16.msra.mxu0 %v1929
        %2022 = vmatprep.subr.bf16.mxu0 0
        %2023 = vmatpush1.bf16.msra.mxu0 %v1930
        %2024 = vmatprep.subr.bf16.mxu0 0
        %2025 = vmatpush1.bf16.msra.mxu0 %v1931
        %2026 = vmatprep.subr.bf16.mxu0 0
        %2027 = vmatpush1.bf16.msra.mxu0 %v1932
        %2028 = vmatprep.subr.bf16.mxu0 0
        %2029 = vmatpush1.bf16.msra.mxu0 %v1933
        %2030 = vmatprep.subr.bf16.mxu0 0
        %2031 = vmatpush1.bf16.msra.mxu0 %v1934
        %2032 = vmatprep.subr.bf16.mxu0 0
        %2033 = vmatpush1.bf16.msra.mxu0 %v1935
        %2034 = vmatprep.subr.bf16.mxu0 0
        %2035 = vmatpush1.bf16.msra.mxu0 %v1936
        %2036 = vmatprep.subr.bf16.mxu0 0
        %2037 = vmatpush1.bf16.msra.mxu0 %v1937
        %2038 = vmatprep.subr.bf16.mxu0 0
        %2039 = vmatpush1.bf16.msra.mxu0 %v1938
        %2040 = vmatprep.subr.bf16.mxu0 0
        %2041 = vmatpush1.bf16.msra.mxu0 %v1939
        %2042 = vmatprep.subr.bf16.mxu0 0
        %2043 = vmatpush1.bf16.msra.mxu0 %v1940
        %2044 = vmatprep.subr.bf16.mxu0 0
        %2045 = vmatpush1.bf16.msra.mxu0 %v1941
        %2046 = vmatprep.mubr.bf16.mxu0 %v1710
        %2047 = vmatmul.mubr.bf16.gmra.mrb[0].mxu0 %v1709
        %v2048 = vpop.f32.mrb[0].mxu0
        %v2049 = vadd.f32 %v2009, %v2048
        %v2050 = vpop.f32.mrb[0].mxu0
        %v2051 = vpop.f32.mrb[0].mxu0
        %v2052 = vpop.f32.mrb[0].mxu0
        %2053 = vdwg.mxu0
        %v2054 = vadd.f32 %v1389, %v2049
        %2055 = vadd.xlane.f32.xlu0 %v2054
        %v2056 = vpop.xlane.xlu0 %2055
        %v2057 = vmul.f32 %v2056, %v1366
        %v2058 = vsub.f32 %v2054, %v2057
        %v2059 = vmul.f32 %v2058, %v2058
        %2060 = vadd.xlane.f32.xlu0 %v2059
        %v2061 = vpop.xlane.xlu0 %2060
        %v2062 = vmul.f32 %v2061, %v1366
        %v2063 = vadd.f32 %v2062, 1e-05
        %v2064 = vrsqrt.pop %v2063
        %v2065 = vmul.f32 %v2058, %v2064
        %v2066 = vmul.f32 %v2065, %v1380
        %v2067 = vadd.f32 %v2066, %v1387
        %2068 = vst [vmem:[%s591] sm:$0xff] %v2067
        %s2069 = sand.u32 %s366, 1
        %s2070 = scalar_lea.sflag [#allocation7], %s2069
        %s2071 = sand.u32 %s366, 1
        %s2072 = smul.addr %s2071, 8
        %s2073 = scalar_lea.vmem [#allocation14], %s2072
        // Predicated region
        $region101: #{tpu_custom_call.1} parent=75 // pred_check
          %p2074 = pneg %p376
        $region102: #{tpu_custom_call.1} parent=75 // pred_check_branch
          %2076 = sbr.rel (%p2074) target = $region104
        $region103: #{tpu_custom_call.1} parent=75 // pred_region
          %s2078 = ssub.s32 128, 128
          %2079 = vsyncadd %s2070, %s2078
          %s2080 = smul.addr %s37, 3
          %s2081 = sadd.s32 %s38, %s2080
          %s2082 = smul.addr %s2081, 128
          %s2083 = scalar_lea.hbm %s14, %s2082
          %s2085 = sshll.u32 %s2073, 4
          %s2086 = int_to_ptr.vmem [resolvable:$true] %s2085
          %2088 = dma.vmem_to_hbm [thread:$0]  %s2086, 128, %s2083, %s2070
        $region104: #{tpu_custom_call.1} parent=75 // pred_fallthru
          _
      $region76: #{tpu_custom_call.1} parent=5 // pred_fallthru
        _
      %p2089 = scmp.le.s32.totalorder 2, %s28
      // Predicated region
      $region105: #{tpu_custom_call.1} parent=5 // pred_check
        %p2090 = pneg %p2089
      $region106: #{tpu_custom_call.1} parent=5 // pred_check_branch
        %2092 = sbr.rel (%p2090) target = $region108
      $region107: #{tpu_custom_call.1} parent=5 // pred_region
        %s2093 = ssub.s32 %s28, 2
        // Predicated region
        $region109: #{tpu_custom_call.1} parent=107 // pred_check
          %p2094 = pneg %p382
        $region110: #{tpu_custom_call.1} parent=107 // pred_check_branch
          %2096 = sbr.rel (%p2094) target = $region112
        $region111: #{tpu_custom_call.1} parent=107 // pred_region
          %s2097 = sand.u32 %s367, 1
          %s2098 = scalar_lea.sflag [#allocation7], %s2097
          %s2099 = sand.u32 %s367, 1
          %s2100 = smul.addr %s2099, 8
          %s2101 = scalar_lea.vmem [#allocation14], %s2100
          %2102 = dma.done %s2098, 128
        $region112: #{tpu_custom_call.1} parent=107 // pred_fallthru
          _
      $region108: #{tpu_custom_call.1} parent=5 // pred_fallthru
        _
    $region6: #{tpu_custom_call.1} parent=1 // loop_footer
      %s32 = sadd.s32 1, %s28
    $region7: #{tpu_custom_call.1} parent=1 // loop_footer_branch
      %27 = sbr.rel target = $region3
    $region8: #{tpu_custom_call.1} parent=1 // loop_exit
      _
    %2103 = vsyncpa [#allocation6], 1
    %s2104 = scalar_lea.sflag [#allocation6], 1
    %2105 = vsyncpa %s2104, 1
    %2106 = vsyncpa [#allocation9], 1
    %2107 = vsyncpa [#allocation12], 1
    %2108 = vsyncpa [#allocation7], 1
    %s2109 = scalar_lea.sflag [#allocation7], 1
    %2110 = vsyncpa %s2109, 1

</llo_original>
